<compile_context>
chip_gen: v5e
topology: v5e:2x2
jax: 0.10.0
libtpu: 0.0.40
codegen_flags: <defaults>
</compile_context>

<pallas_src>
import math

import jax
import jax.numpy as jnp
from jax import lax
from jax.experimental import pallas as pl
from jax.experimental.pallas import tpu as pltpu

# ----------------------------- configuration --------------------------------
HIDDEN = 512
NUM_HEADS = 4
HEAD_K = HIDDEN // NUM_HEADS      # 128
HEAD_V = HIDDEN // NUM_HEADS      # 128
NUM_SLOTS = HEAD_K                # 128 (module default: num_slots = head_k_dim)
GATE_LOGIT_NORMALIZER = 16.0
NORM_EPS = 1e-5
BATCH, SEQ = 2, 8

KEY_DIM = NUM_HEADS * HEAD_K          # 512 (q / k width)
VALUE_DIM = NUM_HEADS * HEAD_V        # 512 (v width)
SLOT_DIM = NUM_HEADS * NUM_SLOTS      # 512 (f width)
QKVF_DIM = 2 * KEY_DIM + VALUE_DIM + SLOT_DIM   # 2048

# MXU matmul operand dtype (accumulation is always f32).  Set to jnp.float32 for
# bit-closer matching against the f32 reference.
MXU_DTYPE = jnp.bfloat16


def _swish(x):
    return x * jax.nn.sigmoid(x)


def _logsigmoid(x):
    # stable log-sigmoid, same formula used in kernel and reference
    return jnp.minimum(x, 0.0) - jnp.log(1.0 + jnp.exp(-jnp.abs(x)))


# ----------------------------- Pallas kernel ---------------------------------
def _mxu(a, b):
    """a @ b with MXU_DTYPE operands and f32 accumulation."""
    return jnp.dot(a.astype(MXU_DTYPE), b.astype(MXU_DTYPE),
                   preferred_element_type=jnp.float32)


def _mxu_nt(a, b):
    """a @ b.T (contract over the last dim of both) without materializing a transpose."""
    return lax.dot_general(a.astype(MXU_DTYPE), b.astype(MXU_DTYPE),
                           (((1,), (1,)), ((), ())),
                           preferred_element_type=jnp.float32)


def _fused_gated_abc_kernel(x_ref, wcat_ref, wo_ref, gnw_ref, y_ref):
    """Fused forward for one batch element (all heads):
    qkvf projection -> chunk-parallel 2-stage gated ABC -> swish -> RMSNorm -> o_proj."""
    T = x_ref.shape[1]
    x = x_ref[0, :, :]                                        # (T, D) f32

    # fused q/k/v/f projection (bf16 operands, f32 accumulation)
    qkvf = _mxu(x, wcat_ref[...])                             # (T, 2048) f32

    # feature map (swish) for q/k/v; log forget gates for f -- all heads at once, f32
    qkv = qkvf[:, :2 * KEY_DIM + VALUE_DIM]                   # (T, 1536)
    qkv = qkv * jax.nn.sigmoid(qkv)                           # swish(q|k|v)
    f = qkvf[:, 2 * KEY_DIM + VALUE_DIM:]                     # (T, 512)
    g = _logsigmoid(f) * (1.0 / GATE_LOGIT_NORMALIZER)        # (T, H*M) log forget gate

    # causal mask (lower triangular incl. diagonal); also acts as the inclusive cumsum
    # operator over time when used as a matmul LHS.  A scaled copy folds the 1/sqrt(K)
    # query scale into the stage-1 score masking (saves a (T,K) multiply per head).
    row = lax.broadcasted_iota(jnp.int32, (T, T), 0)
    col = lax.broadcasted_iota(jnp.int32, (T, T), 1)
    causal = (col <= row).astype(jnp.float32)                 # (T, T)
    causal_scaled = causal * (HEAD_K ** -0.5)                 # (T, T) scale folded in

    G = jnp.dot(causal, g, preferred_element_type=jnp.float32)   # inclusive cumsum_t(g)
    eG = jnp.exp(G)                                           # (T, H*M)
    u = (1.0 - jnp.exp(g)) * jnp.exp(-G)                      # (T, H*M) = s[t]*exp(-G[t])
    # TODO(synk): for long sequences, tile T into chunks and carry (hk, hv) state across
    # chunks so exp(-G) stays bounded; a single chunk is exact (and safe) at T=8.

    outs = []
    for h in range(NUM_HEADS):                                # static 4-way unroll
        q_h = qkv[:, h * HEAD_K:(h + 1) * HEAD_K]                                # (T, K)
        k_h = qkv[:, KEY_DIM + h * HEAD_K:KEY_DIM + (h + 1) * HEAD_K]            # (T, K)
        v_h = qkv[:, 2 * KEY_DIM + h * HEAD_V:2 * KEY_DIM + (h + 1) * HEAD_V]    # (T, V)
        eG_h = eG[:, h * NUM_SLOTS:(h + 1) * NUM_SLOTS]                          # (T, M)
        u_h = u[:, h * NUM_SLOTS:(h + 1) * NUM_SLOTS]                            # (T, M)

        # stage 1: ok[t,m] = sum_{s<=t} scale*(q_t . k_s) * s[s,m] * exp(G[t,m]-G[s,m])
        A = _mxu_nt(q_h, k_h) * causal_scaled                 # (T, T) causal scaled scores
        ok = eG_h * _mxu(A, u_h)                              # (T, M) slot logits

        # softmax over slots (f32, EUP reciprocal)
        mx = jnp.max(ok, axis=-1, keepdims=True)
        e = jnp.exp(ok - mx)
        p = e * pl.reciprocal(jnp.sum(e, axis=-1, keepdims=True), approx=True)

        # stage 2: o[t,d] = sum_{s<=t} [sum_m p[t,m] eG[t,m] u[s,m]] * v[s,d]
        W = _mxu_nt(p * eG_h, u_h) * causal                   # (T, T)
        outs.append(_mxu(W, v_h))                             # (T, V)

    o = jnp.concatenate(outs, axis=-1)                        # (T, H*V) heads on lane axis

    # swish -> RMSNorm (affine) -> output projection (RMSNormLinear path), f32 math
    o = o * jax.nn.sigmoid(o)
    o = o * lax.rsqrt(jnp.mean(o * o, axis=-1, keepdims=True) + NORM_EPS)
    o = o * gnw_ref[...]
    y = _mxu(o, wo_ref[...])                                  # (T, D) f32
    y_ref[...] = y[None].astype(y_ref.dtype)


# ----------------------------- forward wrapper --------------------------------
def gated_abc_attention_forward(hidden, params):
    B, T, D = hidden.shape

    # fuse all four projection weights (heads contiguous on the lane axis) and cast the
    # MXU operands to bf16 once here -- halves weight HBM traffic, accumulation stays f32.
    w_cat = jnp.concatenate(
        [params["wq"], params["wk"], params["wv"], params["wf"]],
        axis=1).astype(MXU_DTYPE)                             # (D, 2048)
    wo = params["wo"].astype(MXU_DTYPE)                       # (H*V, D)
    gnw = params["g_norm_w"].astype(jnp.float32)              # (1, D)

    # TODO(synk): when B*T grows, additionally tile T into chunks inside the grid
    # (block (1, T_chunk, D)) and carry (hk, hv) chunk state; at the toy size a whole
    # sequence per grid step is the largest VMEM-friendly block.
    return pl.pallas_call(
        _fused_gated_abc_kernel,
        out_shape=jax.ShapeDtypeStruct((B, T, D), jnp.float32),
        grid_spec=pltpu.PrefetchScalarGridSpec(
            num_scalar_prefetch=0,
            grid=(B,),
            in_specs=[
                pl.BlockSpec((1, T, D), lambda b: (b, 0, 0)),       # hidden states
                pl.BlockSpec((D, QKVF_DIM), lambda b: (0, 0)),      # fused qkvf weight (resident)
                pl.BlockSpec((VALUE_DIM, D), lambda b: (0, 0)),     # o_proj weight (resident)
                pl.BlockSpec((1, D), lambda b: (0, 0)),             # RMSNorm affine weight
            ],
            out_specs=pl.BlockSpec((1, T, D), lambda b: (b, 0, 0)),
        ),
        compiler_params=pltpu.CompilerParams(
            dimension_semantics=("parallel",)),                     # B>=2 -> shards 2 TCs on v7x
    )(hidden.astype(jnp.float32), w_cat, wo, gnw)


# TODO(synk): optional branches (short-conv, RoPE, output gate, KV cache / recurrent
# state passing) are disabled by the default module config and not implemented here.


# ----------------------------- pure-JAX reference ---------------------------
def reference_forward(hidden, params):
    B, T, D = hidden.shape
    x = hidden.reshape(B * T, D)
    q = x @ params["wq"]
    k = x @ params["wk"]
    v = x @ params["wv"]
    f = x @ params["wf"]
    H = NUM_HEADS

    def split(a, d):
        return a.reshape(B, T, H, d).transpose(0, 2, 1, 3)

    q, k, v, f = split(q, HEAD_K), split(k, HEAD_K), split(v, HEAD_V), split(f, NUM_SLOTS)
    q, k, v = _swish(q), _swish(k), _swish(v)
    g = _logsigmoid(f) / GATE_LOGIT_NORMALIZER
    ge = jnp.exp(g)
    s = 1.0 - ge
    scale = HEAD_K ** -0.5

    hk = jnp.zeros((B, H, HEAD_K, NUM_SLOTS), jnp.float32)
    ok = []
    for t in range(T):
        hk = hk * ge[:, :, t][:, :, None, :] + \
            k[:, :, t][..., :, None] * s[:, :, t][..., None, :]
        ok.append(jnp.einsum("bhk,bhkm->bhm", q[:, :, t] * scale, hk))
    ok = jnp.stack(ok, axis=2)
    p = jax.nn.softmax(ok, axis=-1)

    hv = jnp.zeros((B, H, NUM_SLOTS, HEAD_V), jnp.float32)
    ov = []
    for t in range(T):
        hv = hv * ge[:, :, t][..., :, None] + \
            s[:, :, t][..., :, None] * v[:, :, t][..., None, :]
        ov.append(jnp.einsum("bhm,bhmv->bhv", p[:, :, t], hv))
    o = jnp.stack(ov, axis=2)                                   # (B,H,T,V)

    o = o.transpose(0, 2, 1, 3).reshape(B * T, H * HEAD_V)
    o = _swish(o)
    o = o * lax.rsqrt(jnp.mean(o * o, axis=-1, keepdims=True) + NORM_EPS)
    o = o * params["g_norm_w"]
    y = o @ params["wo"]
    return y.reshape(B, T, D)


# --------------------------------- main --------------------------------------
def _xavier_uniform(key, fan_in, fan_out, gain):
    # stored as (in, out) == torch weight.T, so y = x @ W
    bound = gain * math.sqrt(6.0 / (fan_in + fan_out))
    return jax.random.uniform(key, (fan_in, fan_out), jnp.float32, -bound, bound)


if __name__ == "__main__":
    key = jax.random.PRNGKey(0)
    ks = jax.random.split(key, 6)
    gain = 2.0 ** (-2.5)

    params = {
        "wq": _xavier_uniform(ks[0], HIDDEN, HIDDEN, gain),                 # key_dim
        "wk": _xavier_uniform(ks[1], HIDDEN, HIDDEN, gain),                 # key_dim_per_group
        "wv": _xavier_uniform(ks[2], HIDDEN, HIDDEN, gain),                 # value_dim_per_group
        "wf": _xavier_uniform(ks[3], HIDDEN, NUM_HEADS * NUM_SLOTS, gain),  # slots
        "wo": _xavier_uniform(ks[4], HIDDEN, HIDDEN, gain),                 # o_proj (value_dim->hidden)
        "g_norm_w": jnp.ones((1, HIDDEN), jnp.float32),                     # RMSNorm affine weight
    }

    hidden_states = jax.random.normal(ks[5], (BATCH, SEQ, HIDDEN), jnp.float32)

    out = gated_abc_attention_forward(hidden_states, params)
    out = jax.block_until_ready(out)

    ref = reference_forward(hidden_states, params)
    assert out.shape == (BATCH, SEQ, HIDDEN)
    assert jnp.all(jnp.isfinite(out))
    tol = 1e-2 if MXU_DTYPE == jnp.bfloat16 else 2e-3   # bf16 MXU operands, f32 accumulation
    assert jnp.allclose(out, ref, rtol=tol, atol=tol)

    print("KERNEL_OK")
</pallas_src>

<mosaic_0001>
module attributes {stable_mosaic.version = 11 : i64} {
  func.func @_fused_gated_abc_kernel(%arg0: i32, %arg1: memref<1x8x512xf32, #tpu.memory_space<vmem>>, %arg2: memref<512x2048xbf16, #tpu.memory_space<vmem>>, %arg3: memref<512x512xbf16, #tpu.memory_space<vmem>>, %arg4: memref<1x512xf32, #tpu.memory_space<vmem>>, %arg5: memref<1x8x512xf32, #tpu.memory_space<vmem>>) attributes {dimension_semantics = [#tpu.dimension_semantics<parallel>], iteration_bounds = array<i64: 2>, scalar_prefetch = 0 : i64, scratch_operands = 0 : i64, tpu.core_type = #tpu.core_type<tc>, window_params = [{transform_indices = @transform_0, window_bounds = array<i64: 1, 8, 512>}, {pipeline_mode = #tpu.pipeline_mode<synchronous>, transform_indices = @transform_1, window_bounds = array<i64: 512, 2048>}, {pipeline_mode = #tpu.pipeline_mode<synchronous>, transform_indices = @transform_2, window_bounds = array<i64: 512, 512>}, {pipeline_mode = #tpu.pipeline_mode<synchronous>, transform_indices = @transform_3, window_bounds = array<i64: 1, 512>}, {transform_indices = @transform_4, window_bounds = array<i64: 1, 8, 512>}]} {
    %c0 = arith.constant 0 : index
    %c0_0 = arith.constant 0 : index
    %c0_1 = arith.constant 0 : index
    %0 = vector.load %arg1[%c0, %c0_0, %c0_1] : memref<1x8x512xf32, #tpu.memory_space<vmem>>, vector<1x8x512xf32>
    %1 = vector.shape_cast %0 : vector<1x8x512xf32> to vector<8x512xf32>
    %c0_2 = arith.constant 0 : index
    %c0_3 = arith.constant 0 : index
    %2 = vector.load %arg2[%c0_2, %c0_3] : memref<512x2048xbf16, #tpu.memory_space<vmem>>, vector<512x2048xbf16>
    %3 = arith.truncf %1 : vector<8x512xf32> to vector<8x512xbf16>
    %cst = arith.constant dense<0.000000e+00> : vector<8x2048xf32>
    %4 = tpu.matmul %3, %2, %cst {dimension_numbers = #tpu.dot_dimension_numbers<[1], [0], [0], [1], [0, 0, 1, 1], [], []>} : vector<8x512xbf16>, vector<512x2048xbf16>, vector<8x2048xf32> -> vector<8x2048xf32>
    %5 = vector.extract_strided_slice %4 {offsets = [0, 0], sizes = [8, 1536], strides = [1, 1]} : vector<8x2048xf32> to vector<8x1536xf32>
    %6 = arith.negf %5 : vector<8x1536xf32>
    %7 = math.exp %6 : vector<8x1536xf32>
    %cst_4 = arith.constant 1.000000e+00 : f32
    %8 = vector.broadcast %cst_4 : f32 to vector<8x1536xf32>
    %9 = arith.addf %8, %7 : vector<8x1536xf32>
    %10 = arith.divf %8, %9 : vector<8x1536xf32>
    %11 = arith.mulf %5, %10 : vector<8x1536xf32>
    %12 = vector.extract_strided_slice %4 {offsets = [0, 1536], sizes = [8, 512], strides = [1, 1]} : vector<8x2048xf32> to vector<8x512xf32>
    %cst_5 = arith.constant 0.000000e+00 : f32
    %13 = vector.broadcast %cst_5 : f32 to vector<8x512xf32>
    %14 = arith.minimumf %12, %13 : vector<8x512xf32>
    %15 = math.absf %12 : vector<8x512xf32>
    %cst_6 = arith.constant 0.000000e+00 : f32
    %16 = vector.broadcast %cst_6 : f32 to vector<8x512xf32>
    %17 = arith.subf %16, %15 : vector<8x512xf32>
    %18 = math.exp %17 : vector<8x512xf32>
    %cst_7 = arith.constant 1.000000e+00 : f32
    %19 = vector.broadcast %cst_7 : f32 to vector<8x512xf32>
    %20 = arith.addf %19, %18 : vector<8x512xf32>
    %21 = math.log %20 : vector<8x512xf32>
    %22 = arith.subf %14, %21 : vector<8x512xf32>
    %cst_8 = arith.constant 6.250000e-02 : f32
    %23 = vector.broadcast %cst_8 : f32 to vector<8x512xf32>
    %24 = arith.mulf %22, %23 : vector<8x512xf32>
    %25 = tpu.iota {dimensions = array<i32: 0>} : vector<8x8xi32>
    %26 = tpu.iota {dimensions = array<i32: 1>} : vector<8x8xi32>
    %27 = arith.cmpi sle, %26, %25 : vector<8x8xi32>
    %28 = arith.extui %27 : vector<8x8xi1> to vector<8x8xi32>
    %29 = arith.sitofp %28 : vector<8x8xi32> to vector<8x8xf32>
    %cst_9 = arith.constant 0.0883883461 : f32
    %30 = vector.broadcast %cst_9 : f32 to vector<8x8xf32>
    %31 = arith.mulf %29, %30 : vector<8x8xf32>
    %cst_10 = arith.constant dense<0.000000e+00> : vector<8x512xf32>
    %32 = tpu.matmul %29, %24, %cst_10 {dimension_numbers = #tpu.dot_dimension_numbers<[1], [0], [0], [1], [0, 0, 1, 1], [], []>} : vector<8x8xf32>, vector<8x512xf32>, vector<8x512xf32> -> vector<8x512xf32>
    %33 = math.exp %32 : vector<8x512xf32>
    %34 = math.exp %24 : vector<8x512xf32>
    %cst_11 = arith.constant 1.000000e+00 : f32
    %35 = vector.broadcast %cst_11 : f32 to vector<8x512xf32>
    %36 = arith.subf %35, %34 : vector<8x512xf32>
    %cst_12 = arith.constant 0.000000e+00 : f32
    %37 = vector.broadcast %cst_12 : f32 to vector<8x512xf32>
    %38 = arith.subf %37, %32 : vector<8x512xf32>
    %39 = math.exp %38 : vector<8x512xf32>
    %40 = arith.mulf %36, %39 : vector<8x512xf32>
    %41 = vector.extract_strided_slice %11 {offsets = [0, 0], sizes = [8, 128], strides = [1, 1]} : vector<8x1536xf32> to vector<8x128xf32>
    %42 = vector.extract_strided_slice %11 {offsets = [0, 512], sizes = [8, 128], strides = [1, 1]} : vector<8x1536xf32> to vector<8x128xf32>
    %43 = vector.extract_strided_slice %11 {offsets = [0, 1024], sizes = [8, 128], strides = [1, 1]} : vector<8x1536xf32> to vector<8x128xf32>
    %44 = vector.extract_strided_slice %33 {offsets = [0, 0], sizes = [8, 128], strides = [1, 1]} : vector<8x512xf32> to vector<8x128xf32>
    %45 = vector.extract_strided_slice %40 {offsets = [0, 0], sizes = [8, 128], strides = [1, 1]} : vector<8x512xf32> to vector<8x128xf32>
    %46 = arith.truncf %41 : vector<8x128xf32> to vector<8x128xbf16>
    %47 = arith.truncf %42 : vector<8x128xf32> to vector<8x128xbf16>
    %cst_13 = arith.constant dense<0.000000e+00> : vector<8x8xf32>
    %48 = tpu.matmul %46, %47, %cst_13 {dimension_numbers = #tpu.dot_dimension_numbers<[1], [1], [0], [0], [0, 0, 1, 0], [], []>} : vector<8x128xbf16>, vector<8x128xbf16>, vector<8x8xf32> -> vector<8x8xf32>
    %49 = arith.mulf %48, %31 : vector<8x8xf32>
    %50 = arith.truncf %49 : vector<8x8xf32> to vector<8x8xbf16>
    %51 = arith.truncf %45 : vector<8x128xf32> to vector<8x128xbf16>
    %cst_14 = arith.constant dense<0.000000e+00> : vector<8x128xf32>
    %52 = tpu.matmul %50, %51, %cst_14 {dimension_numbers = #tpu.dot_dimension_numbers<[1], [0], [0], [1], [0, 0, 1, 1], [], []>} : vector<8x8xbf16>, vector<8x128xbf16>, vector<8x128xf32> -> vector<8x128xf32>
    %53 = arith.mulf %44, %52 : vector<8x128xf32>
    %cst_15 = arith.constant dense<0xFF800000> : vector<8xf32>
    %54 = vector.multi_reduction <maximumf>, %53, %cst_15 [1] : vector<8x128xf32> to vector<8xf32>
    %55 = vector.shape_cast %54 : vector<8xf32> to vector<8x1xf32>
    %56 = vector.broadcast %55 : vector<8x1xf32> to vector<8x128xf32>
    %57 = arith.subf %53, %56 : vector<8x128xf32>
    %58 = math.exp %57 : vector<8x128xf32>
    %cst_16 = arith.constant dense<0.000000e+00> : vector<8xf32>
    %59 = vector.multi_reduction <add>, %58, %cst_16 [1] : vector<8x128xf32> to vector<8xf32>
    %60 = vector.shape_cast %59 : vector<8xf32> to vector<8x1xf32>
    %61 = tpu.reciprocal %60 {approx = true} : vector<8x1xf32> -> vector<8x1xf32>
    %62 = vector.broadcast %61 : vector<8x1xf32> to vector<8x128xf32>
    %63 = arith.mulf %58, %62 : vector<8x128xf32>
    %64 = arith.mulf %63, %44 : vector<8x128xf32>
    %65 = arith.truncf %64 : vector<8x128xf32> to vector<8x128xbf16>
    %66 = arith.truncf %45 : vector<8x128xf32> to vector<8x128xbf16>
    %cst_17 = arith.constant dense<0.000000e+00> : vector<8x8xf32>
    %67 = tpu.matmul %65, %66, %cst_17 {dimension_numbers = #tpu.dot_dimension_numbers<[1], [1], [0], [0], [0, 0, 1, 0], [], []>} : vector<8x128xbf16>, vector<8x128xbf16>, vector<8x8xf32> -> vector<8x8xf32>
    %68 = arith.mulf %67, %29 : vector<8x8xf32>
    %69 = arith.truncf %68 : vector<8x8xf32> to vector<8x8xbf16>
    %70 = arith.truncf %43 : vector<8x128xf32> to vector<8x128xbf16>
    %cst_18 = arith.constant dense<0.000000e+00> : vector<8x128xf32>
    %71 = tpu.matmul %69, %70, %cst_18 {dimension_numbers = #tpu.dot_dimension_numbers<[1], [0], [0], [1], [0, 0, 1, 1], [], []>} : vector<8x8xbf16>, vector<8x128xbf16>, vector<8x128xf32> -> vector<8x128xf32>
    %72 = vector.extract_strided_slice %11 {offsets = [0, 128], sizes = [8, 128], strides = [1, 1]} : vector<8x1536xf32> to vector<8x128xf32>
    %73 = vector.extract_strided_slice %11 {offsets = [0, 640], sizes = [8, 128], strides = [1, 1]} : vector<8x1536xf32> to vector<8x128xf32>
    %74 = vector.extract_strided_slice %11 {offsets = [0, 1152], sizes = [8, 128], strides = [1, 1]} : vector<8x1536xf32> to vector<8x128xf32>
    %75 = vector.extract_strided_slice %33 {offsets = [0, 128], sizes = [8, 128], strides = [1, 1]} : vector<8x512xf32> to vector<8x128xf32>
    %76 = vector.extract_strided_slice %40 {offsets = [0, 128], sizes = [8, 128], strides = [1, 1]} : vector<8x512xf32> to vector<8x128xf32>
    %77 = arith.truncf %72 : vector<8x128xf32> to vector<8x128xbf16>
    %78 = arith.truncf %73 : vector<8x128xf32> to vector<8x128xbf16>
    %cst_19 = arith.constant dense<0.000000e+00> : vector<8x8xf32>
    %79 = tpu.matmul %77, %78, %cst_19 {dimension_numbers = #tpu.dot_dimension_numbers<[1], [1], [0], [0], [0, 0, 1, 0], [], []>} : vector<8x128xbf16>, vector<8x128xbf16>, vector<8x8xf32> -> vector<8x8xf32>
    %80 = arith.mulf %79, %31 : vector<8x8xf32>
    %81 = arith.truncf %80 : vector<8x8xf32> to vector<8x8xbf16>
    %82 = arith.truncf %76 : vector<8x128xf32> to vector<8x128xbf16>
    %cst_20 = arith.constant dense<0.000000e+00> : vector<8x128xf32>
    %83 = tpu.matmul %81, %82, %cst_20 {dimension_numbers = #tpu.dot_dimension_numbers<[1], [0], [0], [1], [0, 0, 1, 1], [], []>} : vector<8x8xbf16>, vector<8x128xbf16>, vector<8x128xf32> -> vector<8x128xf32>
    %84 = arith.mulf %75, %83 : vector<8x128xf32>
    %cst_21 = arith.constant dense<0xFF800000> : vector<8xf32>
    %85 = vector.multi_reduction <maximumf>, %84, %cst_21 [1] : vector<8x128xf32> to vector<8xf32>
    %86 = vector.shape_cast %85 : vector<8xf32> to vector<8x1xf32>
    %87 = vector.broadcast %86 : vector<8x1xf32> to vector<8x128xf32>
    %88 = arith.subf %84, %87 : vector<8x128xf32>
    %89 = math.exp %88 : vector<8x128xf32>
    %cst_22 = arith.constant dense<0.000000e+00> : vector<8xf32>
    %90 = vector.multi_reduction <add>, %89, %cst_22 [1] : vector<8x128xf32> to vector<8xf32>
    %91 = vector.shape_cast %90 : vector<8xf32> to vector<8x1xf32>
    %92 = tpu.reciprocal %91 {approx = true} : vector<8x1xf32> -> vector<8x1xf32>
    %93 = vector.broadcast %92 : vector<8x1xf32> to vector<8x128xf32>
    %94 = arith.mulf %89, %93 : vector<8x128xf32>
    %95 = arith.mulf %94, %75 : vector<8x128xf32>
    %96 = arith.truncf %95 : vector<8x128xf32> to vector<8x128xbf16>
    %97 = arith.truncf %76 : vector<8x128xf32> to vector<8x128xbf16>
    %cst_23 = arith.constant dense<0.000000e+00> : vector<8x8xf32>
    %98 = tpu.matmul %96, %97, %cst_23 {dimension_numbers = #tpu.dot_dimension_numbers<[1], [1], [0], [0], [0, 0, 1, 0], [], []>} : vector<8x128xbf16>, vector<8x128xbf16>, vector<8x8xf32> -> vector<8x8xf32>
    %99 = arith.mulf %98, %29 : vector<8x8xf32>
    %100 = arith.truncf %99 : vector<8x8xf32> to vector<8x8xbf16>
    %101 = arith.truncf %74 : vector<8x128xf32> to vector<8x128xbf16>
    %cst_24 = arith.constant dense<0.000000e+00> : vector<8x128xf32>
    %102 = tpu.matmul %100, %101, %cst_24 {dimension_numbers = #tpu.dot_dimension_numbers<[1], [0], [0], [1], [0, 0, 1, 1], [], []>} : vector<8x8xbf16>, vector<8x128xbf16>, vector<8x128xf32> -> vector<8x128xf32>
    %103 = vector.extract_strided_slice %11 {offsets = [0, 256], sizes = [8, 128], strides = [1, 1]} : vector<8x1536xf32> to vector<8x128xf32>
    %104 = vector.extract_strided_slice %11 {offsets = [0, 768], sizes = [8, 128], strides = [1, 1]} : vector<8x1536xf32> to vector<8x128xf32>
    %105 = vector.extract_strided_slice %11 {offsets = [0, 1280], sizes = [8, 128], strides = [1, 1]} : vector<8x1536xf32> to vector<8x128xf32>
    %106 = vector.extract_strided_slice %33 {offsets = [0, 256], sizes = [8, 128], strides = [1, 1]} : vector<8x512xf32> to vector<8x128xf32>
    %107 = vector.extract_strided_slice %40 {offsets = [0, 256], sizes = [8, 128], strides = [1, 1]} : vector<8x512xf32> to vector<8x128xf32>
    %108 = arith.truncf %103 : vector<8x128xf32> to vector<8x128xbf16>
    %109 = arith.truncf %104 : vector<8x128xf32> to vector<8x128xbf16>
    %cst_25 = arith.constant dense<0.000000e+00> : vector<8x8xf32>
    %110 = tpu.matmul %108, %109, %cst_25 {dimension_numbers = #tpu.dot_dimension_numbers<[1], [1], [0], [0], [0, 0, 1, 0], [], []>} : vector<8x128xbf16>, vector<8x128xbf16>, vector<8x8xf32> -> vector<8x8xf32>
    %111 = arith.mulf %110, %31 : vector<8x8xf32>
    %112 = arith.truncf %111 : vector<8x8xf32> to vector<8x8xbf16>
    %113 = arith.truncf %107 : vector<8x128xf32> to vector<8x128xbf16>
    %cst_26 = arith.constant dense<0.000000e+00> : vector<8x128xf32>
    %114 = tpu.matmul %112, %113, %cst_26 {dimension_numbers = #tpu.dot_dimension_numbers<[1], [0], [0], [1], [0, 0, 1, 1], [], []>} : vector<8x8xbf16>, vector<8x128xbf16>, vector<8x128xf32> -> vector<8x128xf32>
    %115 = arith.mulf %106, %114 : vector<8x128xf32>
    %cst_27 = arith.constant dense<0xFF800000> : vector<8xf32>
    %116 = vector.multi_reduction <maximumf>, %115, %cst_27 [1] : vector<8x128xf32> to vector<8xf32>
    %117 = vector.shape_cast %116 : vector<8xf32> to vector<8x1xf32>
    %118 = vector.broadcast %117 : vector<8x1xf32> to vector<8x128xf32>
    %119 = arith.subf %115, %118 : vector<8x128xf32>
    %120 = math.exp %119 : vector<8x128xf32>
    %cst_28 = arith.constant dense<0.000000e+00> : vector<8xf32>
    %121 = vector.multi_reduction <add>, %120, %cst_28 [1] : vector<8x128xf32> to vector<8xf32>
    %122 = vector.shape_cast %121 : vector<8xf32> to vector<8x1xf32>
    %123 = tpu.reciprocal %122 {approx = true} : vector<8x1xf32> -> vector<8x1xf32>
    %124 = vector.broadcast %123 : vector<8x1xf32> to vector<8x128xf32>
    %125 = arith.mulf %120, %124 : vector<8x128xf32>
    %126 = arith.mulf %125, %106 : vector<8x128xf32>
    %127 = arith.truncf %126 : vector<8x128xf32> to vector<8x128xbf16>
    %128 = arith.truncf %107 : vector<8x128xf32> to vector<8x128xbf16>
    %cst_29 = arith.constant dense<0.000000e+00> : vector<8x8xf32>
    %129 = tpu.matmul %127, %128, %cst_29 {dimension_numbers = #tpu.dot_dimension_numbers<[1], [1], [0], [0], [0, 0, 1, 0], [], []>} : vector<8x128xbf16>, vector<8x128xbf16>, vector<8x8xf32> -> vector<8x8xf32>
    %130 = arith.mulf %129, %29 : vector<8x8xf32>
    %131 = arith.truncf %130 : vector<8x8xf32> to vector<8x8xbf16>
    %132 = arith.truncf %105 : vector<8x128xf32> to vector<8x128xbf16>
    %cst_30 = arith.constant dense<0.000000e+00> : vector<8x128xf32>
    %133 = tpu.matmul %131, %132, %cst_30 {dimension_numbers = #tpu.dot_dimension_numbers<[1], [0], [0], [1], [0, 0, 1, 1], [], []>} : vector<8x8xbf16>, vector<8x128xbf16>, vector<8x128xf32> -> vector<8x128xf32>
    %134 = vector.extract_strided_slice %11 {offsets = [0, 384], sizes = [8, 128], strides = [1, 1]} : vector<8x1536xf32> to vector<8x128xf32>
    %135 = vector.extract_strided_slice %11 {offsets = [0, 896], sizes = [8, 128], strides = [1, 1]} : vector<8x1536xf32> to vector<8x128xf32>
    %136 = vector.extract_strided_slice %11 {offsets = [0, 1408], sizes = [8, 128], strides = [1, 1]} : vector<8x1536xf32> to vector<8x128xf32>
    %137 = vector.extract_strided_slice %33 {offsets = [0, 384], sizes = [8, 128], strides = [1, 1]} : vector<8x512xf32> to vector<8x128xf32>
    %138 = vector.extract_strided_slice %40 {offsets = [0, 384], sizes = [8, 128], strides = [1, 1]} : vector<8x512xf32> to vector<8x128xf32>
    %139 = arith.truncf %134 : vector<8x128xf32> to vector<8x128xbf16>
    %140 = arith.truncf %135 : vector<8x128xf32> to vector<8x128xbf16>
    %cst_31 = arith.constant dense<0.000000e+00> : vector<8x8xf32>
    %141 = tpu.matmul %139, %140, %cst_31 {dimension_numbers = #tpu.dot_dimension_numbers<[1], [1], [0], [0], [0, 0, 1, 0], [], []>} : vector<8x128xbf16>, vector<8x128xbf16>, vector<8x8xf32> -> vector<8x8xf32>
    %142 = arith.mulf %141, %31 : vector<8x8xf32>
    %143 = arith.truncf %142 : vector<8x8xf32> to vector<8x8xbf16>
    %144 = arith.truncf %138 : vector<8x128xf32> to vector<8x128xbf16>
    %cst_32 = arith.constant dense<0.000000e+00> : vector<8x128xf32>
    %145 = tpu.matmul %143, %144, %cst_32 {dimension_numbers = #tpu.dot_dimension_numbers<[1], [0], [0], [1], [0, 0, 1, 1], [], []>} : vector<8x8xbf16>, vector<8x128xbf16>, vector<8x128xf32> -> vector<8x128xf32>
    %146 = arith.mulf %137, %145 : vector<8x128xf32>
    %cst_33 = arith.constant dense<0xFF800000> : vector<8xf32>
    %147 = vector.multi_reduction <maximumf>, %146, %cst_33 [1] : vector<8x128xf32> to vector<8xf32>
    %148 = vector.shape_cast %147 : vector<8xf32> to vector<8x1xf32>
    %149 = vector.broadcast %148 : vector<8x1xf32> to vector<8x128xf32>
    %150 = arith.subf %146, %149 : vector<8x128xf32>
    %151 = math.exp %150 : vector<8x128xf32>
    %cst_34 = arith.constant dense<0.000000e+00> : vector<8xf32>
    %152 = vector.multi_reduction <add>, %151, %cst_34 [1] : vector<8x128xf32> to vector<8xf32>
    %153 = vector.shape_cast %152 : vector<8xf32> to vector<8x1xf32>
    %154 = tpu.reciprocal %153 {approx = true} : vector<8x1xf32> -> vector<8x1xf32>
    %155 = vector.broadcast %154 : vector<8x1xf32> to vector<8x128xf32>
    %156 = arith.mulf %151, %155 : vector<8x128xf32>
    %157 = arith.mulf %156, %137 : vector<8x128xf32>
    %158 = arith.truncf %157 : vector<8x128xf32> to vector<8x128xbf16>
    %159 = arith.truncf %138 : vector<8x128xf32> to vector<8x128xbf16>
    %cst_35 = arith.constant dense<0.000000e+00> : vector<8x8xf32>
    %160 = tpu.matmul %158, %159, %cst_35 {dimension_numbers = #tpu.dot_dimension_numbers<[1], [1], [0], [0], [0, 0, 1, 0], [], []>} : vector<8x128xbf16>, vector<8x128xbf16>, vector<8x8xf32> -> vector<8x8xf32>
    %161 = arith.mulf %160, %29 : vector<8x8xf32>
    %162 = arith.truncf %161 : vector<8x8xf32> to vector<8x8xbf16>
    %163 = arith.truncf %136 : vector<8x128xf32> to vector<8x128xbf16>
    %cst_36 = arith.constant dense<0.000000e+00> : vector<8x128xf32>
    %164 = tpu.matmul %162, %163, %cst_36 {dimension_numbers = #tpu.dot_dimension_numbers<[1], [0], [0], [1], [0, 0, 1, 1], [], []>} : vector<8x8xbf16>, vector<8x128xbf16>, vector<8x128xf32> -> vector<8x128xf32>
    %165 = tpu.concatenate %71, %102, %133, %164 in 1 : vector<8x128xf32>, vector<8x128xf32>, vector<8x128xf32>, vector<8x128xf32> -> vector<8x512xf32>
    %166 = arith.negf %165 : vector<8x512xf32>
    %167 = math.exp %166 : vector<8x512xf32>
    %cst_37 = arith.constant 1.000000e+00 : f32
    %168 = vector.broadcast %cst_37 : f32 to vector<8x512xf32>
    %169 = arith.addf %168, %167 : vector<8x512xf32>
    %170 = arith.divf %168, %169 : vector<8x512xf32>
    %171 = arith.mulf %165, %170 : vector<8x512xf32>
    %172 = arith.mulf %171, %171 : vector<8x512xf32>
    %cst_38 = arith.constant dense<0.000000e+00> : vector<8xf32>
    %173 = vector.multi_reduction <add>, %172, %cst_38 [1] : vector<8x512xf32> to vector<8xf32>
    %174 = vector.shape_cast %173 : vector<8xf32> to vector<8x1xf32>
    %cst_39 = arith.constant 5.120000e+02 : f32
    %175 = vector.broadcast %cst_39 : f32 to vector<8x1xf32>
    %176 = arith.divf %174, %175 : vector<8x1xf32>
    %cst_40 = arith.constant 9.99999974E-6 : f32
    %177 = vector.broadcast %cst_40 : f32 to vector<8x1xf32>
    %178 = arith.addf %176, %177 : vector<8x1xf32>
    %179 = math.rsqrt %178 : vector<8x1xf32>
    %180 = vector.broadcast %179 : vector<8x1xf32> to vector<8x512xf32>
    %181 = arith.mulf %171, %180 : vector<8x512xf32>
    %c0_41 = arith.constant 0 : index
    %c0_42 = arith.constant 0 : index
    %182 = vector.load %arg4[%c0_41, %c0_42] : memref<1x512xf32, #tpu.memory_space<vmem>>, vector<1x512xf32>
    %183 = vector.broadcast %182 : vector<1x512xf32> to vector<8x512xf32>
    %184 = arith.mulf %181, %183 : vector<8x512xf32>
    %c0_43 = arith.constant 0 : index
    %c0_44 = arith.constant 0 : index
    %185 = vector.load %arg3[%c0_43, %c0_44] : memref<512x512xbf16, #tpu.memory_space<vmem>>, vector<512x512xbf16>
    %186 = arith.truncf %184 : vector<8x512xf32> to vector<8x512xbf16>
    %cst_45 = arith.constant dense<0.000000e+00> : vector<8x512xf32>
    %187 = tpu.matmul %186, %185, %cst_45 {dimension_numbers = #tpu.dot_dimension_numbers<[1], [0], [0], [1], [0, 0, 1, 1], [], []>} : vector<8x512xbf16>, vector<512x512xbf16>, vector<8x512xf32> -> vector<8x512xf32>
    %188 = vector.shape_cast %187 : vector<8x512xf32> to vector<1x8x512xf32>
    %c0_46 = arith.constant 0 : index
    %c0_47 = arith.constant 0 : index
    %c0_48 = arith.constant 0 : index
    %189 = vector.load %arg5[%c0_46, %c0_47, %c0_48] : memref<1x8x512xf32, #tpu.memory_space<vmem>>, vector<1x8x512xf32>
    tpu.vector_store %arg5[%c0_46, %c0_47, %c0_48], %188 {strides = array<i32>} : memref<1x8x512xf32, #tpu.memory_space<vmem>>, vector<1x8x512xf32>,
    return
  }
  func.func @transform_0(%arg0: i32) -> (i32, i32, i32) {
    %c0_i32 = arith.constant 0 : i32
    %c0_i32_0 = arith.constant 0 : i32
    %c0_i32_1 = arith.constant 0 : i32
    return %arg0, %c0_i32, %c0_i32_0 : i32, i32, i32
  }
  func.func @transform_1(%arg0: i32) -> (i32, i32) {
    %c0_i32 = arith.constant 0 : i32
    %c0_i32_0 = arith.constant 0 : i32
    %c0_i32_1 = arith.constant 0 : i32
    return %c0_i32, %c0_i32_0 : i32, i32
  }
  func.func @transform_2(%arg0: i32) -> (i32, i32) {
    %c0_i32 = arith.constant 0 : i32
    %c0_i32_0 = arith.constant 0 : i32
    %c0_i32_1 = arith.constant 0 : i32
    return %c0_i32, %c0_i32_0 : i32, i32
  }
  func.func @transform_3(%arg0: i32) -> (i32, i32) {
    %c0_i32 = arith.constant 0 : i32
    %c0_i32_0 = arith.constant 0 : i32
    %c0_i32_1 = arith.constant 0 : i32
    return %c0_i32, %c0_i32_0 : i32, i32
  }
  func.func @transform_4(%arg0: i32) -> (i32, i32, i32) {
    %c0_i32 = arith.constant 0 : i32
    %c0_i32_0 = arith.constant 0 : i32
    %c0_i32_1 = arith.constant 0 : i32
    return %arg0, %c0_i32, %c0_i32_0 : i32, i32, i32
  }
}

</mosaic_0001>

<llo_original>
// kernel: tpu_custom_call.1
$region0: #{tpu_custom_call.1}
  #allocation0 [shape = 'u32[]', space=smem, size = 0x4, offset = 0x4, fixed_abs, tag = 'smem constant byte address 0x4 - core index']
  #allocation1 [shape = 'u32[72,128]{1,0:T(1,128)}', space=vmem, size = 0x9000, scoped, tag = 'internal scratch']
  %s0 = inlined_call_operand.hbm [shape: f32[2,8,512], index: 0, kind: input, shape index: {}]
  %s1 = inlined_call_operand.hbm [shape: bf16[512,2048], index: 1, kind: input, shape index: {}]
  %s2 = inlined_call_operand.hbm [shape: bf16[512,512], index: 2, kind: input, shape index: {}]
  %s3 = inlined_call_operand.hbm [shape: f32[1,512], index: 3, kind: input, shape index: {}]
  %s4 = inlined_call_operand.hbm [shape: f32[2,8,512], index: 4, kind: output, shape index: {}]
  %s5 = sld [smem:[#allocation0]]
  $region65: #{tpu_custom_call.1} parent=0
    _
  %s7 = ssub.s32 1, %s5
  %s8 = scalar_select 0, %s7, %s5
  $region1: #{tpu_custom_call.1} parent=0
    #allocation2 [shape = 'u8[32768]{0}', space=vmem, size = 0x8000, scoped, tag = 'input window, operand 0']
    #allocation3 [shape = 's32[2]{0}', space=sflag, size = 0x8, scoped, tag = 'scoped memory for tpu_custom_call.1']
    #allocation4 [shape = 's32[2]{0}', space=sflag, size = 0x8, scoped, tag = 'scoped memory for tpu_custom_call.1']
    #allocation5 [shape = 'u8[2097152]{0}', space=vmem, size = 0x200000, scoped, tag = 'input window, operand 1, single buffered']
    #allocation6 [shape = 's32[1]{0}', space=sflag, size = 0x4, scoped, tag = 'scoped memory for tpu_custom_call.1']
    #allocation7 [shape = 'u8[524288]{0}', space=vmem, size = 0x80000, scoped, tag = 'input window, operand 2, single buffered']
    #allocation8 [shape = 'u8[2048]{0}', space=vmem, size = 0x800, scoped, tag = 'input window, operand 3, single buffered']
    #allocation9 [shape = 's32[1]{0}', space=sflag, size = 0x4, scoped, tag = 'scoped memory for tpu_custom_call.1']
    #allocation10 [shape = 'u8[32768]{0}', space=vmem, size = 0x8000, scoped, tag = 'output window, operand 0']
    %9 = vsyncpa [#allocation3], 0
    %s10 = scalar_lea.sflag [#allocation3], 1
    %11 = vsyncpa %s10, 0
    %12 = vsyncpa [#allocation6], 0
    %13 = vsyncpa [#allocation9], 0
    %14 = vsyncpa [#allocation4], 0
    %s15 = scalar_lea.sflag [#allocation4], 1
    %16 = vsyncpa %s15, 0
    loop: start=0, step=1, limit=4
    $region2: #{tpu_custom_call.1} parent=1 // loop_pre_header
      _
    $region3: #{tpu_custom_call.1} parent=1 // loop_header
      %s18 = sphi 0, %s22
      %p19 = scmp.ge.s32.totalorder %s18, 4
      %s28 = sphi 0, %s30
      %s31 = sphi 0, %s28
      %s32 = sphi 0, %s31
      %s48 = sphi 0, %s32
      %s52 = sphi 0, %s52
      %s54 = sphi 0, %s52
      %s55 = sphi 0, %s54
      %s69 = sphi 0, %s55
      %s73 = sphi 0, %s73
      %s75 = sphi 0, %s73
      %s76 = sphi 0, %s75
      %s90 = sphi 0, %s76
      %s94 = sphi 0, %s94
      %s96 = sphi 0, %s94
      %s97 = sphi 0, %s96
      %s111 = sphi 0, %s97
      %s117 = sphi 0, %s119
      %s120 = sphi 0, %s117
      %s121 = sphi 0, %s120
      %s137 = sphi 0, %s121
    $region4: #{tpu_custom_call.1} parent=1 // loop_header_branch
      %21 = sbr.rel (%p19) target = $region8
    $region5: #{tpu_custom_call.1} parent=1 // loop_body
      %s23 = ssub.s32 %s18, 1
      %s24 = ssub.s32 %s18, 2
      %s25 = sadd.s32 %s18, 1
      %s26 = ssub.s32 %s18, %s25
      %p27 = scmp.eq.s32.totalorder %s26, 0
      %s29 = sadd.s32 %s28, 1
      %s30 = scalar_select %p27, %s28, %s29
      %p33 = pneg %p27
      %p34 = scmp.eq.s32.totalorder %s18, 1
      %p35 = por %p33, %p34
      %p36 = scmp.ne.s32.totalorder %s28, %s31
      %p37 = scmp.eq.s32.totalorder %s18, 0
      %p38 = por %p36, %p37
      %p39 = scmp.ne.s32.totalorder %s28, %s31
      %p40 = scmp.eq.s32.totalorder %s23, 1
      %p41 = por %p39, %p40
      %p42 = scmp.ne.s32.totalorder %s31, %s32
      %p43 = scmp.eq.s32.totalorder %s23, 0
      %p44 = por %p42, %p43
      %p45 = scmp.ne.s32.totalorder %s31, %s32
      %p46 = scmp.eq.s32.totalorder %s24, 1
      %p47 = por %p45, %p46
      %p49 = scmp.ne.s32.totalorder %s32, %s48
      %p50 = scmp.eq.s32.totalorder %s24, 0
      %p51 = por %p49, %p50
      %s53 = sadd.s32 %s52, 1
      %p56 = scmp.eq.s32.totalorder %s18, 1
      %p57 = scmp.ne.s32.totalorder %s52, %s54
      %p58 = scmp.eq.s32.totalorder %s18, 0
      %p59 = por %p57, %p58
      %p60 = scmp.ne.s32.totalorder %s52, %s54
      %p61 = scmp.eq.s32.totalorder %s23, 1
      %p62 = por %p60, %p61
      %p63 = scmp.ne.s32.totalorder %s54, %s55
      %p64 = scmp.eq.s32.totalorder %s23, 0
      %p65 = por %p63, %p64
      %p66 = scmp.ne.s32.totalorder %s54, %s55
      %p67 = scmp.eq.s32.totalorder %s24, 1
      %p68 = por %p66, %p67
      %p70 = scmp.ne.s32.totalorder %s55, %s69
      %p71 = scmp.eq.s32.totalorder %s24, 0
      %p72 = por %p70, %p71
      %s74 = sadd.s32 %s73, 1
      %p77 = scmp.eq.s32.totalorder %s18, 1
      %p78 = scmp.ne.s32.totalorder %s73, %s75
      %p79 = scmp.eq.s32.totalorder %s18, 0
      %p80 = por %p78, %p79
      %p81 = scmp.ne.s32.totalorder %s73, %s75
      %p82 = scmp.eq.s32.totalorder %s23, 1
      %p83 = por %p81, %p82
      %p84 = scmp.ne.s32.totalorder %s75, %s76
      %p85 = scmp.eq.s32.totalorder %s23, 0
      %p86 = por %p84, %p85
      %p87 = scmp.ne.s32.totalorder %s75, %s76
      %p88 = scmp.eq.s32.totalorder %s24, 1
      %p89 = por %p87, %p88
      %p91 = scmp.ne.s32.totalorder %s76, %s90
      %p92 = scmp.eq.s32.totalorder %s24, 0
      %p93 = por %p91, %p92
      %s95 = sadd.s32 %s94, 1
      %p98 = scmp.eq.s32.totalorder %s18, 1
      %p99 = scmp.ne.s32.totalorder %s94, %s96
      %p100 = scmp.eq.s32.totalorder %s18, 0
      %p101 = por %p99, %p100
      %p102 = scmp.ne.s32.totalorder %s94, %s96
      %p103 = scmp.eq.s32.totalorder %s23, 1
      %p104 = por %p102, %p103
      %p105 = scmp.ne.s32.totalorder %s96, %s97
      %p106 = scmp.eq.s32.totalorder %s23, 0
      %p107 = por %p105, %p106
      %p108 = scmp.ne.s32.totalorder %s96, %s97
      %p109 = scmp.eq.s32.totalorder %s24, 1
      %p110 = por %p108, %p109
      %p112 = scmp.ne.s32.totalorder %s97, %s111
      %p113 = scmp.eq.s32.totalorder %s24, 0
      %p114 = por %p112, %p113
      %s115 = ssub.s32 %s18, %s25
      %p116 = scmp.eq.s32.totalorder %s115, 0
      %s118 = sadd.s32 %s117, 1
      %s119 = scalar_select %p116, %s117, %s118
      %p122 = pneg %p116
      %p123 = scmp.eq.s32.totalorder %s18, 1
      %p124 = por %p122, %p123
      %p125 = scmp.ne.s32.totalorder %s117, %s120
      %p126 = scmp.eq.s32.totalorder %s18, 0
      %p127 = por %p125, %p126
      %p128 = scmp.ne.s32.totalorder %s117, %s120
      %p129 = scmp.eq.s32.totalorder %s23, 1
      %p130 = por %p128, %p129
      %p131 = scmp.ne.s32.totalorder %s120, %s121
      %p132 = scmp.eq.s32.totalorder %s23, 0
      %p133 = por %p131, %p132
      %p134 = scmp.ne.s32.totalorder %s120, %s121
      %p135 = scmp.eq.s32.totalorder %s24, 1
      %p136 = por %p134, %p135
      %p138 = scmp.ne.s32.totalorder %s121, %s137
      %p139 = scmp.eq.s32.totalorder %s24, 0
      %p140 = por %p138, %p139
      %p141 = scmp.le.s32.totalorder 1, %s18
      %p142 = scmp.lt.s32.totalorder %s18, 3
      %p143 = pnand %p141, %p142
      %p144 = pneg %p143
      // Predicated region
      $region9: #{tpu_custom_call.1} parent=5 // pred_check
        _
      $region10: #{tpu_custom_call.1} parent=5 // pred_check_branch
        %146 = sbr.rel (%p143) target = $region12
      $region11: #{tpu_custom_call.1} parent=5 // pred_region
        %s147 = ssub.s32 %s18, 1
        // Predicated region
        $region13: #{tpu_custom_call.1} parent=11 // pred_check
          %p148 = pneg %p65
        $region14: #{tpu_custom_call.1} parent=11 // pred_check_branch
          %150 = sbr.rel (%p148) target = $region16
        $region15: #{tpu_custom_call.1} parent=11 // pred_region
          %152 = vsyncadd [#allocation6], 0
          %s153 = sshll.u32 %s1, 4
          %s154 = int_to_ptr.hbm [resolvable:$true] %s153
          %s155 = sshll.u32 [#allocation5], 4
          %s156 = int_to_ptr.vmem [resolvable:$true] %s155
          %161 = dma.hbm_to_vmem [thread:$0]  %s154, 65536, %s156, [#allocation6], 1024, 1024, 64
        $region16: #{tpu_custom_call.1} parent=11 // pred_fallthru
          _
        // Predicated region
        $region17: #{tpu_custom_call.1} parent=11 // pred_check
          %p162 = pneg %p86
        $region18: #{tpu_custom_call.1} parent=11 // pred_check_branch
          %164 = sbr.rel (%p162) target = $region20
        $region19: #{tpu_custom_call.1} parent=11 // pred_region
          %166 = vsyncadd [#allocation6], 0
          %s167 = sshll.u32 %s2, 4
          %s168 = int_to_ptr.hbm [resolvable:$true] %s167
          %s169 = sshll.u32 [#allocation7], 4
          %s170 = int_to_ptr.vmem [resolvable:$true] %s169
          %175 = dma.hbm_to_vmem [thread:$0]  %s168, 16384, %s170, [#allocation6], 256, 256, 16
        $region20: #{tpu_custom_call.1} parent=11 // pred_fallthru
          _
        // Predicated region
        $region21: #{tpu_custom_call.1} parent=11 // pred_check
          %p176 = pneg %p107
        $region22: #{tpu_custom_call.1} parent=11 // pred_check_branch
          %178 = sbr.rel (%p176) target = $region24
        $region23: #{tpu_custom_call.1} parent=11 // pred_region
          %180 = vsyncadd [#allocation9], 0
          %s182 = sshll.u32 %s3, 4
          %s183 = int_to_ptr.hbm [resolvable:$true] %s182
          %s184 = sshll.u32 [#allocation8], 4
          %s185 = int_to_ptr.vmem [resolvable:$true] %s184
          %187 = dma.hbm_to_vmem [thread:$0]  %s183, 64, %s185, [#allocation9]
        $region24: #{tpu_custom_call.1} parent=11 // pred_fallthru
          _
      $region12: #{tpu_custom_call.1} parent=5 // pred_fallthru
        _
      %p188 = scmp.lt.s32.totalorder %s18, 2
      // Predicated region
      $region25: #{tpu_custom_call.1} parent=5 // pred_check
        %p189 = pneg %p188
      $region26: #{tpu_custom_call.1} parent=5 // pred_check_branch
        %191 = sbr.rel (%p189) target = $region28
      $region27: #{tpu_custom_call.1} parent=5 // pred_region
        // Predicated region
        $region29: #{tpu_custom_call.1} parent=27 // pred_check
          %p192 = pneg %p38
        $region30: #{tpu_custom_call.1} parent=27 // pred_check_branch
          %194 = sbr.rel (%p192) target = $region32
        $region31: #{tpu_custom_call.1} parent=27 // pred_region
          %s195 = sand.u32 %s28, 1
          %s196 = scalar_lea.sflag [#allocation3], %s195
          %s197 = sand.u32 %s28, 1
          %s198 = smul.addr %s197, 32
          %s199 = scalar_lea.vmem [#allocation2], %s198
          %201 = vsyncadd %s196, 0
          %s202 = smul.addr %s18, 4
          %s203 = smul.addr %s202, 8
          %s204 = scalar_lea.hbm %s0, %s203
          %s206 = sshll.u32 %s204, 4
          %s207 = int_to_ptr.hbm [resolvable:$true] %s206
          %s208 = sshll.u32 %s199, 4
          %s209 = int_to_ptr.vmem [resolvable:$true] %s208
          %211 = dma.hbm_to_vmem [thread:$0]  %s207, 512, %s209, %s196
        $region32: #{tpu_custom_call.1} parent=27 // pred_fallthru
          _
      $region28: #{tpu_custom_call.1} parent=5 // pred_fallthru
        _
      %p212 = scmp.le.s32.totalorder 1, %s18
      %p213 = scmp.lt.s32.totalorder %s18, 3
      %p214 = pnand %p212, %p213
      %p215 = pneg %p214
      // Predicated region
      $region33: #{tpu_custom_call.1} parent=5 // pred_check
        _
      $region34: #{tpu_custom_call.1} parent=5 // pred_check_branch
        %217 = sbr.rel (%p214) target = $region36
      $region35: #{tpu_custom_call.1} parent=5 // pred_region
        %s218 = ssub.s32 %s18, 1
        %s219 = sand.u32 %s31, 1
        %s220 = scalar_lea.sflag [#allocation3], %s219
        %s221 = sand.u32 %s31, 1
        %s222 = smul.addr %s221, 32
        %s223 = scalar_lea.vmem [#allocation2], %s222
        // Predicated region
        $region37: #{tpu_custom_call.1} parent=35 // pred_check
          %p224 = pneg %p44
        $region38: #{tpu_custom_call.1} parent=35 // pred_check_branch
          %226 = sbr.rel (%p224) target = $region40
        $region39: #{tpu_custom_call.1} parent=35 // pred_region
          %228 = dma.done %s220, 512
        $region40: #{tpu_custom_call.1} parent=35 // pred_fallthru
          _
        // Predicated region
        $region41: #{tpu_custom_call.1} parent=35 // pred_check
          %p229 = pneg %p65
        $region42: #{tpu_custom_call.1} parent=35 // pred_check_branch
          %231 = sbr.rel (%p229) target = $region44
        $region43: #{tpu_custom_call.1} parent=35 // pred_region
          %233 = dma.done [#allocation6], 65536
        $region44: #{tpu_custom_call.1} parent=35 // pred_fallthru
          _
        // Predicated region
        $region45: #{tpu_custom_call.1} parent=35 // pred_check
          %p234 = pneg %p86
        $region46: #{tpu_custom_call.1} parent=35 // pred_check_branch
          %236 = sbr.rel (%p234) target = $region48
        $region47: #{tpu_custom_call.1} parent=35 // pred_region
          %238 = dma.done [#allocation6], 16384
        $region48: #{tpu_custom_call.1} parent=35 // pred_fallthru
          _
        // Predicated region
        $region49: #{tpu_custom_call.1} parent=35 // pred_check
          %p239 = pneg %p107
        $region50: #{tpu_custom_call.1} parent=35 // pred_check_branch
          %241 = sbr.rel (%p239) target = $region52
        $region51: #{tpu_custom_call.1} parent=35 // pred_region
          %243 = dma.done [#allocation9], 64
        $region52: #{tpu_custom_call.1} parent=35 // pred_fallthru
          _
        %s244 = sand.u32 %s31, 1
        %s245 = scalar_lea.sflag [#allocation3], %s244
        %s246 = sand.u32 %s31, 1
        %s247 = smul.addr %s246, 32
        %s248 = scalar_lea.vmem [#allocation2], %s247
        %p249 = pneg %p44
        %p250 = pneg %p41
        %p251 = pneg %p65
        %p252 = pneg %p62
        %p253 = pneg %p86
        %p254 = pneg %p83
        %p255 = pneg %p107
        %p256 = pneg %p104
        %p257 = pneg %p133
        %p258 = pneg %p130
        %s259 = sand.u32 %s120, 1
        %s260 = scalar_lea.sflag [#allocation4], %s259
        %s261 = sand.u32 %s120, 1
        %s262 = smul.addr %s261, 32
        %s263 = scalar_lea.vmem [#allocation10], %s262
        %v265 = vld [vmem:[%s223] sm:$0xff]
        %v266 = vld [vmem:[%s223 + $0x8] sm:$0xff]
        %v267 = vld [vmem:[%s223 + $0x10] sm:$0xff]
        %v268 = vld [vmem:[%s223 + $0x18] sm:$0xff]
        %v269 = vld [vmem:[#allocation5] sm:$0xff]
        %v270 = vld [vmem:[#allocation5 + $0x8] sm:$0xff]
        %v271 = vld [vmem:[#allocation5 + $0x10] sm:$0xff]
        %v272 = vld [vmem:[#allocation5 + $0x18] sm:$0xff]
        %v273 = vld [vmem:[#allocation5 + $0x20] sm:$0xff]
        %v274 = vld [vmem:[#allocation5 + $0x28] sm:$0xff]
        %v275 = vld [vmem:[#allocation5 + $0x30] sm:$0xff]
        %v276 = vld [vmem:[#allocation5 + $0x38] sm:$0xff]
        %v277 = vld [vmem:[#allocation5 + $0x40] sm:$0xff]
        %v278 = vld [vmem:[#allocation5 + $0x48] sm:$0xff]
        %v279 = vld [vmem:[#allocation5 + $0x50] sm:$0xff]
        %v280 = vld [vmem:[#allocation5 + $0x58] sm:$0xff]
        %v281 = vld [vmem:[#allocation5 + $0x60] sm:$0xff]
        %v282 = vld [vmem:[#allocation5 + $0x68] sm:$0xff]
        %v283 = vld [vmem:[#allocation5 + $0x70] sm:$0xff]
        %v284 = vld [vmem:[#allocation5 + $0x78] sm:$0xff]
        %v285 = vld [vmem:[#allocation5 + $0x80] sm:$0xff]
        %v286 = vld [vmem:[#allocation5 + $0x88] sm:$0xff]
        %v287 = vld [vmem:[#allocation5 + $0x90] sm:$0xff]
        %v288 = vld [vmem:[#allocation5 + $0x98] sm:$0xff]
        %v289 = vld [vmem:[#allocation5 + $0xa0] sm:$0xff]
        %v290 = vld [vmem:[#allocation5 + $0xa8] sm:$0xff]
        %v291 = vld [vmem:[#allocation5 + $0xb0] sm:$0xff]
        %v292 = vld [vmem:[#allocation5 + $0xb8] sm:$0xff]
        %v293 = vld [vmem:[#allocation5 + $0xc0] sm:$0xff]
        %v294 = vld [vmem:[#allocation5 + $0xc8] sm:$0xff]
        %v295 = vld [vmem:[#allocation5 + $0xd0] sm:$0xff]
        %v296 = vld [vmem:[#allocation5 + $0xd8] sm:$0xff]
        %v297 = vld [vmem:[#allocation5 + $0xe0] sm:$0xff]
        %v298 = vld [vmem:[#allocation5 + $0xe8] sm:$0xff]
        %v299 = vld [vmem:[#allocation5 + $0xf0] sm:$0xff]
        %v300 = vld [vmem:[#allocation5 + $0xf8] sm:$0xff]
        %v301 = vld [vmem:[#allocation5 + $0x100] sm:$0xff]
        %v302 = vld [vmem:[#allocation5 + $0x108] sm:$0xff]
        %v303 = vld [vmem:[#allocation5 + $0x110] sm:$0xff]
        %v304 = vld [vmem:[#allocation5 + $0x118] sm:$0xff]
        %v305 = vld [vmem:[#allocation5 + $0x120] sm:$0xff]
        %v306 = vld [vmem:[#allocation5 + $0x128] sm:$0xff]
        %v307 = vld [vmem:[#allocation5 + $0x130] sm:$0xff]
        %v308 = vld [vmem:[#allocation5 + $0x138] sm:$0xff]
        %v309 = vld [vmem:[#allocation5 + $0x140] sm:$0xff]
        %v310 = vld [vmem:[#allocation5 + $0x148] sm:$0xff]
        %v311 = vld [vmem:[#allocation5 + $0x150] sm:$0xff]
        %v312 = vld [vmem:[#allocation5 + $0x158] sm:$0xff]
        %v313 = vld [vmem:[#allocation5 + $0x160] sm:$0xff]
        %v314 = vld [vmem:[#allocation5 + $0x168] sm:$0xff]
        %v315 = vld [vmem:[#allocation5 + $0x170] sm:$0xff]
        %v316 = vld [vmem:[#allocation5 + $0x178] sm:$0xff]
        %v317 = vld [vmem:[#allocation5 + $0x180] sm:$0xff]
        %v318 = vld [vmem:[#allocation5 + $0x188] sm:$0xff]
        %v319 = vld [vmem:[#allocation5 + $0x190] sm:$0xff]
        %v320 = vld [vmem:[#allocation5 + $0x198] sm:$0xff]
        %v321 = vld [vmem:[#allocation5 + $0x1a0] sm:$0xff]
        %v322 = vld [vmem:[#allocation5 + $0x1a8] sm:$0xff]
        %v323 = vld [vmem:[#allocation5 + $0x1b0] sm:$0xff]
        %v324 = vld [vmem:[#allocation5 + $0x1b8] sm:$0xff]
        %v325 = vld [vmem:[#allocation5 + $0x1c0] sm:$0xff]
        %v326 = vld [vmem:[#allocation5 + $0x1c8] sm:$0xff]
        %v327 = vld [vmem:[#allocation5 + $0x1d0] sm:$0xff]
        %v328 = vld [vmem:[#allocation5 + $0x1d8] sm:$0xff]
        %v329 = vld [vmem:[#allocation5 + $0x1e0] sm:$0xff]
        %v330 = vld [vmem:[#allocation5 + $0x1e8] sm:$0xff]
        %v331 = vld [vmem:[#allocation5 + $0x1f0] sm:$0xff]
        %v332 = vld [vmem:[#allocation5 + $0x1f8] sm:$0xff]
        %v333 = vld [vmem:[#allocation5 + $0x200] sm:$0xff]
        %v334 = vld [vmem:[#allocation5 + $0x208] sm:$0xff]
        %v335 = vld [vmem:[#allocation5 + $0x210] sm:$0xff]
        %v336 = vld [vmem:[#allocation5 + $0x218] sm:$0xff]
        %v337 = vld [vmem:[#allocation5 + $0x220] sm:$0xff]
        %v338 = vld [vmem:[#allocation5 + $0x228] sm:$0xff]
        %v339 = vld [vmem:[#allocation5 + $0x230] sm:$0xff]
        %v340 = vld [vmem:[#allocation5 + $0x238] sm:$0xff]
        %v341 = vld [vmem:[#allocation5 + $0x240] sm:$0xff]
        %v342 = vld [vmem:[#allocation5 + $0x248] sm:$0xff]
        %v343 = vld [vmem:[#allocation5 + $0x250] sm:$0xff]
        %v344 = vld [vmem:[#allocation5 + $0x258] sm:$0xff]
        %v345 = vld [vmem:[#allocation5 + $0x260] sm:$0xff]
        %v346 = vld [vmem:[#allocation5 + $0x268] sm:$0xff]
        %v347 = vld [vmem:[#allocation5 + $0x270] sm:$0xff]
        %v348 = vld [vmem:[#allocation5 + $0x278] sm:$0xff]
        %v349 = vld [vmem:[#allocation5 + $0x280] sm:$0xff]
        %v350 = vld [vmem:[#allocation5 + $0x288] sm:$0xff]
        %v351 = vld [vmem:[#allocation5 + $0x290] sm:$0xff]
        %v352 = vld [vmem:[#allocation5 + $0x298] sm:$0xff]
        %v353 = vld [vmem:[#allocation5 + $0x2a0] sm:$0xff]
        %v354 = vld [vmem:[#allocation5 + $0x2a8] sm:$0xff]
        %v355 = vld [vmem:[#allocation5 + $0x2b0] sm:$0xff]
        %v356 = vld [vmem:[#allocation5 + $0x2b8] sm:$0xff]
        %v357 = vld [vmem:[#allocation5 + $0x2c0] sm:$0xff]
        %v358 = vld [vmem:[#allocation5 + $0x2c8] sm:$0xff]
        %v359 = vld [vmem:[#allocation5 + $0x2d0] sm:$0xff]
        %v360 = vld [vmem:[#allocation5 + $0x2d8] sm:$0xff]
        %v361 = vld [vmem:[#allocation5 + $0x2e0] sm:$0xff]
        %v362 = vld [vmem:[#allocation5 + $0x2e8] sm:$0xff]
        %v363 = vld [vmem:[#allocation5 + $0x2f0] sm:$0xff]
        %v364 = vld [vmem:[#allocation5 + $0x2f8] sm:$0xff]
        %v365 = vld [vmem:[#allocation5 + $0x300] sm:$0xff]
        %v366 = vld [vmem:[#allocation5 + $0x308] sm:$0xff]
        %v367 = vld [vmem:[#allocation5 + $0x310] sm:$0xff]
        %v368 = vld [vmem:[#allocation5 + $0x318] sm:$0xff]
        %v369 = vld [vmem:[#allocation5 + $0x320] sm:$0xff]
        %v370 = vld [vmem:[#allocation5 + $0x328] sm:$0xff]
        %v371 = vld [vmem:[#allocation5 + $0x330] sm:$0xff]
        %v372 = vld [vmem:[#allocation5 + $0x338] sm:$0xff]
        %v373 = vld [vmem:[#allocation5 + $0x340] sm:$0xff]
        %v374 = vld [vmem:[#allocation5 + $0x348] sm:$0xff]
        %v375 = vld [vmem:[#allocation5 + $0x350] sm:$0xff]
        %v376 = vld [vmem:[#allocation5 + $0x358] sm:$0xff]
        %v377 = vld [vmem:[#allocation5 + $0x360] sm:$0xff]
        %v378 = vld [vmem:[#allocation5 + $0x368] sm:$0xff]
        %v379 = vld [vmem:[#allocation5 + $0x370] sm:$0xff]
        %v380 = vld [vmem:[#allocation5 + $0x378] sm:$0xff]
        %v381 = vld [vmem:[#allocation5 + $0x380] sm:$0xff]
        %v382 = vld [vmem:[#allocation5 + $0x388] sm:$0xff]
        %v383 = vld [vmem:[#allocation5 + $0x390] sm:$0xff]
        %v384 = vld [vmem:[#allocation5 + $0x398] sm:$0xff]
        %v385 = vld [vmem:[#allocation5 + $0x3a0] sm:$0xff]
        %v386 = vld [vmem:[#allocation5 + $0x3a8] sm:$0xff]
        %v387 = vld [vmem:[#allocation5 + $0x3b0] sm:$0xff]
        %v388 = vld [vmem:[#allocation5 + $0x3b8] sm:$0xff]
        %v389 = vld [vmem:[#allocation5 + $0x3c0] sm:$0xff]
        %v390 = vld [vmem:[#allocation5 + $0x3c8] sm:$0xff]
        %v391 = vld [vmem:[#allocation5 + $0x3d0] sm:$0xff]
        %v392 = vld [vmem:[#allocation5 + $0x3d8] sm:$0xff]
        %v393 = vld [vmem:[#allocation5 + $0x3e0] sm:$0xff]
        %v394 = vld [vmem:[#allocation5 + $0x3e8] sm:$0xff]
        %v395 = vld [vmem:[#allocation5 + $0x3f0] sm:$0xff]
        %v396 = vld [vmem:[#allocation5 + $0x3f8] sm:$0xff]
        %v397 = vld [vmem:[#allocation5 + $0x400] sm:$0xff]
        %v398 = vld [vmem:[#allocation5 + $0x408] sm:$0xff]
        %v399 = vld [vmem:[#allocation5 + $0x410] sm:$0xff]
        %v400 = vld [vmem:[#allocation5 + $0x418] sm:$0xff]
        %v401 = vld [vmem:[#allocation5 + $0x420] sm:$0xff]
        %v402 = vld [vmem:[#allocation5 + $0x428] sm:$0xff]
        %v403 = vld [vmem:[#allocation5 + $0x430] sm:$0xff]
        %v404 = vld [vmem:[#allocation5 + $0x438] sm:$0xff]
        %v405 = vld [vmem:[#allocation5 + $0x440] sm:$0xff]
        %v406 = vld [vmem:[#allocation5 + $0x448] sm:$0xff]
        %v407 = vld [vmem:[#allocation5 + $0x450] sm:$0xff]
        %v408 = vld [vmem:[#allocation5 + $0x458] sm:$0xff]
        %v409 = vld [vmem:[#allocation5 + $0x460] sm:$0xff]
        %v410 = vld [vmem:[#allocation5 + $0x468] sm:$0xff]
        %v411 = vld [vmem:[#allocation5 + $0x470] sm:$0xff]
        %v412 = vld [vmem:[#allocation5 + $0x478] sm:$0xff]
        %v413 = vld [vmem:[#allocation5 + $0x480] sm:$0xff]
        %v414 = vld [vmem:[#allocation5 + $0x488] sm:$0xff]
        %v415 = vld [vmem:[#allocation5 + $0x490] sm:$0xff]
        %v416 = vld [vmem:[#allocation5 + $0x498] sm:$0xff]
        %v417 = vld [vmem:[#allocation5 + $0x4a0] sm:$0xff]
        %v418 = vld [vmem:[#allocation5 + $0x4a8] sm:$0xff]
        %v419 = vld [vmem:[#allocation5 + $0x4b0] sm:$0xff]
        %v420 = vld [vmem:[#allocation5 + $0x4b8] sm:$0xff]
        %v421 = vld [vmem:[#allocation5 + $0x4c0] sm:$0xff]
        %v422 = vld [vmem:[#allocation5 + $0x4c8] sm:$0xff]
        %v423 = vld [vmem:[#allocation5 + $0x4d0] sm:$0xff]
        %v424 = vld [vmem:[#allocation5 + $0x4d8] sm:$0xff]
        %v425 = vld [vmem:[#allocation5 + $0x4e0] sm:$0xff]
        %v426 = vld [vmem:[#allocation5 + $0x4e8] sm:$0xff]
        %v427 = vld [vmem:[#allocation5 + $0x4f0] sm:$0xff]
        %v428 = vld [vmem:[#allocation5 + $0x4f8] sm:$0xff]
        %v429 = vld [vmem:[#allocation5 + $0x500] sm:$0xff]
        %v430 = vld [vmem:[#allocation5 + $0x508] sm:$0xff]
        %v431 = vld [vmem:[#allocation5 + $0x510] sm:$0xff]
        %v432 = vld [vmem:[#allocation5 + $0x518] sm:$0xff]
        %v433 = vld [vmem:[#allocation5 + $0x520] sm:$0xff]
        %v434 = vld [vmem:[#allocation5 + $0x528] sm:$0xff]
        %v435 = vld [vmem:[#allocation5 + $0x530] sm:$0xff]
        %v436 = vld [vmem:[#allocation5 + $0x538] sm:$0xff]
        %v437 = vld [vmem:[#allocation5 + $0x540] sm:$0xff]
        %v438 = vld [vmem:[#allocation5 + $0x548] sm:$0xff]
        %v439 = vld [vmem:[#allocation5 + $0x550] sm:$0xff]
        %v440 = vld [vmem:[#allocation5 + $0x558] sm:$0xff]
        %v441 = vld [vmem:[#allocation5 + $0x560] sm:$0xff]
        %v442 = vld [vmem:[#allocation5 + $0x568] sm:$0xff]
        %v443 = vld [vmem:[#allocation5 + $0x570] sm:$0xff]
        %v444 = vld [vmem:[#allocation5 + $0x578] sm:$0xff]
        %v445 = vld [vmem:[#allocation5 + $0x580] sm:$0xff]
        %v446 = vld [vmem:[#allocation5 + $0x588] sm:$0xff]
        %v447 = vld [vmem:[#allocation5 + $0x590] sm:$0xff]
        %v448 = vld [vmem:[#allocation5 + $0x598] sm:$0xff]
        %v449 = vld [vmem:[#allocation5 + $0x5a0] sm:$0xff]
        %v450 = vld [vmem:[#allocation5 + $0x5a8] sm:$0xff]
        %v451 = vld [vmem:[#allocation5 + $0x5b0] sm:$0xff]
        %v452 = vld [vmem:[#allocation5 + $0x5b8] sm:$0xff]
        %v453 = vld [vmem:[#allocation5 + $0x5c0] sm:$0xff]
        %v454 = vld [vmem:[#allocation5 + $0x5c8] sm:$0xff]
        %v455 = vld [vmem:[#allocation5 + $0x5d0] sm:$0xff]
        %v456 = vld [vmem:[#allocation5 + $0x5d8] sm:$0xff]
        %v457 = vld [vmem:[#allocation5 + $0x5e0] sm:$0xff]
        %v458 = vld [vmem:[#allocation5 + $0x5e8] sm:$0xff]
        %v459 = vld [vmem:[#allocation5 + $0x5f0] sm:$0xff]
        %v460 = vld [vmem:[#allocation5 + $0x5f8] sm:$0xff]
        %v461 = vld [vmem:[#allocation5 + $0x600] sm:$0xff]
        %v462 = vld [vmem:[#allocation5 + $0x608] sm:$0xff]
        %v463 = vld [vmem:[#allocation5 + $0x610] sm:$0xff]
        %v464 = vld [vmem:[#allocation5 + $0x618] sm:$0xff]
        %v465 = vld [vmem:[#allocation5 + $0x620] sm:$0xff]
        %v466 = vld [vmem:[#allocation5 + $0x628] sm:$0xff]
        %v467 = vld [vmem:[#allocation5 + $0x630] sm:$0xff]
        %v468 = vld [vmem:[#allocation5 + $0x638] sm:$0xff]
        %v469 = vld [vmem:[#allocation5 + $0x640] sm:$0xff]
        %v470 = vld [vmem:[#allocation5 + $0x648] sm:$0xff]
        %v471 = vld [vmem:[#allocation5 + $0x650] sm:$0xff]
        %v472 = vld [vmem:[#allocation5 + $0x658] sm:$0xff]
        %v473 = vld [vmem:[#allocation5 + $0x660] sm:$0xff]
        %v474 = vld [vmem:[#allocation5 + $0x668] sm:$0xff]
        %v475 = vld [vmem:[#allocation5 + $0x670] sm:$0xff]
        %v476 = vld [vmem:[#allocation5 + $0x678] sm:$0xff]
        %v477 = vld [vmem:[#allocation5 + $0x680] sm:$0xff]
        %v478 = vld [vmem:[#allocation5 + $0x688] sm:$0xff]
        %v479 = vld [vmem:[#allocation5 + $0x690] sm:$0xff]
        %v480 = vld [vmem:[#allocation5 + $0x698] sm:$0xff]
        %v481 = vld [vmem:[#allocation5 + $0x6a0] sm:$0xff]
        %v482 = vld [vmem:[#allocation5 + $0x6a8] sm:$0xff]
        %v483 = vld [vmem:[#allocation5 + $0x6b0] sm:$0xff]
        %v484 = vld [vmem:[#allocation5 + $0x6b8] sm:$0xff]
        %v485 = vld [vmem:[#allocation5 + $0x6c0] sm:$0xff]
        %v486 = vld [vmem:[#allocation5 + $0x6c8] sm:$0xff]
        %v487 = vld [vmem:[#allocation5 + $0x6d0] sm:$0xff]
        %v488 = vld [vmem:[#allocation5 + $0x6d8] sm:$0xff]
        %v489 = vld [vmem:[#allocation5 + $0x6e0] sm:$0xff]
        %v490 = vld [vmem:[#allocation5 + $0x6e8] sm:$0xff]
        %v491 = vld [vmem:[#allocation5 + $0x6f0] sm:$0xff]
        %v492 = vld [vmem:[#allocation5 + $0x6f8] sm:$0xff]
        %v493 = vld [vmem:[#allocation5 + $0x700] sm:$0xff]
        %v494 = vld [vmem:[#allocation5 + $0x708] sm:$0xff]
        %v495 = vld [vmem:[#allocation5 + $0x710] sm:$0xff]
        %v496 = vld [vmem:[#allocation5 + $0x718] sm:$0xff]
        %v497 = vld [vmem:[#allocation5 + $0x720] sm:$0xff]
        %v498 = vld [vmem:[#allocation5 + $0x728] sm:$0xff]
        %v499 = vld [vmem:[#allocation5 + $0x730] sm:$0xff]
        %v500 = vld [vmem:[#allocation5 + $0x738] sm:$0xff]
        %v501 = vld [vmem:[#allocation5 + $0x740] sm:$0xff]
        %v502 = vld [vmem:[#allocation5 + $0x748] sm:$0xff]
        %v503 = vld [vmem:[#allocation5 + $0x750] sm:$0xff]
        %v504 = vld [vmem:[#allocation5 + $0x758] sm:$0xff]
        %v505 = vld [vmem:[#allocation5 + $0x760] sm:$0xff]
        %v506 = vld [vmem:[#allocation5 + $0x768] sm:$0xff]
        %v507 = vld [vmem:[#allocation5 + $0x770] sm:$0xff]
        %v508 = vld [vmem:[#allocation5 + $0x778] sm:$0xff]
        %v509 = vld [vmem:[#allocation5 + $0x780] sm:$0xff]
        %v510 = vld [vmem:[#allocation5 + $0x788] sm:$0xff]
        %v511 = vld [vmem:[#allocation5 + $0x790] sm:$0xff]
        %v512 = vld [vmem:[#allocation5 + $0x798] sm:$0xff]
        %v513 = vld [vmem:[#allocation5 + $0x7a0] sm:$0xff]
        %v514 = vld [vmem:[#allocation5 + $0x7a8] sm:$0xff]
        %v515 = vld [vmem:[#allocation5 + $0x7b0] sm:$0xff]
        %v516 = vld [vmem:[#allocation5 + $0x7b8] sm:$0xff]
        %v517 = vld [vmem:[#allocation5 + $0x7c0] sm:$0xff]
        %v518 = vld [vmem:[#allocation5 + $0x7c8] sm:$0xff]
        %v519 = vld [vmem:[#allocation5 + $0x7d0] sm:$0xff]
        %v520 = vld [vmem:[#allocation5 + $0x7d8] sm:$0xff]
        %v521 = vld [vmem:[#allocation5 + $0x7e0] sm:$0xff]
        %v522 = vld [vmem:[#allocation5 + $0x7e8] sm:$0xff]
        %v523 = vld [vmem:[#allocation5 + $0x7f0] sm:$0xff]
        %v524 = vld [vmem:[#allocation5 + $0x7f8] sm:$0xff]
        %v525 = vld [vmem:[#allocation5 + $0x800] sm:$0xff]
        %v526 = vld [vmem:[#allocation5 + $0x808] sm:$0xff]
        %v527 = vld [vmem:[#allocation5 + $0x810] sm:$0xff]
        %v528 = vld [vmem:[#allocation5 + $0x818] sm:$0xff]
        %v529 = vld [vmem:[#allocation5 + $0x820] sm:$0xff]
        %v530 = vld [vmem:[#allocation5 + $0x828] sm:$0xff]
        %v531 = vld [vmem:[#allocation5 + $0x830] sm:$0xff]
        %v532 = vld [vmem:[#allocation5 + $0x838] sm:$0xff]
        %v533 = vld [vmem:[#allocation5 + $0x840] sm:$0xff]
        %v534 = vld [vmem:[#allocation5 + $0x848] sm:$0xff]
        %v535 = vld [vmem:[#allocation5 + $0x850] sm:$0xff]
        %v536 = vld [vmem:[#allocation5 + $0x858] sm:$0xff]
        %v537 = vld [vmem:[#allocation5 + $0x860] sm:$0xff]
        %v538 = vld [vmem:[#allocation5 + $0x868] sm:$0xff]
        %v539 = vld [vmem:[#allocation5 + $0x870] sm:$0xff]
        %v540 = vld [vmem:[#allocation5 + $0x878] sm:$0xff]
        %v541 = vld [vmem:[#allocation5 + $0x880] sm:$0xff]
        %v542 = vld [vmem:[#allocation5 + $0x888] sm:$0xff]
        %v543 = vld [vmem:[#allocation5 + $0x890] sm:$0xff]
        %v544 = vld [vmem:[#allocation5 + $0x898] sm:$0xff]
        %v545 = vld [vmem:[#allocation5 + $0x8a0] sm:$0xff]
        %v546 = vld [vmem:[#allocation5 + $0x8a8] sm:$0xff]
        %v547 = vld [vmem:[#allocation5 + $0x8b0] sm:$0xff]
        %v548 = vld [vmem:[#allocation5 + $0x8b8] sm:$0xff]
        %v549 = vld [vmem:[#allocation5 + $0x8c0] sm:$0xff]
        %v550 = vld [vmem:[#allocation5 + $0x8c8] sm:$0xff]
        %v551 = vld [vmem:[#allocation5 + $0x8d0] sm:$0xff]
        %v552 = vld [vmem:[#allocation5 + $0x8d8] sm:$0xff]
        %v553 = vld [vmem:[#allocation5 + $0x8e0] sm:$0xff]
        %v554 = vld [vmem:[#allocation5 + $0x8e8] sm:$0xff]
        %v555 = vld [vmem:[#allocation5 + $0x8f0] sm:$0xff]
        %v556 = vld [vmem:[#allocation5 + $0x8f8] sm:$0xff]
        %v557 = vld [vmem:[#allocation5 + $0x900] sm:$0xff]
        %v558 = vld [vmem:[#allocation5 + $0x908] sm:$0xff]
        %v559 = vld [vmem:[#allocation5 + $0x910] sm:$0xff]
        %v560 = vld [vmem:[#allocation5 + $0x918] sm:$0xff]
        %v561 = vld [vmem:[#allocation5 + $0x920] sm:$0xff]
        %v562 = vld [vmem:[#allocation5 + $0x928] sm:$0xff]
        %v563 = vld [vmem:[#allocation5 + $0x930] sm:$0xff]
        %v564 = vld [vmem:[#allocation5 + $0x938] sm:$0xff]
        %v565 = vld [vmem:[#allocation5 + $0x940] sm:$0xff]
        %v566 = vld [vmem:[#allocation5 + $0x948] sm:$0xff]
        %v567 = vld [vmem:[#allocation5 + $0x950] sm:$0xff]
        %v568 = vld [vmem:[#allocation5 + $0x958] sm:$0xff]
        %v569 = vld [vmem:[#allocation5 + $0x960] sm:$0xff]
        %v570 = vld [vmem:[#allocation5 + $0x968] sm:$0xff]
        %v571 = vld [vmem:[#allocation5 + $0x970] sm:$0xff]
        %v572 = vld [vmem:[#allocation5 + $0x978] sm:$0xff]
        %v573 = vld [vmem:[#allocation5 + $0x980] sm:$0xff]
        %v574 = vld [vmem:[#allocation5 + $0x988] sm:$0xff]
        %v575 = vld [vmem:[#allocation5 + $0x990] sm:$0xff]
        %v576 = vld [vmem:[#allocation5 + $0x998] sm:$0xff]
        %v577 = vld [vmem:[#allocation5 + $0x9a0] sm:$0xff]
        %v578 = vld [vmem:[#allocation5 + $0x9a8] sm:$0xff]
        %v579 = vld [vmem:[#allocation5 + $0x9b0] sm:$0xff]
        %v580 = vld [vmem:[#allocation5 + $0x9b8] sm:$0xff]
        %v581 = vld [vmem:[#allocation5 + $0x9c0] sm:$0xff]
        %v582 = vld [vmem:[#allocation5 + $0x9c8] sm:$0xff]
        %v583 = vld [vmem:[#allocation5 + $0x9d0] sm:$0xff]
        %v584 = vld [vmem:[#allocation5 + $0x9d8] sm:$0xff]
        %v585 = vld [vmem:[#allocation5 + $0x9e0] sm:$0xff]
        %v586 = vld [vmem:[#allocation5 + $0x9e8] sm:$0xff]
        %v587 = vld [vmem:[#allocation5 + $0x9f0] sm:$0xff]
        %v588 = vld [vmem:[#allocation5 + $0x9f8] sm:$0xff]
        %v589 = vld [vmem:[#allocation5 + $0xa00] sm:$0xff]
        %v590 = vld [vmem:[#allocation5 + $0xa08] sm:$0xff]
        %v591 = vld [vmem:[#allocation5 + $0xa10] sm:$0xff]
        %v592 = vld [vmem:[#allocation5 + $0xa18] sm:$0xff]
        %v593 = vld [vmem:[#allocation5 + $0xa20] sm:$0xff]
        %v594 = vld [vmem:[#allocation5 + $0xa28] sm:$0xff]
        %v595 = vld [vmem:[#allocation5 + $0xa30] sm:$0xff]
        %v596 = vld [vmem:[#allocation5 + $0xa38] sm:$0xff]
        %v597 = vld [vmem:[#allocation5 + $0xa40] sm:$0xff]
        %v598 = vld [vmem:[#allocation5 + $0xa48] sm:$0xff]
        %v599 = vld [vmem:[#allocation5 + $0xa50] sm:$0xff]
        %v600 = vld [vmem:[#allocation5 + $0xa58] sm:$0xff]
        %v601 = vld [vmem:[#allocation5 + $0xa60] sm:$0xff]
        %v602 = vld [vmem:[#allocation5 + $0xa68] sm:$0xff]
        %v603 = vld [vmem:[#allocation5 + $0xa70] sm:$0xff]
        %v604 = vld [vmem:[#allocation5 + $0xa78] sm:$0xff]
        %v605 = vld [vmem:[#allocation5 + $0xa80] sm:$0xff]
        %v606 = vld [vmem:[#allocation5 + $0xa88] sm:$0xff]
        %v607 = vld [vmem:[#allocation5 + $0xa90] sm:$0xff]
        %v608 = vld [vmem:[#allocation5 + $0xa98] sm:$0xff]
        %v609 = vld [vmem:[#allocation5 + $0xaa0] sm:$0xff]
        %v610 = vld [vmem:[#allocation5 + $0xaa8] sm:$0xff]
        %v611 = vld [vmem:[#allocation5 + $0xab0] sm:$0xff]
        %v612 = vld [vmem:[#allocation5 + $0xab8] sm:$0xff]
        %v613 = vld [vmem:[#allocation5 + $0xac0] sm:$0xff]
        %v614 = vld [vmem:[#allocation5 + $0xac8] sm:$0xff]
        %v615 = vld [vmem:[#allocation5 + $0xad0] sm:$0xff]
        %v616 = vld [vmem:[#allocation5 + $0xad8] sm:$0xff]
        %v617 = vld [vmem:[#allocation5 + $0xae0] sm:$0xff]
        %v618 = vld [vmem:[#allocation5 + $0xae8] sm:$0xff]
        %v619 = vld [vmem:[#allocation5 + $0xaf0] sm:$0xff]
        %v620 = vld [vmem:[#allocation5 + $0xaf8] sm:$0xff]
        %v621 = vld [vmem:[#allocation5 + $0xb00] sm:$0xff]
        %v622 = vld [vmem:[#allocation5 + $0xb08] sm:$0xff]
        %v623 = vld [vmem:[#allocation5 + $0xb10] sm:$0xff]
        %v624 = vld [vmem:[#allocation5 + $0xb18] sm:$0xff]
        %v625 = vld [vmem:[#allocation5 + $0xb20] sm:$0xff]
        %v626 = vld [vmem:[#allocation5 + $0xb28] sm:$0xff]
        %v627 = vld [vmem:[#allocation5 + $0xb30] sm:$0xff]
        %v628 = vld [vmem:[#allocation5 + $0xb38] sm:$0xff]
        %v629 = vld [vmem:[#allocation5 + $0xb40] sm:$0xff]
        %v630 = vld [vmem:[#allocation5 + $0xb48] sm:$0xff]
        %v631 = vld [vmem:[#allocation5 + $0xb50] sm:$0xff]
        %v632 = vld [vmem:[#allocation5 + $0xb58] sm:$0xff]
        %v633 = vld [vmem:[#allocation5 + $0xb60] sm:$0xff]
        %v634 = vld [vmem:[#allocation5 + $0xb68] sm:$0xff]
        %v635 = vld [vmem:[#allocation5 + $0xb70] sm:$0xff]
        %v636 = vld [vmem:[#allocation5 + $0xb78] sm:$0xff]
        %v637 = vld [vmem:[#allocation5 + $0xb80] sm:$0xff]
        %v638 = vld [vmem:[#allocation5 + $0xb88] sm:$0xff]
        %v639 = vld [vmem:[#allocation5 + $0xb90] sm:$0xff]
        %v640 = vld [vmem:[#allocation5 + $0xb98] sm:$0xff]
        %v641 = vld [vmem:[#allocation5 + $0xba0] sm:$0xff]
        %v642 = vld [vmem:[#allocation5 + $0xba8] sm:$0xff]
        %v643 = vld [vmem:[#allocation5 + $0xbb0] sm:$0xff]
        %v644 = vld [vmem:[#allocation5 + $0xbb8] sm:$0xff]
        %v645 = vld [vmem:[#allocation5 + $0xbc0] sm:$0xff]
        %v646 = vld [vmem:[#allocation5 + $0xbc8] sm:$0xff]
        %v647 = vld [vmem:[#allocation5 + $0xbd0] sm:$0xff]
        %v648 = vld [vmem:[#allocation5 + $0xbd8] sm:$0xff]
        %v649 = vld [vmem:[#allocation5 + $0xbe0] sm:$0xff]
        %v650 = vld [vmem:[#allocation5 + $0xbe8] sm:$0xff]
        %v651 = vld [vmem:[#allocation5 + $0xbf0] sm:$0xff]
        %v652 = vld [vmem:[#allocation5 + $0xbf8] sm:$0xff]
        %v653 = vld [vmem:[#allocation5 + $0xc00] sm:$0xff]
        %v654 = vld [vmem:[#allocation5 + $0xc08] sm:$0xff]
        %v655 = vld [vmem:[#allocation5 + $0xc10] sm:$0xff]
        %v656 = vld [vmem:[#allocation5 + $0xc18] sm:$0xff]
        %v657 = vld [vmem:[#allocation5 + $0xc20] sm:$0xff]
        %v658 = vld [vmem:[#allocation5 + $0xc28] sm:$0xff]
        %v659 = vld [vmem:[#allocation5 + $0xc30] sm:$0xff]
        %v660 = vld [vmem:[#allocation5 + $0xc38] sm:$0xff]
        %v661 = vld [vmem:[#allocation5 + $0xc40] sm:$0xff]
        %v662 = vld [vmem:[#allocation5 + $0xc48] sm:$0xff]
        %v663 = vld [vmem:[#allocation5 + $0xc50] sm:$0xff]
        %v664 = vld [vmem:[#allocation5 + $0xc58] sm:$0xff]
        %v665 = vld [vmem:[#allocation5 + $0xc60] sm:$0xff]
        %v666 = vld [vmem:[#allocation5 + $0xc68] sm:$0xff]
        %v667 = vld [vmem:[#allocation5 + $0xc70] sm:$0xff]
        %v668 = vld [vmem:[#allocation5 + $0xc78] sm:$0xff]
        %v669 = vld [vmem:[#allocation5 + $0xc80] sm:$0xff]
        %v670 = vld [vmem:[#allocation5 + $0xc88] sm:$0xff]
        %v671 = vld [vmem:[#allocation5 + $0xc90] sm:$0xff]
        %v672 = vld [vmem:[#allocation5 + $0xc98] sm:$0xff]
        %v673 = vld [vmem:[#allocation5 + $0xca0] sm:$0xff]
        %v674 = vld [vmem:[#allocation5 + $0xca8] sm:$0xff]
        %v675 = vld [vmem:[#allocation5 + $0xcb0] sm:$0xff]
        %v676 = vld [vmem:[#allocation5 + $0xcb8] sm:$0xff]
        %v677 = vld [vmem:[#allocation5 + $0xcc0] sm:$0xff]
        %v678 = vld [vmem:[#allocation5 + $0xcc8] sm:$0xff]
        %v679 = vld [vmem:[#allocation5 + $0xcd0] sm:$0xff]
        %v680 = vld [vmem:[#allocation5 + $0xcd8] sm:$0xff]
        %v681 = vld [vmem:[#allocation5 + $0xce0] sm:$0xff]
        %v682 = vld [vmem:[#allocation5 + $0xce8] sm:$0xff]
        %v683 = vld [vmem:[#allocation5 + $0xcf0] sm:$0xff]
        %v684 = vld [vmem:[#allocation5 + $0xcf8] sm:$0xff]
        %v685 = vld [vmem:[#allocation5 + $0xd00] sm:$0xff]
        %v686 = vld [vmem:[#allocation5 + $0xd08] sm:$0xff]
        %v687 = vld [vmem:[#allocation5 + $0xd10] sm:$0xff]
        %v688 = vld [vmem:[#allocation5 + $0xd18] sm:$0xff]
        %v689 = vld [vmem:[#allocation5 + $0xd20] sm:$0xff]
        %v690 = vld [vmem:[#allocation5 + $0xd28] sm:$0xff]
        %v691 = vld [vmem:[#allocation5 + $0xd30] sm:$0xff]
        %v692 = vld [vmem:[#allocation5 + $0xd38] sm:$0xff]
        %v693 = vld [vmem:[#allocation5 + $0xd40] sm:$0xff]
        %v694 = vld [vmem:[#allocation5 + $0xd48] sm:$0xff]
        %v695 = vld [vmem:[#allocation5 + $0xd50] sm:$0xff]
        %v696 = vld [vmem:[#allocation5 + $0xd58] sm:$0xff]
        %v697 = vld [vmem:[#allocation5 + $0xd60] sm:$0xff]
        %v698 = vld [vmem:[#allocation5 + $0xd68] sm:$0xff]
        %v699 = vld [vmem:[#allocation5 + $0xd70] sm:$0xff]
        %v700 = vld [vmem:[#allocation5 + $0xd78] sm:$0xff]
        %v701 = vld [vmem:[#allocation5 + $0xd80] sm:$0xff]
        %v702 = vld [vmem:[#allocation5 + $0xd88] sm:$0xff]
        %v703 = vld [vmem:[#allocation5 + $0xd90] sm:$0xff]
        %v704 = vld [vmem:[#allocation5 + $0xd98] sm:$0xff]
        %v705 = vld [vmem:[#allocation5 + $0xda0] sm:$0xff]
        %v706 = vld [vmem:[#allocation5 + $0xda8] sm:$0xff]
        %v707 = vld [vmem:[#allocation5 + $0xdb0] sm:$0xff]
        %v708 = vld [vmem:[#allocation5 + $0xdb8] sm:$0xff]
        %v709 = vld [vmem:[#allocation5 + $0xdc0] sm:$0xff]
        %v710 = vld [vmem:[#allocation5 + $0xdc8] sm:$0xff]
        %v711 = vld [vmem:[#allocation5 + $0xdd0] sm:$0xff]
        %v712 = vld [vmem:[#allocation5 + $0xdd8] sm:$0xff]
        %v713 = vld [vmem:[#allocation5 + $0xde0] sm:$0xff]
        %v714 = vld [vmem:[#allocation5 + $0xde8] sm:$0xff]
        %v715 = vld [vmem:[#allocation5 + $0xdf0] sm:$0xff]
        %v716 = vld [vmem:[#allocation5 + $0xdf8] sm:$0xff]
        %v717 = vld [vmem:[#allocation5 + $0xe00] sm:$0xff]
        %v718 = vld [vmem:[#allocation5 + $0xe08] sm:$0xff]
        %v719 = vld [vmem:[#allocation5 + $0xe10] sm:$0xff]
        %v720 = vld [vmem:[#allocation5 + $0xe18] sm:$0xff]
        %v721 = vld [vmem:[#allocation5 + $0xe20] sm:$0xff]
        %v722 = vld [vmem:[#allocation5 + $0xe28] sm:$0xff]
        %v723 = vld [vmem:[#allocation5 + $0xe30] sm:$0xff]
        %v724 = vld [vmem:[#allocation5 + $0xe38] sm:$0xff]
        %v725 = vld [vmem:[#allocation5 + $0xe40] sm:$0xff]
        %v726 = vld [vmem:[#allocation5 + $0xe48] sm:$0xff]
        %v727 = vld [vmem:[#allocation5 + $0xe50] sm:$0xff]
        %v728 = vld [vmem:[#allocation5 + $0xe58] sm:$0xff]
        %v729 = vld [vmem:[#allocation5 + $0xe60] sm:$0xff]
        %v730 = vld [vmem:[#allocation5 + $0xe68] sm:$0xff]
        %v731 = vld [vmem:[#allocation5 + $0xe70] sm:$0xff]
        %v732 = vld [vmem:[#allocation5 + $0xe78] sm:$0xff]
        %v733 = vld [vmem:[#allocation5 + $0xe80] sm:$0xff]
        %v734 = vld [vmem:[#allocation5 + $0xe88] sm:$0xff]
        %v735 = vld [vmem:[#allocation5 + $0xe90] sm:$0xff]
        %v736 = vld [vmem:[#allocation5 + $0xe98] sm:$0xff]
        %v737 = vld [vmem:[#allocation5 + $0xea0] sm:$0xff]
        %v738 = vld [vmem:[#allocation5 + $0xea8] sm:$0xff]
        %v739 = vld [vmem:[#allocation5 + $0xeb0] sm:$0xff]
        %v740 = vld [vmem:[#allocation5 + $0xeb8] sm:$0xff]
        %v741 = vld [vmem:[#allocation5 + $0xec0] sm:$0xff]
        %v742 = vld [vmem:[#allocation5 + $0xec8] sm:$0xff]
        %v743 = vld [vmem:[#allocation5 + $0xed0] sm:$0xff]
        %v744 = vld [vmem:[#allocation5 + $0xed8] sm:$0xff]
        %v745 = vld [vmem:[#allocation5 + $0xee0] sm:$0xff]
        %v746 = vld [vmem:[#allocation5 + $0xee8] sm:$0xff]
        %v747 = vld [vmem:[#allocation5 + $0xef0] sm:$0xff]
        %v748 = vld [vmem:[#allocation5 + $0xef8] sm:$0xff]
        %v749 = vld [vmem:[#allocation5 + $0xf00] sm:$0xff]
        %v750 = vld [vmem:[#allocation5 + $0xf08] sm:$0xff]
        %v751 = vld [vmem:[#allocation5 + $0xf10] sm:$0xff]
        %v752 = vld [vmem:[#allocation5 + $0xf18] sm:$0xff]
        %v753 = vld [vmem:[#allocation5 + $0xf20] sm:$0xff]
        %v754 = vld [vmem:[#allocation5 + $0xf28] sm:$0xff]
        %v755 = vld [vmem:[#allocation5 + $0xf30] sm:$0xff]
        %v756 = vld [vmem:[#allocation5 + $0xf38] sm:$0xff]
        %v757 = vld [vmem:[#allocation5 + $0xf40] sm:$0xff]
        %v758 = vld [vmem:[#allocation5 + $0xf48] sm:$0xff]
        %v759 = vld [vmem:[#allocation5 + $0xf50] sm:$0xff]
        %v760 = vld [vmem:[#allocation5 + $0xf58] sm:$0xff]
        %v761 = vld [vmem:[#allocation5 + $0xf60] sm:$0xff]
        %v762 = vld [vmem:[#allocation5 + $0xf68] sm:$0xff]
        %v763 = vld [vmem:[#allocation5 + $0xf70] sm:$0xff]
        %v764 = vld [vmem:[#allocation5 + $0xf78] sm:$0xff]
        %v765 = vld [vmem:[#allocation5 + $0xf80] sm:$0xff]
        %v766 = vld [vmem:[#allocation5 + $0xf88] sm:$0xff]
        %v767 = vld [vmem:[#allocation5 + $0xf90] sm:$0xff]
        %v768 = vld [vmem:[#allocation5 + $0xf98] sm:$0xff]
        %v769 = vld [vmem:[#allocation5 + $0xfa0] sm:$0xff]
        %v770 = vld [vmem:[#allocation5 + $0xfa8] sm:$0xff]
        %v771 = vld [vmem:[#allocation5 + $0xfb0] sm:$0xff]
        %v772 = vld [vmem:[#allocation5 + $0xfb8] sm:$0xff]
        %v773 = vld [vmem:[#allocation5 + $0xfc0] sm:$0xff]
        %v774 = vld [vmem:[#allocation5 + $0xfc8] sm:$0xff]
        %v775 = vld [vmem:[#allocation5 + $0xfd0] sm:$0xff]
        %v776 = vld [vmem:[#allocation5 + $0xfd8] sm:$0xff]
        %v777 = vld [vmem:[#allocation5 + $0xfe0] sm:$0xff]
        %v778 = vld [vmem:[#allocation5 + $0xfe8] sm:$0xff]
        %v779 = vld [vmem:[#allocation5 + $0xff0] sm:$0xff]
        %v780 = vld [vmem:[#allocation5 + $0xff8] sm:$0xff]
        %v781 = vpack.c.bf16 %v265, %v265
        %v782 = vpack.c.bf16 %v266, %v266
        %v783 = vpack.c.bf16 %v267, %v267
        %v784 = vpack.c.bf16 %v268, %v268
        %v1297 = vunpack.c.l.b16 %v269
        %v1298 = vunpack.c.h.b16 %v269
        %v1299 = vunpack.c.l.b16 %v270
        %v1300 = vunpack.c.h.b16 %v270
        %v1301 = vunpack.c.l.b16 %v271
        %v1302 = vunpack.c.h.b16 %v271
        %v1303 = vunpack.c.l.b16 %v272
        %v1304 = vunpack.c.h.b16 %v272
        %v1305 = vunpack.c.l.b16 %v273
        %v1306 = vunpack.c.h.b16 %v273
        %v1307 = vunpack.c.l.b16 %v274
        %v1308 = vunpack.c.h.b16 %v274
        %v1309 = vunpack.c.l.b16 %v275
        %v1310 = vunpack.c.h.b16 %v275
        %v1311 = vunpack.c.l.b16 %v276
        %v1312 = vunpack.c.h.b16 %v276
        %v1313 = vunpack.c.l.b16 %v277
        %v1314 = vunpack.c.h.b16 %v277
        %v1315 = vunpack.c.l.b16 %v278
        %v1316 = vunpack.c.h.b16 %v278
        %v1317 = vunpack.c.l.b16 %v279
        %v1318 = vunpack.c.h.b16 %v279
        %v1319 = vunpack.c.l.b16 %v280
        %v1320 = vunpack.c.h.b16 %v280
        %v1321 = vunpack.c.l.b16 %v281
        %v1322 = vunpack.c.h.b16 %v281
        %v1323 = vunpack.c.l.b16 %v282
        %v1324 = vunpack.c.h.b16 %v282
        %v1325 = vunpack.c.l.b16 %v283
        %v1326 = vunpack.c.h.b16 %v283
        %v1327 = vunpack.c.l.b16 %v284
        %v1328 = vunpack.c.h.b16 %v284
        %v1329 = vunpack.c.l.b16 %v285
        %v1330 = vunpack.c.h.b16 %v285
        %v1331 = vunpack.c.l.b16 %v286
        %v1332 = vunpack.c.h.b16 %v286
        %v1333 = vunpack.c.l.b16 %v287
        %v1334 = vunpack.c.h.b16 %v287
        %v1335 = vunpack.c.l.b16 %v288
        %v1336 = vunpack.c.h.b16 %v288
        %v1337 = vunpack.c.l.b16 %v289
        %v1338 = vunpack.c.h.b16 %v289
        %v1339 = vunpack.c.l.b16 %v290
        %v1340 = vunpack.c.h.b16 %v290
        %v1341 = vunpack.c.l.b16 %v291
        %v1342 = vunpack.c.h.b16 %v291
        %v1343 = vunpack.c.l.b16 %v292
        %v1344 = vunpack.c.h.b16 %v292
        %v1345 = vunpack.c.l.b16 %v293
        %v1346 = vunpack.c.h.b16 %v293
        %v1347 = vunpack.c.l.b16 %v294
        %v1348 = vunpack.c.h.b16 %v294
        %v1349 = vunpack.c.l.b16 %v295
        %v1350 = vunpack.c.h.b16 %v295
        %v1351 = vunpack.c.l.b16 %v296
        %v1352 = vunpack.c.h.b16 %v296
        %v1353 = vunpack.c.l.b16 %v297
        %v1354 = vunpack.c.h.b16 %v297
        %v1355 = vunpack.c.l.b16 %v298
        %v1356 = vunpack.c.h.b16 %v298
        %v1357 = vunpack.c.l.b16 %v299
        %v1358 = vunpack.c.h.b16 %v299
        %v1359 = vunpack.c.l.b16 %v300
        %v1360 = vunpack.c.h.b16 %v300
        %v1361 = vunpack.c.l.b16 %v301
        %v1362 = vunpack.c.h.b16 %v301
        %v1363 = vunpack.c.l.b16 %v302
        %v1364 = vunpack.c.h.b16 %v302
        %v1365 = vunpack.c.l.b16 %v303
        %v1366 = vunpack.c.h.b16 %v303
        %v1367 = vunpack.c.l.b16 %v304
        %v1368 = vunpack.c.h.b16 %v304
        %v1369 = vunpack.c.l.b16 %v305
        %v1370 = vunpack.c.h.b16 %v305
        %v1371 = vunpack.c.l.b16 %v306
        %v1372 = vunpack.c.h.b16 %v306
        %v1373 = vunpack.c.l.b16 %v307
        %v1374 = vunpack.c.h.b16 %v307
        %v1375 = vunpack.c.l.b16 %v308
        %v1376 = vunpack.c.h.b16 %v308
        %v1377 = vunpack.c.l.b16 %v309
        %v1378 = vunpack.c.h.b16 %v309
        %v1379 = vunpack.c.l.b16 %v310
        %v1380 = vunpack.c.h.b16 %v310
        %v1381 = vunpack.c.l.b16 %v311
        %v1382 = vunpack.c.h.b16 %v311
        %v1383 = vunpack.c.l.b16 %v312
        %v1384 = vunpack.c.h.b16 %v312
        %v1385 = vunpack.c.l.b16 %v313
        %v1386 = vunpack.c.h.b16 %v313
        %v1387 = vunpack.c.l.b16 %v314
        %v1388 = vunpack.c.h.b16 %v314
        %v1389 = vunpack.c.l.b16 %v315
        %v1390 = vunpack.c.h.b16 %v315
        %v1391 = vunpack.c.l.b16 %v316
        %v1392 = vunpack.c.h.b16 %v316
        %v1393 = vunpack.c.l.b16 %v317
        %v1394 = vunpack.c.h.b16 %v317
        %v1395 = vunpack.c.l.b16 %v318
        %v1396 = vunpack.c.h.b16 %v318
        %v1397 = vunpack.c.l.b16 %v319
        %v1398 = vunpack.c.h.b16 %v319
        %v1399 = vunpack.c.l.b16 %v320
        %v1400 = vunpack.c.h.b16 %v320
        %v1401 = vunpack.c.l.b16 %v321
        %v1402 = vunpack.c.h.b16 %v321
        %v1403 = vunpack.c.l.b16 %v322
        %v1404 = vunpack.c.h.b16 %v322
        %v1405 = vunpack.c.l.b16 %v323
        %v1406 = vunpack.c.h.b16 %v323
        %v1407 = vunpack.c.l.b16 %v324
        %v1408 = vunpack.c.h.b16 %v324
        %v1409 = vunpack.c.l.b16 %v325
        %v1410 = vunpack.c.h.b16 %v325
        %v1411 = vunpack.c.l.b16 %v326
        %v1412 = vunpack.c.h.b16 %v326
        %v1413 = vunpack.c.l.b16 %v327
        %v1414 = vunpack.c.h.b16 %v327
        %v1415 = vunpack.c.l.b16 %v328
        %v1416 = vunpack.c.h.b16 %v328
        %v1417 = vunpack.c.l.b16 %v329
        %v1418 = vunpack.c.h.b16 %v329
        %v1419 = vunpack.c.l.b16 %v330
        %v1420 = vunpack.c.h.b16 %v330
        %v1421 = vunpack.c.l.b16 %v331
        %v1422 = vunpack.c.h.b16 %v331
        %v1423 = vunpack.c.l.b16 %v332
        %v1424 = vunpack.c.h.b16 %v332
        %v1425 = vunpack.c.l.b16 %v333
        %v1426 = vunpack.c.h.b16 %v333
        %v1427 = vunpack.c.l.b16 %v334
        %v1428 = vunpack.c.h.b16 %v334
        %v1429 = vunpack.c.l.b16 %v335
        %v1430 = vunpack.c.h.b16 %v335
        %v1431 = vunpack.c.l.b16 %v336
        %v1432 = vunpack.c.h.b16 %v336
        %v1433 = vunpack.c.l.b16 %v337
        %v1434 = vunpack.c.h.b16 %v337
        %v1435 = vunpack.c.l.b16 %v338
        %v1436 = vunpack.c.h.b16 %v338
        %v1437 = vunpack.c.l.b16 %v339
        %v1438 = vunpack.c.h.b16 %v339
        %v1439 = vunpack.c.l.b16 %v340
        %v1440 = vunpack.c.h.b16 %v340
        %v1441 = vunpack.c.l.b16 %v341
        %v1442 = vunpack.c.h.b16 %v341
        %v1443 = vunpack.c.l.b16 %v342
        %v1444 = vunpack.c.h.b16 %v342
        %v1445 = vunpack.c.l.b16 %v343
        %v1446 = vunpack.c.h.b16 %v343
        %v1447 = vunpack.c.l.b16 %v344
        %v1448 = vunpack.c.h.b16 %v344
        %v1449 = vunpack.c.l.b16 %v345
        %v1450 = vunpack.c.h.b16 %v345
        %v1451 = vunpack.c.l.b16 %v346
        %v1452 = vunpack.c.h.b16 %v346
        %v1453 = vunpack.c.l.b16 %v347
        %v1454 = vunpack.c.h.b16 %v347
        %v1455 = vunpack.c.l.b16 %v348
        %v1456 = vunpack.c.h.b16 %v348
        %v1457 = vunpack.c.l.b16 %v349
        %v1458 = vunpack.c.h.b16 %v349
        %v1459 = vunpack.c.l.b16 %v350
        %v1460 = vunpack.c.h.b16 %v350
        %v1461 = vunpack.c.l.b16 %v351
        %v1462 = vunpack.c.h.b16 %v351
        %v1463 = vunpack.c.l.b16 %v352
        %v1464 = vunpack.c.h.b16 %v352
        %v1465 = vunpack.c.l.b16 %v353
        %v1466 = vunpack.c.h.b16 %v353
        %v1467 = vunpack.c.l.b16 %v354
        %v1468 = vunpack.c.h.b16 %v354
        %v1469 = vunpack.c.l.b16 %v355
        %v1470 = vunpack.c.h.b16 %v355
        %v1471 = vunpack.c.l.b16 %v356
        %v1472 = vunpack.c.h.b16 %v356
        %v1473 = vunpack.c.l.b16 %v357
        %v1474 = vunpack.c.h.b16 %v357
        %v1475 = vunpack.c.l.b16 %v358
        %v1476 = vunpack.c.h.b16 %v358
        %v1477 = vunpack.c.l.b16 %v359
        %v1478 = vunpack.c.h.b16 %v359
        %v1479 = vunpack.c.l.b16 %v360
        %v1480 = vunpack.c.h.b16 %v360
        %v1481 = vunpack.c.l.b16 %v361
        %v1482 = vunpack.c.h.b16 %v361
        %v1483 = vunpack.c.l.b16 %v362
        %v1484 = vunpack.c.h.b16 %v362
        %v1485 = vunpack.c.l.b16 %v363
        %v1486 = vunpack.c.h.b16 %v363
        %v1487 = vunpack.c.l.b16 %v364
        %v1488 = vunpack.c.h.b16 %v364
        %v1489 = vunpack.c.l.b16 %v365
        %v1490 = vunpack.c.h.b16 %v365
        %v1491 = vunpack.c.l.b16 %v366
        %v1492 = vunpack.c.h.b16 %v366
        %v1493 = vunpack.c.l.b16 %v367
        %v1494 = vunpack.c.h.b16 %v367
        %v1495 = vunpack.c.l.b16 %v368
        %v1496 = vunpack.c.h.b16 %v368
        %v1497 = vunpack.c.l.b16 %v369
        %v1498 = vunpack.c.h.b16 %v369
        %v1499 = vunpack.c.l.b16 %v370
        %v1500 = vunpack.c.h.b16 %v370
        %v1501 = vunpack.c.l.b16 %v371
        %v1502 = vunpack.c.h.b16 %v371
        %v1503 = vunpack.c.l.b16 %v372
        %v1504 = vunpack.c.h.b16 %v372
        %v1505 = vunpack.c.l.b16 %v373
        %v1506 = vunpack.c.h.b16 %v373
        %v1507 = vunpack.c.l.b16 %v374
        %v1508 = vunpack.c.h.b16 %v374
        %v1509 = vunpack.c.l.b16 %v375
        %v1510 = vunpack.c.h.b16 %v375
        %v1511 = vunpack.c.l.b16 %v376
        %v1512 = vunpack.c.h.b16 %v376
        %v1513 = vunpack.c.l.b16 %v377
        %v1514 = vunpack.c.h.b16 %v377
        %v1515 = vunpack.c.l.b16 %v378
        %v1516 = vunpack.c.h.b16 %v378
        %v1517 = vunpack.c.l.b16 %v379
        %v1518 = vunpack.c.h.b16 %v379
        %v1519 = vunpack.c.l.b16 %v380
        %v1520 = vunpack.c.h.b16 %v380
        %v1521 = vunpack.c.l.b16 %v381
        %v1522 = vunpack.c.h.b16 %v381
        %v1523 = vunpack.c.l.b16 %v382
        %v1524 = vunpack.c.h.b16 %v382
        %v1525 = vunpack.c.l.b16 %v383
        %v1526 = vunpack.c.h.b16 %v383
        %v1527 = vunpack.c.l.b16 %v384
        %v1528 = vunpack.c.h.b16 %v384
        %v1529 = vunpack.c.l.b16 %v385
        %v1530 = vunpack.c.h.b16 %v385
        %v1531 = vunpack.c.l.b16 %v386
        %v1532 = vunpack.c.h.b16 %v386
        %v1533 = vunpack.c.l.b16 %v387
        %v1534 = vunpack.c.h.b16 %v387
        %v1535 = vunpack.c.l.b16 %v388
        %v1536 = vunpack.c.h.b16 %v388
        %v1537 = vunpack.c.l.b16 %v389
        %v1538 = vunpack.c.h.b16 %v389
        %v1539 = vunpack.c.l.b16 %v390
        %v1540 = vunpack.c.h.b16 %v390
        %v1541 = vunpack.c.l.b16 %v391
        %v1542 = vunpack.c.h.b16 %v391
        %v1543 = vunpack.c.l.b16 %v392
        %v1544 = vunpack.c.h.b16 %v392
        %v1545 = vunpack.c.l.b16 %v393
        %v1546 = vunpack.c.h.b16 %v393
        %v1547 = vunpack.c.l.b16 %v394
        %v1548 = vunpack.c.h.b16 %v394
        %v1549 = vunpack.c.l.b16 %v395
        %v1550 = vunpack.c.h.b16 %v395
        %v1551 = vunpack.c.l.b16 %v396
        %v1552 = vunpack.c.h.b16 %v396
        %v1553 = vunpack.c.l.b16 %v397
        %v1554 = vunpack.c.h.b16 %v397
        %v1555 = vunpack.c.l.b16 %v398
        %v1556 = vunpack.c.h.b16 %v398
        %v1557 = vunpack.c.l.b16 %v399
        %v1558 = vunpack.c.h.b16 %v399
        %v1559 = vunpack.c.l.b16 %v400
        %v1560 = vunpack.c.h.b16 %v400
        %v1561 = vunpack.c.l.b16 %v401
        %v1562 = vunpack.c.h.b16 %v401
        %v1563 = vunpack.c.l.b16 %v402
        %v1564 = vunpack.c.h.b16 %v402
        %v1565 = vunpack.c.l.b16 %v403
        %v1566 = vunpack.c.h.b16 %v403
        %v1567 = vunpack.c.l.b16 %v404
        %v1568 = vunpack.c.h.b16 %v404
        %v1569 = vunpack.c.l.b16 %v405
        %v1570 = vunpack.c.h.b16 %v405
        %v1571 = vunpack.c.l.b16 %v406
        %v1572 = vunpack.c.h.b16 %v406
        %v1573 = vunpack.c.l.b16 %v407
        %v1574 = vunpack.c.h.b16 %v407
        %v1575 = vunpack.c.l.b16 %v408
        %v1576 = vunpack.c.h.b16 %v408
        %v1577 = vunpack.c.l.b16 %v409
        %v1578 = vunpack.c.h.b16 %v409
        %v1579 = vunpack.c.l.b16 %v410
        %v1580 = vunpack.c.h.b16 %v410
        %v1581 = vunpack.c.l.b16 %v411
        %v1582 = vunpack.c.h.b16 %v411
        %v1583 = vunpack.c.l.b16 %v412
        %v1584 = vunpack.c.h.b16 %v412
        %v1585 = vunpack.c.l.b16 %v413
        %v1586 = vunpack.c.h.b16 %v413
        %v1587 = vunpack.c.l.b16 %v414
        %v1588 = vunpack.c.h.b16 %v414
        %v1589 = vunpack.c.l.b16 %v415
        %v1590 = vunpack.c.h.b16 %v415
        %v1591 = vunpack.c.l.b16 %v416
        %v1592 = vunpack.c.h.b16 %v416
        %v1593 = vunpack.c.l.b16 %v417
        %v1594 = vunpack.c.h.b16 %v417
        %v1595 = vunpack.c.l.b16 %v418
        %v1596 = vunpack.c.h.b16 %v418
        %v1597 = vunpack.c.l.b16 %v419
        %v1598 = vunpack.c.h.b16 %v419
        %v1599 = vunpack.c.l.b16 %v420
        %v1600 = vunpack.c.h.b16 %v420
        %v1601 = vunpack.c.l.b16 %v421
        %v1602 = vunpack.c.h.b16 %v421
        %v1603 = vunpack.c.l.b16 %v422
        %v1604 = vunpack.c.h.b16 %v422
        %v1605 = vunpack.c.l.b16 %v423
        %v1606 = vunpack.c.h.b16 %v423
        %v1607 = vunpack.c.l.b16 %v424
        %v1608 = vunpack.c.h.b16 %v424
        %v1609 = vunpack.c.l.b16 %v425
        %v1610 = vunpack.c.h.b16 %v425
        %v1611 = vunpack.c.l.b16 %v426
        %v1612 = vunpack.c.h.b16 %v426
        %v1613 = vunpack.c.l.b16 %v427
        %v1614 = vunpack.c.h.b16 %v427
        %v1615 = vunpack.c.l.b16 %v428
        %v1616 = vunpack.c.h.b16 %v428
        %v1617 = vunpack.c.l.b16 %v429
        %v1618 = vunpack.c.h.b16 %v429
        %v1619 = vunpack.c.l.b16 %v430
        %v1620 = vunpack.c.h.b16 %v430
        %v1621 = vunpack.c.l.b16 %v431
        %v1622 = vunpack.c.h.b16 %v431
        %v1623 = vunpack.c.l.b16 %v432
        %v1624 = vunpack.c.h.b16 %v432
        %v1625 = vunpack.c.l.b16 %v433
        %v1626 = vunpack.c.h.b16 %v433
        %v1627 = vunpack.c.l.b16 %v434
        %v1628 = vunpack.c.h.b16 %v434
        %v1629 = vunpack.c.l.b16 %v435
        %v1630 = vunpack.c.h.b16 %v435
        %v1631 = vunpack.c.l.b16 %v436
        %v1632 = vunpack.c.h.b16 %v436
        %v1633 = vunpack.c.l.b16 %v437
        %v1634 = vunpack.c.h.b16 %v437
        %v1635 = vunpack.c.l.b16 %v438
        %v1636 = vunpack.c.h.b16 %v438
        %v1637 = vunpack.c.l.b16 %v439
        %v1638 = vunpack.c.h.b16 %v439
        %v1639 = vunpack.c.l.b16 %v440
        %v1640 = vunpack.c.h.b16 %v440
        %v1641 = vunpack.c.l.b16 %v441
        %v1642 = vunpack.c.h.b16 %v441
        %v1643 = vunpack.c.l.b16 %v442
        %v1644 = vunpack.c.h.b16 %v442
        %v1645 = vunpack.c.l.b16 %v443
        %v1646 = vunpack.c.h.b16 %v443
        %v1647 = vunpack.c.l.b16 %v444
        %v1648 = vunpack.c.h.b16 %v444
        %v1649 = vunpack.c.l.b16 %v445
        %v1650 = vunpack.c.h.b16 %v445
        %v1651 = vunpack.c.l.b16 %v446
        %v1652 = vunpack.c.h.b16 %v446
        %v1653 = vunpack.c.l.b16 %v447
        %v1654 = vunpack.c.h.b16 %v447
        %v1655 = vunpack.c.l.b16 %v448
        %v1656 = vunpack.c.h.b16 %v448
        %v1657 = vunpack.c.l.b16 %v449
        %v1658 = vunpack.c.h.b16 %v449
        %v1659 = vunpack.c.l.b16 %v450
        %v1660 = vunpack.c.h.b16 %v450
        %v1661 = vunpack.c.l.b16 %v451
        %v1662 = vunpack.c.h.b16 %v451
        %v1663 = vunpack.c.l.b16 %v452
        %v1664 = vunpack.c.h.b16 %v452
        %v1665 = vunpack.c.l.b16 %v453
        %v1666 = vunpack.c.h.b16 %v453
        %v1667 = vunpack.c.l.b16 %v454
        %v1668 = vunpack.c.h.b16 %v454
        %v1669 = vunpack.c.l.b16 %v455
        %v1670 = vunpack.c.h.b16 %v455
        %v1671 = vunpack.c.l.b16 %v456
        %v1672 = vunpack.c.h.b16 %v456
        %v1673 = vunpack.c.l.b16 %v457
        %v1674 = vunpack.c.h.b16 %v457
        %v1675 = vunpack.c.l.b16 %v458
        %v1676 = vunpack.c.h.b16 %v458
        %v1677 = vunpack.c.l.b16 %v459
        %v1678 = vunpack.c.h.b16 %v459
        %v1679 = vunpack.c.l.b16 %v460
        %v1680 = vunpack.c.h.b16 %v460
        %v1681 = vunpack.c.l.b16 %v461
        %v1682 = vunpack.c.h.b16 %v461
        %v1683 = vunpack.c.l.b16 %v462
        %v1684 = vunpack.c.h.b16 %v462
        %v1685 = vunpack.c.l.b16 %v463
        %v1686 = vunpack.c.h.b16 %v463
        %v1687 = vunpack.c.l.b16 %v464
        %v1688 = vunpack.c.h.b16 %v464
        %v1689 = vunpack.c.l.b16 %v465
        %v1690 = vunpack.c.h.b16 %v465
        %v1691 = vunpack.c.l.b16 %v466
        %v1692 = vunpack.c.h.b16 %v466
        %v1693 = vunpack.c.l.b16 %v467
        %v1694 = vunpack.c.h.b16 %v467
        %v1695 = vunpack.c.l.b16 %v468
        %v1696 = vunpack.c.h.b16 %v468
        %v1697 = vunpack.c.l.b16 %v469
        %v1698 = vunpack.c.h.b16 %v469
        %v1699 = vunpack.c.l.b16 %v470
        %v1700 = vunpack.c.h.b16 %v470
        %v1701 = vunpack.c.l.b16 %v471
        %v1702 = vunpack.c.h.b16 %v471
        %v1703 = vunpack.c.l.b16 %v472
        %v1704 = vunpack.c.h.b16 %v472
        %v1705 = vunpack.c.l.b16 %v473
        %v1706 = vunpack.c.h.b16 %v473
        %v1707 = vunpack.c.l.b16 %v474
        %v1708 = vunpack.c.h.b16 %v474
        %v1709 = vunpack.c.l.b16 %v475
        %v1710 = vunpack.c.h.b16 %v475
        %v1711 = vunpack.c.l.b16 %v476
        %v1712 = vunpack.c.h.b16 %v476
        %v1713 = vunpack.c.l.b16 %v477
        %v1714 = vunpack.c.h.b16 %v477
        %v1715 = vunpack.c.l.b16 %v478
        %v1716 = vunpack.c.h.b16 %v478
        %v1717 = vunpack.c.l.b16 %v479
        %v1718 = vunpack.c.h.b16 %v479
        %v1719 = vunpack.c.l.b16 %v480
        %v1720 = vunpack.c.h.b16 %v480
        %v1721 = vunpack.c.l.b16 %v481
        %v1722 = vunpack.c.h.b16 %v481
        %v1723 = vunpack.c.l.b16 %v482
        %v1724 = vunpack.c.h.b16 %v482
        %v1725 = vunpack.c.l.b16 %v483
        %v1726 = vunpack.c.h.b16 %v483
        %v1727 = vunpack.c.l.b16 %v484
        %v1728 = vunpack.c.h.b16 %v484
        %v1729 = vunpack.c.l.b16 %v485
        %v1730 = vunpack.c.h.b16 %v485
        %v1731 = vunpack.c.l.b16 %v486
        %v1732 = vunpack.c.h.b16 %v486
        %v1733 = vunpack.c.l.b16 %v487
        %v1734 = vunpack.c.h.b16 %v487
        %v1735 = vunpack.c.l.b16 %v488
        %v1736 = vunpack.c.h.b16 %v488
        %v1737 = vunpack.c.l.b16 %v489
        %v1738 = vunpack.c.h.b16 %v489
        %v1739 = vunpack.c.l.b16 %v490
        %v1740 = vunpack.c.h.b16 %v490
        %v1741 = vunpack.c.l.b16 %v491
        %v1742 = vunpack.c.h.b16 %v491
        %v1743 = vunpack.c.l.b16 %v492
        %v1744 = vunpack.c.h.b16 %v492
        %v1745 = vunpack.c.l.b16 %v493
        %v1746 = vunpack.c.h.b16 %v493
        %v1747 = vunpack.c.l.b16 %v494
        %v1748 = vunpack.c.h.b16 %v494
        %v1749 = vunpack.c.l.b16 %v495
        %v1750 = vunpack.c.h.b16 %v495
        %v1751 = vunpack.c.l.b16 %v496
        %v1752 = vunpack.c.h.b16 %v496
        %v1753 = vunpack.c.l.b16 %v497
        %v1754 = vunpack.c.h.b16 %v497
        %v1755 = vunpack.c.l.b16 %v498
        %v1756 = vunpack.c.h.b16 %v498
        %v1757 = vunpack.c.l.b16 %v499
        %v1758 = vunpack.c.h.b16 %v499
        %v1759 = vunpack.c.l.b16 %v500
        %v1760 = vunpack.c.h.b16 %v500
        %v1761 = vunpack.c.l.b16 %v501
        %v1762 = vunpack.c.h.b16 %v501
        %v1763 = vunpack.c.l.b16 %v502
        %v1764 = vunpack.c.h.b16 %v502
        %v1765 = vunpack.c.l.b16 %v503
        %v1766 = vunpack.c.h.b16 %v503
        %v1767 = vunpack.c.l.b16 %v504
        %v1768 = vunpack.c.h.b16 %v504
        %v1769 = vunpack.c.l.b16 %v505
        %v1770 = vunpack.c.h.b16 %v505
        %v1771 = vunpack.c.l.b16 %v506
        %v1772 = vunpack.c.h.b16 %v506
        %v1773 = vunpack.c.l.b16 %v507
        %v1774 = vunpack.c.h.b16 %v507
        %v1775 = vunpack.c.l.b16 %v508
        %v1776 = vunpack.c.h.b16 %v508
        %v1777 = vunpack.c.l.b16 %v509
        %v1778 = vunpack.c.h.b16 %v509
        %v1779 = vunpack.c.l.b16 %v510
        %v1780 = vunpack.c.h.b16 %v510
        %v1781 = vunpack.c.l.b16 %v511
        %v1782 = vunpack.c.h.b16 %v511
        %v1783 = vunpack.c.l.b16 %v512
        %v1784 = vunpack.c.h.b16 %v512
        %v1785 = vunpack.c.l.b16 %v513
        %v1786 = vunpack.c.h.b16 %v513
        %v1787 = vunpack.c.l.b16 %v514
        %v1788 = vunpack.c.h.b16 %v514
        %v1789 = vunpack.c.l.b16 %v515
        %v1790 = vunpack.c.h.b16 %v515
        %v1791 = vunpack.c.l.b16 %v516
        %v1792 = vunpack.c.h.b16 %v516
        %v1793 = vunpack.c.l.b16 %v517
        %v1794 = vunpack.c.h.b16 %v517
        %v1795 = vunpack.c.l.b16 %v518
        %v1796 = vunpack.c.h.b16 %v518
        %v1797 = vunpack.c.l.b16 %v519
        %v1798 = vunpack.c.h.b16 %v519
        %v1799 = vunpack.c.l.b16 %v520
        %v1800 = vunpack.c.h.b16 %v520
        %v1801 = vunpack.c.l.b16 %v521
        %v1802 = vunpack.c.h.b16 %v521
        %v1803 = vunpack.c.l.b16 %v522
        %v1804 = vunpack.c.h.b16 %v522
        %v1805 = vunpack.c.l.b16 %v523
        %v1806 = vunpack.c.h.b16 %v523
        %v1807 = vunpack.c.l.b16 %v524
        %v1808 = vunpack.c.h.b16 %v524
        %v1809 = vunpack.c.l.b16 %v525
        %v1810 = vunpack.c.h.b16 %v525
        %v1811 = vunpack.c.l.b16 %v526
        %v1812 = vunpack.c.h.b16 %v526
        %v1813 = vunpack.c.l.b16 %v527
        %v1814 = vunpack.c.h.b16 %v527
        %v1815 = vunpack.c.l.b16 %v528
        %v1816 = vunpack.c.h.b16 %v528
        %v1817 = vunpack.c.l.b16 %v529
        %v1818 = vunpack.c.h.b16 %v529
        %v1819 = vunpack.c.l.b16 %v530
        %v1820 = vunpack.c.h.b16 %v530
        %v1821 = vunpack.c.l.b16 %v531
        %v1822 = vunpack.c.h.b16 %v531
        %v1823 = vunpack.c.l.b16 %v532
        %v1824 = vunpack.c.h.b16 %v532
        %v1825 = vunpack.c.l.b16 %v533
        %v1826 = vunpack.c.h.b16 %v533
        %v1827 = vunpack.c.l.b16 %v534
        %v1828 = vunpack.c.h.b16 %v534
        %v1829 = vunpack.c.l.b16 %v535
        %v1830 = vunpack.c.h.b16 %v535
        %v1831 = vunpack.c.l.b16 %v536
        %v1832 = vunpack.c.h.b16 %v536
        %v1833 = vunpack.c.l.b16 %v537
        %v1834 = vunpack.c.h.b16 %v537
        %v1835 = vunpack.c.l.b16 %v538
        %v1836 = vunpack.c.h.b16 %v538
        %v1837 = vunpack.c.l.b16 %v539
        %v1838 = vunpack.c.h.b16 %v539
        %v1839 = vunpack.c.l.b16 %v540
        %v1840 = vunpack.c.h.b16 %v540
        %v1841 = vunpack.c.l.b16 %v541
        %v1842 = vunpack.c.h.b16 %v541
        %v1843 = vunpack.c.l.b16 %v542
        %v1844 = vunpack.c.h.b16 %v542
        %v1845 = vunpack.c.l.b16 %v543
        %v1846 = vunpack.c.h.b16 %v543
        %v1847 = vunpack.c.l.b16 %v544
        %v1848 = vunpack.c.h.b16 %v544
        %v1849 = vunpack.c.l.b16 %v545
        %v1850 = vunpack.c.h.b16 %v545
        %v1851 = vunpack.c.l.b16 %v546
        %v1852 = vunpack.c.h.b16 %v546
        %v1853 = vunpack.c.l.b16 %v547
        %v1854 = vunpack.c.h.b16 %v547
        %v1855 = vunpack.c.l.b16 %v548
        %v1856 = vunpack.c.h.b16 %v548
        %v1857 = vunpack.c.l.b16 %v549
        %v1858 = vunpack.c.h.b16 %v549
        %v1859 = vunpack.c.l.b16 %v550
        %v1860 = vunpack.c.h.b16 %v550
        %v1861 = vunpack.c.l.b16 %v551
        %v1862 = vunpack.c.h.b16 %v551
        %v1863 = vunpack.c.l.b16 %v552
        %v1864 = vunpack.c.h.b16 %v552
        %v1865 = vunpack.c.l.b16 %v553
        %v1866 = vunpack.c.h.b16 %v553
        %v1867 = vunpack.c.l.b16 %v554
        %v1868 = vunpack.c.h.b16 %v554
        %v1869 = vunpack.c.l.b16 %v555
        %v1870 = vunpack.c.h.b16 %v555
        %v1871 = vunpack.c.l.b16 %v556
        %v1872 = vunpack.c.h.b16 %v556
        %v1873 = vunpack.c.l.b16 %v557
        %v1874 = vunpack.c.h.b16 %v557
        %v1875 = vunpack.c.l.b16 %v558
        %v1876 = vunpack.c.h.b16 %v558
        %v1877 = vunpack.c.l.b16 %v559
        %v1878 = vunpack.c.h.b16 %v559
        %v1879 = vunpack.c.l.b16 %v560
        %v1880 = vunpack.c.h.b16 %v560
        %v1881 = vunpack.c.l.b16 %v561
        %v1882 = vunpack.c.h.b16 %v561
        %v1883 = vunpack.c.l.b16 %v562
        %v1884 = vunpack.c.h.b16 %v562
        %v1885 = vunpack.c.l.b16 %v563
        %v1886 = vunpack.c.h.b16 %v563
        %v1887 = vunpack.c.l.b16 %v564
        %v1888 = vunpack.c.h.b16 %v564
        %v1889 = vunpack.c.l.b16 %v565
        %v1890 = vunpack.c.h.b16 %v565
        %v1891 = vunpack.c.l.b16 %v566
        %v1892 = vunpack.c.h.b16 %v566
        %v1893 = vunpack.c.l.b16 %v567
        %v1894 = vunpack.c.h.b16 %v567
        %v1895 = vunpack.c.l.b16 %v568
        %v1896 = vunpack.c.h.b16 %v568
        %v1897 = vunpack.c.l.b16 %v569
        %v1898 = vunpack.c.h.b16 %v569
        %v1899 = vunpack.c.l.b16 %v570
        %v1900 = vunpack.c.h.b16 %v570
        %v1901 = vunpack.c.l.b16 %v571
        %v1902 = vunpack.c.h.b16 %v571
        %v1903 = vunpack.c.l.b16 %v572
        %v1904 = vunpack.c.h.b16 %v572
        %v1905 = vunpack.c.l.b16 %v573
        %v1906 = vunpack.c.h.b16 %v573
        %v1907 = vunpack.c.l.b16 %v574
        %v1908 = vunpack.c.h.b16 %v574
        %v1909 = vunpack.c.l.b16 %v575
        %v1910 = vunpack.c.h.b16 %v575
        %v1911 = vunpack.c.l.b16 %v576
        %v1912 = vunpack.c.h.b16 %v576
        %v1913 = vunpack.c.l.b16 %v577
        %v1914 = vunpack.c.h.b16 %v577
        %v1915 = vunpack.c.l.b16 %v578
        %v1916 = vunpack.c.h.b16 %v578
        %v1917 = vunpack.c.l.b16 %v579
        %v1918 = vunpack.c.h.b16 %v579
        %v1919 = vunpack.c.l.b16 %v580
        %v1920 = vunpack.c.h.b16 %v580
        %v1921 = vunpack.c.l.b16 %v581
        %v1922 = vunpack.c.h.b16 %v581
        %v1923 = vunpack.c.l.b16 %v582
        %v1924 = vunpack.c.h.b16 %v582
        %v1925 = vunpack.c.l.b16 %v583
        %v1926 = vunpack.c.h.b16 %v583
        %v1927 = vunpack.c.l.b16 %v584
        %v1928 = vunpack.c.h.b16 %v584
        %v1929 = vunpack.c.l.b16 %v585
        %v1930 = vunpack.c.h.b16 %v585
        %v1931 = vunpack.c.l.b16 %v586
        %v1932 = vunpack.c.h.b16 %v586
        %v1933 = vunpack.c.l.b16 %v587
        %v1934 = vunpack.c.h.b16 %v587
        %v1935 = vunpack.c.l.b16 %v588
        %v1936 = vunpack.c.h.b16 %v588
        %v1937 = vunpack.c.l.b16 %v589
        %v1938 = vunpack.c.h.b16 %v589
        %v1939 = vunpack.c.l.b16 %v590
        %v1940 = vunpack.c.h.b16 %v590
        %v1941 = vunpack.c.l.b16 %v591
        %v1942 = vunpack.c.h.b16 %v591
        %v1943 = vunpack.c.l.b16 %v592
        %v1944 = vunpack.c.h.b16 %v592
        %v1945 = vunpack.c.l.b16 %v593
        %v1946 = vunpack.c.h.b16 %v593
        %v1947 = vunpack.c.l.b16 %v594
        %v1948 = vunpack.c.h.b16 %v594
        %v1949 = vunpack.c.l.b16 %v595
        %v1950 = vunpack.c.h.b16 %v595
        %v1951 = vunpack.c.l.b16 %v596
        %v1952 = vunpack.c.h.b16 %v596
        %v1953 = vunpack.c.l.b16 %v597
        %v1954 = vunpack.c.h.b16 %v597
        %v1955 = vunpack.c.l.b16 %v598
        %v1956 = vunpack.c.h.b16 %v598
        %v1957 = vunpack.c.l.b16 %v599
        %v1958 = vunpack.c.h.b16 %v599
        %v1959 = vunpack.c.l.b16 %v600
        %v1960 = vunpack.c.h.b16 %v600
        %v1961 = vunpack.c.l.b16 %v601
        %v1962 = vunpack.c.h.b16 %v601
        %v1963 = vunpack.c.l.b16 %v602
        %v1964 = vunpack.c.h.b16 %v602
        %v1965 = vunpack.c.l.b16 %v603
        %v1966 = vunpack.c.h.b16 %v603
        %v1967 = vunpack.c.l.b16 %v604
        %v1968 = vunpack.c.h.b16 %v604
        %v1969 = vunpack.c.l.b16 %v605
        %v1970 = vunpack.c.h.b16 %v605
        %v1971 = vunpack.c.l.b16 %v606
        %v1972 = vunpack.c.h.b16 %v606
        %v1973 = vunpack.c.l.b16 %v607
        %v1974 = vunpack.c.h.b16 %v607
        %v1975 = vunpack.c.l.b16 %v608
        %v1976 = vunpack.c.h.b16 %v608
        %v1977 = vunpack.c.l.b16 %v609
        %v1978 = vunpack.c.h.b16 %v609
        %v1979 = vunpack.c.l.b16 %v610
        %v1980 = vunpack.c.h.b16 %v610
        %v1981 = vunpack.c.l.b16 %v611
        %v1982 = vunpack.c.h.b16 %v611
        %v1983 = vunpack.c.l.b16 %v612
        %v1984 = vunpack.c.h.b16 %v612
        %v1985 = vunpack.c.l.b16 %v613
        %v1986 = vunpack.c.h.b16 %v613
        %v1987 = vunpack.c.l.b16 %v614
        %v1988 = vunpack.c.h.b16 %v614
        %v1989 = vunpack.c.l.b16 %v615
        %v1990 = vunpack.c.h.b16 %v615
        %v1991 = vunpack.c.l.b16 %v616
        %v1992 = vunpack.c.h.b16 %v616
        %v1993 = vunpack.c.l.b16 %v617
        %v1994 = vunpack.c.h.b16 %v617
        %v1995 = vunpack.c.l.b16 %v618
        %v1996 = vunpack.c.h.b16 %v618
        %v1997 = vunpack.c.l.b16 %v619
        %v1998 = vunpack.c.h.b16 %v619
        %v1999 = vunpack.c.l.b16 %v620
        %v2000 = vunpack.c.h.b16 %v620
        %v2001 = vunpack.c.l.b16 %v621
        %v2002 = vunpack.c.h.b16 %v621
        %v2003 = vunpack.c.l.b16 %v622
        %v2004 = vunpack.c.h.b16 %v622
        %v2005 = vunpack.c.l.b16 %v623
        %v2006 = vunpack.c.h.b16 %v623
        %v2007 = vunpack.c.l.b16 %v624
        %v2008 = vunpack.c.h.b16 %v624
        %v2009 = vunpack.c.l.b16 %v625
        %v2010 = vunpack.c.h.b16 %v625
        %v2011 = vunpack.c.l.b16 %v626
        %v2012 = vunpack.c.h.b16 %v626
        %v2013 = vunpack.c.l.b16 %v627
        %v2014 = vunpack.c.h.b16 %v627
        %v2015 = vunpack.c.l.b16 %v628
        %v2016 = vunpack.c.h.b16 %v628
        %v2017 = vunpack.c.l.b16 %v629
        %v2018 = vunpack.c.h.b16 %v629
        %v2019 = vunpack.c.l.b16 %v630
        %v2020 = vunpack.c.h.b16 %v630
        %v2021 = vunpack.c.l.b16 %v631
        %v2022 = vunpack.c.h.b16 %v631
        %v2023 = vunpack.c.l.b16 %v632
        %v2024 = vunpack.c.h.b16 %v632
        %v2025 = vunpack.c.l.b16 %v633
        %v2026 = vunpack.c.h.b16 %v633
        %v2027 = vunpack.c.l.b16 %v634
        %v2028 = vunpack.c.h.b16 %v634
        %v2029 = vunpack.c.l.b16 %v635
        %v2030 = vunpack.c.h.b16 %v635
        %v2031 = vunpack.c.l.b16 %v636
        %v2032 = vunpack.c.h.b16 %v636
        %v2033 = vunpack.c.l.b16 %v637
        %v2034 = vunpack.c.h.b16 %v637
        %v2035 = vunpack.c.l.b16 %v638
        %v2036 = vunpack.c.h.b16 %v638
        %v2037 = vunpack.c.l.b16 %v639
        %v2038 = vunpack.c.h.b16 %v639
        %v2039 = vunpack.c.l.b16 %v640
        %v2040 = vunpack.c.h.b16 %v640
        %v2041 = vunpack.c.l.b16 %v641
        %v2042 = vunpack.c.h.b16 %v641
        %v2043 = vunpack.c.l.b16 %v642
        %v2044 = vunpack.c.h.b16 %v642
        %v2045 = vunpack.c.l.b16 %v643
        %v2046 = vunpack.c.h.b16 %v643
        %v2047 = vunpack.c.l.b16 %v644
        %v2048 = vunpack.c.h.b16 %v644
        %v2049 = vunpack.c.l.b16 %v645
        %v2050 = vunpack.c.h.b16 %v645
        %v2051 = vunpack.c.l.b16 %v646
        %v2052 = vunpack.c.h.b16 %v646
        %v2053 = vunpack.c.l.b16 %v647
        %v2054 = vunpack.c.h.b16 %v647
        %v2055 = vunpack.c.l.b16 %v648
        %v2056 = vunpack.c.h.b16 %v648
        %v2057 = vunpack.c.l.b16 %v649
        %v2058 = vunpack.c.h.b16 %v649
        %v2059 = vunpack.c.l.b16 %v650
        %v2060 = vunpack.c.h.b16 %v650
        %v2061 = vunpack.c.l.b16 %v651
        %v2062 = vunpack.c.h.b16 %v651
        %v2063 = vunpack.c.l.b16 %v652
        %v2064 = vunpack.c.h.b16 %v652
        %v2065 = vunpack.c.l.b16 %v653
        %v2066 = vunpack.c.h.b16 %v653
        %v2067 = vunpack.c.l.b16 %v654
        %v2068 = vunpack.c.h.b16 %v654
        %v2069 = vunpack.c.l.b16 %v655
        %v2070 = vunpack.c.h.b16 %v655
        %v2071 = vunpack.c.l.b16 %v656
        %v2072 = vunpack.c.h.b16 %v656
        %v2073 = vunpack.c.l.b16 %v657
        %v2074 = vunpack.c.h.b16 %v657
        %v2075 = vunpack.c.l.b16 %v658
        %v2076 = vunpack.c.h.b16 %v658
        %v2077 = vunpack.c.l.b16 %v659
        %v2078 = vunpack.c.h.b16 %v659
        %v2079 = vunpack.c.l.b16 %v660
        %v2080 = vunpack.c.h.b16 %v660
        %v2081 = vunpack.c.l.b16 %v661
        %v2082 = vunpack.c.h.b16 %v661
        %v2083 = vunpack.c.l.b16 %v662
        %v2084 = vunpack.c.h.b16 %v662
        %v2085 = vunpack.c.l.b16 %v663
        %v2086 = vunpack.c.h.b16 %v663
        %v2087 = vunpack.c.l.b16 %v664
        %v2088 = vunpack.c.h.b16 %v664
        %v2089 = vunpack.c.l.b16 %v665
        %v2090 = vunpack.c.h.b16 %v665
        %v2091 = vunpack.c.l.b16 %v666
        %v2092 = vunpack.c.h.b16 %v666
        %v2093 = vunpack.c.l.b16 %v667
        %v2094 = vunpack.c.h.b16 %v667
        %v2095 = vunpack.c.l.b16 %v668
        %v2096 = vunpack.c.h.b16 %v668
        %v2097 = vunpack.c.l.b16 %v669
        %v2098 = vunpack.c.h.b16 %v669
        %v2099 = vunpack.c.l.b16 %v670
        %v2100 = vunpack.c.h.b16 %v670
        %v2101 = vunpack.c.l.b16 %v671
        %v2102 = vunpack.c.h.b16 %v671
        %v2103 = vunpack.c.l.b16 %v672
        %v2104 = vunpack.c.h.b16 %v672
        %v2105 = vunpack.c.l.b16 %v673
        %v2106 = vunpack.c.h.b16 %v673
        %v2107 = vunpack.c.l.b16 %v674
        %v2108 = vunpack.c.h.b16 %v674
        %v2109 = vunpack.c.l.b16 %v675
        %v2110 = vunpack.c.h.b16 %v675
        %v2111 = vunpack.c.l.b16 %v676
        %v2112 = vunpack.c.h.b16 %v676
        %v2113 = vunpack.c.l.b16 %v677
        %v2114 = vunpack.c.h.b16 %v677
        %v2115 = vunpack.c.l.b16 %v678
        %v2116 = vunpack.c.h.b16 %v678
        %v2117 = vunpack.c.l.b16 %v679
        %v2118 = vunpack.c.h.b16 %v679
        %v2119 = vunpack.c.l.b16 %v680
        %v2120 = vunpack.c.h.b16 %v680
        %v2121 = vunpack.c.l.b16 %v681
        %v2122 = vunpack.c.h.b16 %v681
        %v2123 = vunpack.c.l.b16 %v682
        %v2124 = vunpack.c.h.b16 %v682
        %v2125 = vunpack.c.l.b16 %v683
        %v2126 = vunpack.c.h.b16 %v683
        %v2127 = vunpack.c.l.b16 %v684
        %v2128 = vunpack.c.h.b16 %v684
        %v2129 = vunpack.c.l.b16 %v685
        %v2130 = vunpack.c.h.b16 %v685
        %v2131 = vunpack.c.l.b16 %v686
        %v2132 = vunpack.c.h.b16 %v686
        %v2133 = vunpack.c.l.b16 %v687
        %v2134 = vunpack.c.h.b16 %v687
        %v2135 = vunpack.c.l.b16 %v688
        %v2136 = vunpack.c.h.b16 %v688
        %v2137 = vunpack.c.l.b16 %v689
        %v2138 = vunpack.c.h.b16 %v689
        %v2139 = vunpack.c.l.b16 %v690
        %v2140 = vunpack.c.h.b16 %v690
        %v2141 = vunpack.c.l.b16 %v691
        %v2142 = vunpack.c.h.b16 %v691
        %v2143 = vunpack.c.l.b16 %v692
        %v2144 = vunpack.c.h.b16 %v692
        %v2145 = vunpack.c.l.b16 %v693
        %v2146 = vunpack.c.h.b16 %v693
        %v2147 = vunpack.c.l.b16 %v694
        %v2148 = vunpack.c.h.b16 %v694
        %v2149 = vunpack.c.l.b16 %v695
        %v2150 = vunpack.c.h.b16 %v695
        %v2151 = vunpack.c.l.b16 %v696
        %v2152 = vunpack.c.h.b16 %v696
        %v2153 = vunpack.c.l.b16 %v697
        %v2154 = vunpack.c.h.b16 %v697
        %v2155 = vunpack.c.l.b16 %v698
        %v2156 = vunpack.c.h.b16 %v698
        %v2157 = vunpack.c.l.b16 %v699
        %v2158 = vunpack.c.h.b16 %v699
        %v2159 = vunpack.c.l.b16 %v700
        %v2160 = vunpack.c.h.b16 %v700
        %v2161 = vunpack.c.l.b16 %v701
        %v2162 = vunpack.c.h.b16 %v701
        %v2163 = vunpack.c.l.b16 %v702
        %v2164 = vunpack.c.h.b16 %v702
        %v2165 = vunpack.c.l.b16 %v703
        %v2166 = vunpack.c.h.b16 %v703
        %v2167 = vunpack.c.l.b16 %v704
        %v2168 = vunpack.c.h.b16 %v704
        %v2169 = vunpack.c.l.b16 %v705
        %v2170 = vunpack.c.h.b16 %v705
        %v2171 = vunpack.c.l.b16 %v706
        %v2172 = vunpack.c.h.b16 %v706
        %v2173 = vunpack.c.l.b16 %v707
        %v2174 = vunpack.c.h.b16 %v707
        %v2175 = vunpack.c.l.b16 %v708
        %v2176 = vunpack.c.h.b16 %v708
        %v2177 = vunpack.c.l.b16 %v709
        %v2178 = vunpack.c.h.b16 %v709
        %v2179 = vunpack.c.l.b16 %v710
        %v2180 = vunpack.c.h.b16 %v710
        %v2181 = vunpack.c.l.b16 %v711
        %v2182 = vunpack.c.h.b16 %v711
        %v2183 = vunpack.c.l.b16 %v712
        %v2184 = vunpack.c.h.b16 %v712
        %v2185 = vunpack.c.l.b16 %v713
        %v2186 = vunpack.c.h.b16 %v713
        %v2187 = vunpack.c.l.b16 %v714
        %v2188 = vunpack.c.h.b16 %v714
        %v2189 = vunpack.c.l.b16 %v715
        %v2190 = vunpack.c.h.b16 %v715
        %v2191 = vunpack.c.l.b16 %v716
        %v2192 = vunpack.c.h.b16 %v716
        %v2193 = vunpack.c.l.b16 %v717
        %v2194 = vunpack.c.h.b16 %v717
        %v2195 = vunpack.c.l.b16 %v718
        %v2196 = vunpack.c.h.b16 %v718
        %v2197 = vunpack.c.l.b16 %v719
        %v2198 = vunpack.c.h.b16 %v719
        %v2199 = vunpack.c.l.b16 %v720
        %v2200 = vunpack.c.h.b16 %v720
        %v2201 = vunpack.c.l.b16 %v721
        %v2202 = vunpack.c.h.b16 %v721
        %v2203 = vunpack.c.l.b16 %v722
        %v2204 = vunpack.c.h.b16 %v722
        %v2205 = vunpack.c.l.b16 %v723
        %v2206 = vunpack.c.h.b16 %v723
        %v2207 = vunpack.c.l.b16 %v724
        %v2208 = vunpack.c.h.b16 %v724
        %v2209 = vunpack.c.l.b16 %v725
        %v2210 = vunpack.c.h.b16 %v725
        %v2211 = vunpack.c.l.b16 %v726
        %v2212 = vunpack.c.h.b16 %v726
        %v2213 = vunpack.c.l.b16 %v727
        %v2214 = vunpack.c.h.b16 %v727
        %v2215 = vunpack.c.l.b16 %v728
        %v2216 = vunpack.c.h.b16 %v728
        %v2217 = vunpack.c.l.b16 %v729
        %v2218 = vunpack.c.h.b16 %v729
        %v2219 = vunpack.c.l.b16 %v730
        %v2220 = vunpack.c.h.b16 %v730
        %v2221 = vunpack.c.l.b16 %v731
        %v2222 = vunpack.c.h.b16 %v731
        %v2223 = vunpack.c.l.b16 %v732
        %v2224 = vunpack.c.h.b16 %v732
        %v2225 = vunpack.c.l.b16 %v733
        %v2226 = vunpack.c.h.b16 %v733
        %v2227 = vunpack.c.l.b16 %v734
        %v2228 = vunpack.c.h.b16 %v734
        %v2229 = vunpack.c.l.b16 %v735
        %v2230 = vunpack.c.h.b16 %v735
        %v2231 = vunpack.c.l.b16 %v736
        %v2232 = vunpack.c.h.b16 %v736
        %v2233 = vunpack.c.l.b16 %v737
        %v2234 = vunpack.c.h.b16 %v737
        %v2235 = vunpack.c.l.b16 %v738
        %v2236 = vunpack.c.h.b16 %v738
        %v2237 = vunpack.c.l.b16 %v739
        %v2238 = vunpack.c.h.b16 %v739
        %v2239 = vunpack.c.l.b16 %v740
        %v2240 = vunpack.c.h.b16 %v740
        %v2241 = vunpack.c.l.b16 %v741
        %v2242 = vunpack.c.h.b16 %v741
        %v2243 = vunpack.c.l.b16 %v742
        %v2244 = vunpack.c.h.b16 %v742
        %v2245 = vunpack.c.l.b16 %v743
        %v2246 = vunpack.c.h.b16 %v743
        %v2247 = vunpack.c.l.b16 %v744
        %v2248 = vunpack.c.h.b16 %v744
        %v2249 = vunpack.c.l.b16 %v745
        %v2250 = vunpack.c.h.b16 %v745
        %v2251 = vunpack.c.l.b16 %v746
        %v2252 = vunpack.c.h.b16 %v746
        %v2253 = vunpack.c.l.b16 %v747
        %v2254 = vunpack.c.h.b16 %v747
        %v2255 = vunpack.c.l.b16 %v748
        %v2256 = vunpack.c.h.b16 %v748
        %v2257 = vunpack.c.l.b16 %v749
        %v2258 = vunpack.c.h.b16 %v749
        %v2259 = vunpack.c.l.b16 %v750
        %v2260 = vunpack.c.h.b16 %v750
        %v2261 = vunpack.c.l.b16 %v751
        %v2262 = vunpack.c.h.b16 %v751
        %v2263 = vunpack.c.l.b16 %v752
        %v2264 = vunpack.c.h.b16 %v752
        %v2265 = vunpack.c.l.b16 %v753
        %v2266 = vunpack.c.h.b16 %v753
        %v2267 = vunpack.c.l.b16 %v754
        %v2268 = vunpack.c.h.b16 %v754
        %v2269 = vunpack.c.l.b16 %v755
        %v2270 = vunpack.c.h.b16 %v755
        %v2271 = vunpack.c.l.b16 %v756
        %v2272 = vunpack.c.h.b16 %v756
        %v2273 = vunpack.c.l.b16 %v757
        %v2274 = vunpack.c.h.b16 %v757
        %v2275 = vunpack.c.l.b16 %v758
        %v2276 = vunpack.c.h.b16 %v758
        %v2277 = vunpack.c.l.b16 %v759
        %v2278 = vunpack.c.h.b16 %v759
        %v2279 = vunpack.c.l.b16 %v760
        %v2280 = vunpack.c.h.b16 %v760
        %v2281 = vunpack.c.l.b16 %v761
        %v2282 = vunpack.c.h.b16 %v761
        %v2283 = vunpack.c.l.b16 %v762
        %v2284 = vunpack.c.h.b16 %v762
        %v2285 = vunpack.c.l.b16 %v763
        %v2286 = vunpack.c.h.b16 %v763
        %v2287 = vunpack.c.l.b16 %v764
        %v2288 = vunpack.c.h.b16 %v764
        %v2289 = vunpack.c.l.b16 %v765
        %v2290 = vunpack.c.h.b16 %v765
        %v2291 = vunpack.c.l.b16 %v766
        %v2292 = vunpack.c.h.b16 %v766
        %v2293 = vunpack.c.l.b16 %v767
        %v2294 = vunpack.c.h.b16 %v767
        %v2295 = vunpack.c.l.b16 %v768
        %v2296 = vunpack.c.h.b16 %v768
        %v2297 = vunpack.c.l.b16 %v769
        %v2298 = vunpack.c.h.b16 %v769
        %v2299 = vunpack.c.l.b16 %v770
        %v2300 = vunpack.c.h.b16 %v770
        %v2301 = vunpack.c.l.b16 %v771
        %v2302 = vunpack.c.h.b16 %v771
        %v2303 = vunpack.c.l.b16 %v772
        %v2304 = vunpack.c.h.b16 %v772
        %v2305 = vunpack.c.l.b16 %v773
        %v2306 = vunpack.c.h.b16 %v773
        %v2307 = vunpack.c.l.b16 %v774
        %v2308 = vunpack.c.h.b16 %v774
        %v2309 = vunpack.c.l.b16 %v775
        %v2310 = vunpack.c.h.b16 %v775
        %v2311 = vunpack.c.l.b16 %v776
        %v2312 = vunpack.c.h.b16 %v776
        %v2313 = vunpack.c.l.b16 %v777
        %v2314 = vunpack.c.h.b16 %v777
        %v2315 = vunpack.c.l.b16 %v778
        %v2316 = vunpack.c.h.b16 %v778
        %v2317 = vunpack.c.l.b16 %v779
        %v2318 = vunpack.c.h.b16 %v779
        %v2319 = vunpack.c.l.b16 %v780
        %v2320 = vunpack.c.h.b16 %v780
        %v2321 = vpack.c.b16 %v1313, %v1297
        %v2322 = vpack.c.b16 %v1314, %v1298
        %v2323 = vpack.c.b16 %v1315, %v1299
        %v2324 = vpack.c.b16 %v1316, %v1300
        %v2325 = vpack.c.b16 %v1317, %v1301
        %v2326 = vpack.c.b16 %v1318, %v1302
        %v2327 = vpack.c.b16 %v1319, %v1303
        %v2328 = vpack.c.b16 %v1320, %v1304
        %v2329 = vpack.c.b16 %v1321, %v1305
        %v2330 = vpack.c.b16 %v1322, %v1306
        %v2331 = vpack.c.b16 %v1323, %v1307
        %v2332 = vpack.c.b16 %v1324, %v1308
        %v2333 = vpack.c.b16 %v1325, %v1309
        %v2334 = vpack.c.b16 %v1326, %v1310
        %v2335 = vpack.c.b16 %v1327, %v1311
        %v2336 = vpack.c.b16 %v1328, %v1312
        %v2337 = vpack.c.b16 %v1345, %v1329
        %v2338 = vpack.c.b16 %v1346, %v1330
        %v2339 = vpack.c.b16 %v1347, %v1331
        %v2340 = vpack.c.b16 %v1348, %v1332
        %v2341 = vpack.c.b16 %v1349, %v1333
        %v2342 = vpack.c.b16 %v1350, %v1334
        %v2343 = vpack.c.b16 %v1351, %v1335
        %v2344 = vpack.c.b16 %v1352, %v1336
        %v2345 = vpack.c.b16 %v1353, %v1337
        %v2346 = vpack.c.b16 %v1354, %v1338
        %v2347 = vpack.c.b16 %v1355, %v1339
        %v2348 = vpack.c.b16 %v1356, %v1340
        %v2349 = vpack.c.b16 %v1357, %v1341
        %v2350 = vpack.c.b16 %v1358, %v1342
        %v2351 = vpack.c.b16 %v1359, %v1343
        %v2352 = vpack.c.b16 %v1360, %v1344
        %v2353 = vpack.c.b16 %v1377, %v1361
        %v2354 = vpack.c.b16 %v1378, %v1362
        %v2355 = vpack.c.b16 %v1379, %v1363
        %v2356 = vpack.c.b16 %v1380, %v1364
        %v2357 = vpack.c.b16 %v1381, %v1365
        %v2358 = vpack.c.b16 %v1382, %v1366
        %v2359 = vpack.c.b16 %v1383, %v1367
        %v2360 = vpack.c.b16 %v1384, %v1368
        %v2361 = vpack.c.b16 %v1385, %v1369
        %v2362 = vpack.c.b16 %v1386, %v1370
        %v2363 = vpack.c.b16 %v1387, %v1371
        %v2364 = vpack.c.b16 %v1388, %v1372
        %v2365 = vpack.c.b16 %v1389, %v1373
        %v2366 = vpack.c.b16 %v1390, %v1374
        %v2367 = vpack.c.b16 %v1391, %v1375
        %v2368 = vpack.c.b16 %v1392, %v1376
        %v2369 = vpack.c.b16 %v1409, %v1393
        %v2370 = vpack.c.b16 %v1410, %v1394
        %v2371 = vpack.c.b16 %v1411, %v1395
        %v2372 = vpack.c.b16 %v1412, %v1396
        %v2373 = vpack.c.b16 %v1413, %v1397
        %v2374 = vpack.c.b16 %v1414, %v1398
        %v2375 = vpack.c.b16 %v1415, %v1399
        %v2376 = vpack.c.b16 %v1416, %v1400
        %v2377 = vpack.c.b16 %v1417, %v1401
        %v2378 = vpack.c.b16 %v1418, %v1402
        %v2379 = vpack.c.b16 %v1419, %v1403
        %v2380 = vpack.c.b16 %v1420, %v1404
        %v2381 = vpack.c.b16 %v1421, %v1405
        %v2382 = vpack.c.b16 %v1422, %v1406
        %v2383 = vpack.c.b16 %v1423, %v1407
        %v2384 = vpack.c.b16 %v1424, %v1408
        %v2385 = vpack.c.b16 %v1441, %v1425
        %v2386 = vpack.c.b16 %v1442, %v1426
        %v2387 = vpack.c.b16 %v1443, %v1427
        %v2388 = vpack.c.b16 %v1444, %v1428
        %v2389 = vpack.c.b16 %v1445, %v1429
        %v2390 = vpack.c.b16 %v1446, %v1430
        %v2391 = vpack.c.b16 %v1447, %v1431
        %v2392 = vpack.c.b16 %v1448, %v1432
        %v2393 = vpack.c.b16 %v1449, %v1433
        %v2394 = vpack.c.b16 %v1450, %v1434
        %v2395 = vpack.c.b16 %v1451, %v1435
        %v2396 = vpack.c.b16 %v1452, %v1436
        %v2397 = vpack.c.b16 %v1453, %v1437
        %v2398 = vpack.c.b16 %v1454, %v1438
        %v2399 = vpack.c.b16 %v1455, %v1439
        %v2400 = vpack.c.b16 %v1456, %v1440
        %v2401 = vpack.c.b16 %v1473, %v1457
        %v2402 = vpack.c.b16 %v1474, %v1458
        %v2403 = vpack.c.b16 %v1475, %v1459
        %v2404 = vpack.c.b16 %v1476, %v1460
        %v2405 = vpack.c.b16 %v1477, %v1461
        %v2406 = vpack.c.b16 %v1478, %v1462
        %v2407 = vpack.c.b16 %v1479, %v1463
        %v2408 = vpack.c.b16 %v1480, %v1464
        %v2409 = vpack.c.b16 %v1481, %v1465
        %v2410 = vpack.c.b16 %v1482, %v1466
        %v2411 = vpack.c.b16 %v1483, %v1467
        %v2412 = vpack.c.b16 %v1484, %v1468
        %v2413 = vpack.c.b16 %v1485, %v1469
        %v2414 = vpack.c.b16 %v1486, %v1470
        %v2415 = vpack.c.b16 %v1487, %v1471
        %v2416 = vpack.c.b16 %v1488, %v1472
        %v2417 = vpack.c.b16 %v1505, %v1489
        %v2418 = vpack.c.b16 %v1506, %v1490
        %v2419 = vpack.c.b16 %v1507, %v1491
        %v2420 = vpack.c.b16 %v1508, %v1492
        %v2421 = vpack.c.b16 %v1509, %v1493
        %v2422 = vpack.c.b16 %v1510, %v1494
        %v2423 = vpack.c.b16 %v1511, %v1495
        %v2424 = vpack.c.b16 %v1512, %v1496
        %v2425 = vpack.c.b16 %v1513, %v1497
        %v2426 = vpack.c.b16 %v1514, %v1498
        %v2427 = vpack.c.b16 %v1515, %v1499
        %v2428 = vpack.c.b16 %v1516, %v1500
        %v2429 = vpack.c.b16 %v1517, %v1501
        %v2430 = vpack.c.b16 %v1518, %v1502
        %v2431 = vpack.c.b16 %v1519, %v1503
        %v2432 = vpack.c.b16 %v1520, %v1504
        %v2433 = vpack.c.b16 %v1537, %v1521
        %v2434 = vpack.c.b16 %v1538, %v1522
        %v2435 = vpack.c.b16 %v1539, %v1523
        %v2436 = vpack.c.b16 %v1540, %v1524
        %v2437 = vpack.c.b16 %v1541, %v1525
        %v2438 = vpack.c.b16 %v1542, %v1526
        %v2439 = vpack.c.b16 %v1543, %v1527
        %v2440 = vpack.c.b16 %v1544, %v1528
        %v2441 = vpack.c.b16 %v1545, %v1529
        %v2442 = vpack.c.b16 %v1546, %v1530
        %v2443 = vpack.c.b16 %v1547, %v1531
        %v2444 = vpack.c.b16 %v1548, %v1532
        %v2445 = vpack.c.b16 %v1549, %v1533
        %v2446 = vpack.c.b16 %v1550, %v1534
        %v2447 = vpack.c.b16 %v1551, %v1535
        %v2448 = vpack.c.b16 %v1552, %v1536
        %v2449 = vpack.c.b16 %v1569, %v1553
        %v2450 = vpack.c.b16 %v1570, %v1554
        %v2451 = vpack.c.b16 %v1571, %v1555
        %v2452 = vpack.c.b16 %v1572, %v1556
        %v2453 = vpack.c.b16 %v1573, %v1557
        %v2454 = vpack.c.b16 %v1574, %v1558
        %v2455 = vpack.c.b16 %v1575, %v1559
        %v2456 = vpack.c.b16 %v1576, %v1560
        %v2457 = vpack.c.b16 %v1577, %v1561
        %v2458 = vpack.c.b16 %v1578, %v1562
        %v2459 = vpack.c.b16 %v1579, %v1563
        %v2460 = vpack.c.b16 %v1580, %v1564
        %v2461 = vpack.c.b16 %v1581, %v1565
        %v2462 = vpack.c.b16 %v1582, %v1566
        %v2463 = vpack.c.b16 %v1583, %v1567
        %v2464 = vpack.c.b16 %v1584, %v1568
        %v2465 = vpack.c.b16 %v1601, %v1585
        %v2466 = vpack.c.b16 %v1602, %v1586
        %v2467 = vpack.c.b16 %v1603, %v1587
        %v2468 = vpack.c.b16 %v1604, %v1588
        %v2469 = vpack.c.b16 %v1605, %v1589
        %v2470 = vpack.c.b16 %v1606, %v1590
        %v2471 = vpack.c.b16 %v1607, %v1591
        %v2472 = vpack.c.b16 %v1608, %v1592
        %v2473 = vpack.c.b16 %v1609, %v1593
        %v2474 = vpack.c.b16 %v1610, %v1594
        %v2475 = vpack.c.b16 %v1611, %v1595
        %v2476 = vpack.c.b16 %v1612, %v1596
        %v2477 = vpack.c.b16 %v1613, %v1597
        %v2478 = vpack.c.b16 %v1614, %v1598
        %v2479 = vpack.c.b16 %v1615, %v1599
        %v2480 = vpack.c.b16 %v1616, %v1600
        %v2481 = vpack.c.b16 %v1633, %v1617
        %v2482 = vpack.c.b16 %v1634, %v1618
        %v2483 = vpack.c.b16 %v1635, %v1619
        %v2484 = vpack.c.b16 %v1636, %v1620
        %v2485 = vpack.c.b16 %v1637, %v1621
        %v2486 = vpack.c.b16 %v1638, %v1622
        %v2487 = vpack.c.b16 %v1639, %v1623
        %v2488 = vpack.c.b16 %v1640, %v1624
        %v2489 = vpack.c.b16 %v1641, %v1625
        %v2490 = vpack.c.b16 %v1642, %v1626
        %v2491 = vpack.c.b16 %v1643, %v1627
        %v2492 = vpack.c.b16 %v1644, %v1628
        %v2493 = vpack.c.b16 %v1645, %v1629
        %v2494 = vpack.c.b16 %v1646, %v1630
        %v2495 = vpack.c.b16 %v1647, %v1631
        %v2496 = vpack.c.b16 %v1648, %v1632
        %v2497 = vpack.c.b16 %v1665, %v1649
        %v2498 = vpack.c.b16 %v1666, %v1650
        %v2499 = vpack.c.b16 %v1667, %v1651
        %v2500 = vpack.c.b16 %v1668, %v1652
        %v2501 = vpack.c.b16 %v1669, %v1653
        %v2502 = vpack.c.b16 %v1670, %v1654
        %v2503 = vpack.c.b16 %v1671, %v1655
        %v2504 = vpack.c.b16 %v1672, %v1656
        %v2505 = vpack.c.b16 %v1673, %v1657
        %v2506 = vpack.c.b16 %v1674, %v1658
        %v2507 = vpack.c.b16 %v1675, %v1659
        %v2508 = vpack.c.b16 %v1676, %v1660
        %v2509 = vpack.c.b16 %v1677, %v1661
        %v2510 = vpack.c.b16 %v1678, %v1662
        %v2511 = vpack.c.b16 %v1679, %v1663
        %v2512 = vpack.c.b16 %v1680, %v1664
        %v2513 = vpack.c.b16 %v1697, %v1681
        %v2514 = vpack.c.b16 %v1698, %v1682
        %v2515 = vpack.c.b16 %v1699, %v1683
        %v2516 = vpack.c.b16 %v1700, %v1684
        %v2517 = vpack.c.b16 %v1701, %v1685
        %v2518 = vpack.c.b16 %v1702, %v1686
        %v2519 = vpack.c.b16 %v1703, %v1687
        %v2520 = vpack.c.b16 %v1704, %v1688
        %v2521 = vpack.c.b16 %v1705, %v1689
        %v2522 = vpack.c.b16 %v1706, %v1690
        %v2523 = vpack.c.b16 %v1707, %v1691
        %v2524 = vpack.c.b16 %v1708, %v1692
        %v2525 = vpack.c.b16 %v1709, %v1693
        %v2526 = vpack.c.b16 %v1710, %v1694
        %v2527 = vpack.c.b16 %v1711, %v1695
        %v2528 = vpack.c.b16 %v1712, %v1696
        %v2529 = vpack.c.b16 %v1729, %v1713
        %v2530 = vpack.c.b16 %v1730, %v1714
        %v2531 = vpack.c.b16 %v1731, %v1715
        %v2532 = vpack.c.b16 %v1732, %v1716
        %v2533 = vpack.c.b16 %v1733, %v1717
        %v2534 = vpack.c.b16 %v1734, %v1718
        %v2535 = vpack.c.b16 %v1735, %v1719
        %v2536 = vpack.c.b16 %v1736, %v1720
        %v2537 = vpack.c.b16 %v1737, %v1721
        %v2538 = vpack.c.b16 %v1738, %v1722
        %v2539 = vpack.c.b16 %v1739, %v1723
        %v2540 = vpack.c.b16 %v1740, %v1724
        %v2541 = vpack.c.b16 %v1741, %v1725
        %v2542 = vpack.c.b16 %v1742, %v1726
        %v2543 = vpack.c.b16 %v1743, %v1727
        %v2544 = vpack.c.b16 %v1744, %v1728
        %v2545 = vpack.c.b16 %v1761, %v1745
        %v2546 = vpack.c.b16 %v1762, %v1746
        %v2547 = vpack.c.b16 %v1763, %v1747
        %v2548 = vpack.c.b16 %v1764, %v1748
        %v2549 = vpack.c.b16 %v1765, %v1749
        %v2550 = vpack.c.b16 %v1766, %v1750
        %v2551 = vpack.c.b16 %v1767, %v1751
        %v2552 = vpack.c.b16 %v1768, %v1752
        %v2553 = vpack.c.b16 %v1769, %v1753
        %v2554 = vpack.c.b16 %v1770, %v1754
        %v2555 = vpack.c.b16 %v1771, %v1755
        %v2556 = vpack.c.b16 %v1772, %v1756
        %v2557 = vpack.c.b16 %v1773, %v1757
        %v2558 = vpack.c.b16 %v1774, %v1758
        %v2559 = vpack.c.b16 %v1775, %v1759
        %v2560 = vpack.c.b16 %v1776, %v1760
        %v2561 = vpack.c.b16 %v1793, %v1777
        %v2562 = vpack.c.b16 %v1794, %v1778
        %v2563 = vpack.c.b16 %v1795, %v1779
        %v2564 = vpack.c.b16 %v1796, %v1780
        %v2565 = vpack.c.b16 %v1797, %v1781
        %v2566 = vpack.c.b16 %v1798, %v1782
        %v2567 = vpack.c.b16 %v1799, %v1783
        %v2568 = vpack.c.b16 %v1800, %v1784
        %v2569 = vpack.c.b16 %v1801, %v1785
        %v2570 = vpack.c.b16 %v1802, %v1786
        %v2571 = vpack.c.b16 %v1803, %v1787
        %v2572 = vpack.c.b16 %v1804, %v1788
        %v2573 = vpack.c.b16 %v1805, %v1789
        %v2574 = vpack.c.b16 %v1806, %v1790
        %v2575 = vpack.c.b16 %v1807, %v1791
        %v2576 = vpack.c.b16 %v1808, %v1792
        %v2577 = vpack.c.b16 %v1825, %v1809
        %v2578 = vpack.c.b16 %v1826, %v1810
        %v2579 = vpack.c.b16 %v1827, %v1811
        %v2580 = vpack.c.b16 %v1828, %v1812
        %v2581 = vpack.c.b16 %v1829, %v1813
        %v2582 = vpack.c.b16 %v1830, %v1814
        %v2583 = vpack.c.b16 %v1831, %v1815
        %v2584 = vpack.c.b16 %v1832, %v1816
        %v2585 = vpack.c.b16 %v1833, %v1817
        %v2586 = vpack.c.b16 %v1834, %v1818
        %v2587 = vpack.c.b16 %v1835, %v1819
        %v2588 = vpack.c.b16 %v1836, %v1820
        %v2589 = vpack.c.b16 %v1837, %v1821
        %v2590 = vpack.c.b16 %v1838, %v1822
        %v2591 = vpack.c.b16 %v1839, %v1823
        %v2592 = vpack.c.b16 %v1840, %v1824
        %v2593 = vpack.c.b16 %v1857, %v1841
        %v2594 = vpack.c.b16 %v1858, %v1842
        %v2595 = vpack.c.b16 %v1859, %v1843
        %v2596 = vpack.c.b16 %v1860, %v1844
        %v2597 = vpack.c.b16 %v1861, %v1845
        %v2598 = vpack.c.b16 %v1862, %v1846
        %v2599 = vpack.c.b16 %v1863, %v1847
        %v2600 = vpack.c.b16 %v1864, %v1848
        %v2601 = vpack.c.b16 %v1865, %v1849
        %v2602 = vpack.c.b16 %v1866, %v1850
        %v2603 = vpack.c.b16 %v1867, %v1851
        %v2604 = vpack.c.b16 %v1868, %v1852
        %v2605 = vpack.c.b16 %v1869, %v1853
        %v2606 = vpack.c.b16 %v1870, %v1854
        %v2607 = vpack.c.b16 %v1871, %v1855
        %v2608 = vpack.c.b16 %v1872, %v1856
        %v2609 = vpack.c.b16 %v1889, %v1873
        %v2610 = vpack.c.b16 %v1890, %v1874
        %v2611 = vpack.c.b16 %v1891, %v1875
        %v2612 = vpack.c.b16 %v1892, %v1876
        %v2613 = vpack.c.b16 %v1893, %v1877
        %v2614 = vpack.c.b16 %v1894, %v1878
        %v2615 = vpack.c.b16 %v1895, %v1879
        %v2616 = vpack.c.b16 %v1896, %v1880
        %v2617 = vpack.c.b16 %v1897, %v1881
        %v2618 = vpack.c.b16 %v1898, %v1882
        %v2619 = vpack.c.b16 %v1899, %v1883
        %v2620 = vpack.c.b16 %v1900, %v1884
        %v2621 = vpack.c.b16 %v1901, %v1885
        %v2622 = vpack.c.b16 %v1902, %v1886
        %v2623 = vpack.c.b16 %v1903, %v1887
        %v2624 = vpack.c.b16 %v1904, %v1888
        %v2625 = vpack.c.b16 %v1921, %v1905
        %v2626 = vpack.c.b16 %v1922, %v1906
        %v2627 = vpack.c.b16 %v1923, %v1907
        %v2628 = vpack.c.b16 %v1924, %v1908
        %v2629 = vpack.c.b16 %v1925, %v1909
        %v2630 = vpack.c.b16 %v1926, %v1910
        %v2631 = vpack.c.b16 %v1927, %v1911
        %v2632 = vpack.c.b16 %v1928, %v1912
        %v2633 = vpack.c.b16 %v1929, %v1913
        %v2634 = vpack.c.b16 %v1930, %v1914
        %v2635 = vpack.c.b16 %v1931, %v1915
        %v2636 = vpack.c.b16 %v1932, %v1916
        %v2637 = vpack.c.b16 %v1933, %v1917
        %v2638 = vpack.c.b16 %v1934, %v1918
        %v2639 = vpack.c.b16 %v1935, %v1919
        %v2640 = vpack.c.b16 %v1936, %v1920
        %v2641 = vpack.c.b16 %v1953, %v1937
        %v2642 = vpack.c.b16 %v1954, %v1938
        %v2643 = vpack.c.b16 %v1955, %v1939
        %v2644 = vpack.c.b16 %v1956, %v1940
        %v2645 = vpack.c.b16 %v1957, %v1941
        %v2646 = vpack.c.b16 %v1958, %v1942
        %v2647 = vpack.c.b16 %v1959, %v1943
        %v2648 = vpack.c.b16 %v1960, %v1944
        %v2649 = vpack.c.b16 %v1961, %v1945
        %v2650 = vpack.c.b16 %v1962, %v1946
        %v2651 = vpack.c.b16 %v1963, %v1947
        %v2652 = vpack.c.b16 %v1964, %v1948
        %v2653 = vpack.c.b16 %v1965, %v1949
        %v2654 = vpack.c.b16 %v1966, %v1950
        %v2655 = vpack.c.b16 %v1967, %v1951
        %v2656 = vpack.c.b16 %v1968, %v1952
        %v2657 = vpack.c.b16 %v1985, %v1969
        %v2658 = vpack.c.b16 %v1986, %v1970
        %v2659 = vpack.c.b16 %v1987, %v1971
        %v2660 = vpack.c.b16 %v1988, %v1972
        %v2661 = vpack.c.b16 %v1989, %v1973
        %v2662 = vpack.c.b16 %v1990, %v1974
        %v2663 = vpack.c.b16 %v1991, %v1975
        %v2664 = vpack.c.b16 %v1992, %v1976
        %v2665 = vpack.c.b16 %v1993, %v1977
        %v2666 = vpack.c.b16 %v1994, %v1978
        %v2667 = vpack.c.b16 %v1995, %v1979
        %v2668 = vpack.c.b16 %v1996, %v1980
        %v2669 = vpack.c.b16 %v1997, %v1981
        %v2670 = vpack.c.b16 %v1998, %v1982
        %v2671 = vpack.c.b16 %v1999, %v1983
        %v2672 = vpack.c.b16 %v2000, %v1984
        %v2673 = vpack.c.b16 %v2017, %v2001
        %v2674 = vpack.c.b16 %v2018, %v2002
        %v2675 = vpack.c.b16 %v2019, %v2003
        %v2676 = vpack.c.b16 %v2020, %v2004
        %v2677 = vpack.c.b16 %v2021, %v2005
        %v2678 = vpack.c.b16 %v2022, %v2006
        %v2679 = vpack.c.b16 %v2023, %v2007
        %v2680 = vpack.c.b16 %v2024, %v2008
        %v2681 = vpack.c.b16 %v2025, %v2009
        %v2682 = vpack.c.b16 %v2026, %v2010
        %v2683 = vpack.c.b16 %v2027, %v2011
        %v2684 = vpack.c.b16 %v2028, %v2012
        %v2685 = vpack.c.b16 %v2029, %v2013
        %v2686 = vpack.c.b16 %v2030, %v2014
        %v2687 = vpack.c.b16 %v2031, %v2015
        %v2688 = vpack.c.b16 %v2032, %v2016
        %v2689 = vpack.c.b16 %v2049, %v2033
        %v2690 = vpack.c.b16 %v2050, %v2034
        %v2691 = vpack.c.b16 %v2051, %v2035
        %v2692 = vpack.c.b16 %v2052, %v2036
        %v2693 = vpack.c.b16 %v2053, %v2037
        %v2694 = vpack.c.b16 %v2054, %v2038
        %v2695 = vpack.c.b16 %v2055, %v2039
        %v2696 = vpack.c.b16 %v2056, %v2040
        %v2697 = vpack.c.b16 %v2057, %v2041
        %v2698 = vpack.c.b16 %v2058, %v2042
        %v2699 = vpack.c.b16 %v2059, %v2043
        %v2700 = vpack.c.b16 %v2060, %v2044
        %v2701 = vpack.c.b16 %v2061, %v2045
        %v2702 = vpack.c.b16 %v2062, %v2046
        %v2703 = vpack.c.b16 %v2063, %v2047
        %v2704 = vpack.c.b16 %v2064, %v2048
        %v2705 = vpack.c.b16 %v2081, %v2065
        %v2706 = vpack.c.b16 %v2082, %v2066
        %v2707 = vpack.c.b16 %v2083, %v2067
        %v2708 = vpack.c.b16 %v2084, %v2068
        %v2709 = vpack.c.b16 %v2085, %v2069
        %v2710 = vpack.c.b16 %v2086, %v2070
        %v2711 = vpack.c.b16 %v2087, %v2071
        %v2712 = vpack.c.b16 %v2088, %v2072
        %v2713 = vpack.c.b16 %v2089, %v2073
        %v2714 = vpack.c.b16 %v2090, %v2074
        %v2715 = vpack.c.b16 %v2091, %v2075
        %v2716 = vpack.c.b16 %v2092, %v2076
        %v2717 = vpack.c.b16 %v2093, %v2077
        %v2718 = vpack.c.b16 %v2094, %v2078
        %v2719 = vpack.c.b16 %v2095, %v2079
        %v2720 = vpack.c.b16 %v2096, %v2080
        %v2721 = vpack.c.b16 %v2113, %v2097
        %v2722 = vpack.c.b16 %v2114, %v2098
        %v2723 = vpack.c.b16 %v2115, %v2099
        %v2724 = vpack.c.b16 %v2116, %v2100
        %v2725 = vpack.c.b16 %v2117, %v2101
        %v2726 = vpack.c.b16 %v2118, %v2102
        %v2727 = vpack.c.b16 %v2119, %v2103
        %v2728 = vpack.c.b16 %v2120, %v2104
        %v2729 = vpack.c.b16 %v2121, %v2105
        %v2730 = vpack.c.b16 %v2122, %v2106
        %v2731 = vpack.c.b16 %v2123, %v2107
        %v2732 = vpack.c.b16 %v2124, %v2108
        %v2733 = vpack.c.b16 %v2125, %v2109
        %v2734 = vpack.c.b16 %v2126, %v2110
        %v2735 = vpack.c.b16 %v2127, %v2111
        %v2736 = vpack.c.b16 %v2128, %v2112
        %v2737 = vpack.c.b16 %v2145, %v2129
        %v2738 = vpack.c.b16 %v2146, %v2130
        %v2739 = vpack.c.b16 %v2147, %v2131
        %v2740 = vpack.c.b16 %v2148, %v2132
        %v2741 = vpack.c.b16 %v2149, %v2133
        %v2742 = vpack.c.b16 %v2150, %v2134
        %v2743 = vpack.c.b16 %v2151, %v2135
        %v2744 = vpack.c.b16 %v2152, %v2136
        %v2745 = vpack.c.b16 %v2153, %v2137
        %v2746 = vpack.c.b16 %v2154, %v2138
        %v2747 = vpack.c.b16 %v2155, %v2139
        %v2748 = vpack.c.b16 %v2156, %v2140
        %v2749 = vpack.c.b16 %v2157, %v2141
        %v2750 = vpack.c.b16 %v2158, %v2142
        %v2751 = vpack.c.b16 %v2159, %v2143
        %v2752 = vpack.c.b16 %v2160, %v2144
        %v2753 = vpack.c.b16 %v2177, %v2161
        %v2754 = vpack.c.b16 %v2178, %v2162
        %v2755 = vpack.c.b16 %v2179, %v2163
        %v2756 = vpack.c.b16 %v2180, %v2164
        %v2757 = vpack.c.b16 %v2181, %v2165
        %v2758 = vpack.c.b16 %v2182, %v2166
        %v2759 = vpack.c.b16 %v2183, %v2167
        %v2760 = vpack.c.b16 %v2184, %v2168
        %v2761 = vpack.c.b16 %v2185, %v2169
        %v2762 = vpack.c.b16 %v2186, %v2170
        %v2763 = vpack.c.b16 %v2187, %v2171
        %v2764 = vpack.c.b16 %v2188, %v2172
        %v2765 = vpack.c.b16 %v2189, %v2173
        %v2766 = vpack.c.b16 %v2190, %v2174
        %v2767 = vpack.c.b16 %v2191, %v2175
        %v2768 = vpack.c.b16 %v2192, %v2176
        %v2769 = vpack.c.b16 %v2209, %v2193
        %v2770 = vpack.c.b16 %v2210, %v2194
        %v2771 = vpack.c.b16 %v2211, %v2195
        %v2772 = vpack.c.b16 %v2212, %v2196
        %v2773 = vpack.c.b16 %v2213, %v2197
        %v2774 = vpack.c.b16 %v2214, %v2198
        %v2775 = vpack.c.b16 %v2215, %v2199
        %v2776 = vpack.c.b16 %v2216, %v2200
        %v2777 = vpack.c.b16 %v2217, %v2201
        %v2778 = vpack.c.b16 %v2218, %v2202
        %v2779 = vpack.c.b16 %v2219, %v2203
        %v2780 = vpack.c.b16 %v2220, %v2204
        %v2781 = vpack.c.b16 %v2221, %v2205
        %v2782 = vpack.c.b16 %v2222, %v2206
        %v2783 = vpack.c.b16 %v2223, %v2207
        %v2784 = vpack.c.b16 %v2224, %v2208
        %v2785 = vpack.c.b16 %v2241, %v2225
        %v2786 = vpack.c.b16 %v2242, %v2226
        %v2787 = vpack.c.b16 %v2243, %v2227
        %v2788 = vpack.c.b16 %v2244, %v2228
        %v2789 = vpack.c.b16 %v2245, %v2229
        %v2790 = vpack.c.b16 %v2246, %v2230
        %v2791 = vpack.c.b16 %v2247, %v2231
        %v2792 = vpack.c.b16 %v2248, %v2232
        %v2793 = vpack.c.b16 %v2249, %v2233
        %v2794 = vpack.c.b16 %v2250, %v2234
        %v2795 = vpack.c.b16 %v2251, %v2235
        %v2796 = vpack.c.b16 %v2252, %v2236
        %v2797 = vpack.c.b16 %v2253, %v2237
        %v2798 = vpack.c.b16 %v2254, %v2238
        %v2799 = vpack.c.b16 %v2255, %v2239
        %v2800 = vpack.c.b16 %v2256, %v2240
        %v2801 = vpack.c.b16 %v2273, %v2257
        %v2802 = vpack.c.b16 %v2274, %v2258
        %v2803 = vpack.c.b16 %v2275, %v2259
        %v2804 = vpack.c.b16 %v2276, %v2260
        %v2805 = vpack.c.b16 %v2277, %v2261
        %v2806 = vpack.c.b16 %v2278, %v2262
        %v2807 = vpack.c.b16 %v2279, %v2263
        %v2808 = vpack.c.b16 %v2280, %v2264
        %v2809 = vpack.c.b16 %v2281, %v2265
        %v2810 = vpack.c.b16 %v2282, %v2266
        %v2811 = vpack.c.b16 %v2283, %v2267
        %v2812 = vpack.c.b16 %v2284, %v2268
        %v2813 = vpack.c.b16 %v2285, %v2269
        %v2814 = vpack.c.b16 %v2286, %v2270
        %v2815 = vpack.c.b16 %v2287, %v2271
        %v2816 = vpack.c.b16 %v2288, %v2272
        %v2817 = vpack.c.b16 %v2305, %v2289
        %v2818 = vpack.c.b16 %v2306, %v2290
        %v2819 = vpack.c.b16 %v2307, %v2291
        %v2820 = vpack.c.b16 %v2308, %v2292
        %v2821 = vpack.c.b16 %v2309, %v2293
        %v2822 = vpack.c.b16 %v2310, %v2294
        %v2823 = vpack.c.b16 %v2311, %v2295
        %v2824 = vpack.c.b16 %v2312, %v2296
        %v2825 = vpack.c.b16 %v2313, %v2297
        %v2826 = vpack.c.b16 %v2314, %v2298
        %v2827 = vpack.c.b16 %v2315, %v2299
        %v2828 = vpack.c.b16 %v2316, %v2300
        %v2829 = vpack.c.b16 %v2317, %v2301
        %v2830 = vpack.c.b16 %v2318, %v2302
        %v2831 = vpack.c.b16 %v2319, %v2303
        %v2832 = vpack.c.b16 %v2320, %v2304
        %3345 = vmatpush.bf16.msra.mxu0 %v2433
        %3346 = vmatpush.bf16.msra.mxu0 %v2417
        %3347 = vmatpush.bf16.msra.mxu0 %v2401
        %3348 = vmatpush.bf16.msra.mxu0 %v2385
        %3349 = vmatpush.bf16.msra.mxu0 %v2369
        %3350 = vmatpush.bf16.msra.mxu0 %v2353
        %3351 = vmatpush.bf16.msra.mxu0 %v2337
        %3352 = vmatpush.bf16.msra.mxu0 %v2321
        %3353 = vmatmul.bf16.gmra.mxu0 %v781
        %v3354 = vpop.f32.mrf.mxu0
        %v3355 = vadd.f32 0.0, %v3354
        %v3356 = vpop.f32.mrf.mxu0
        %3357 = vdwg.mxu0
        %3358 = vmatpush.bf16.msra.mxu0 %v2561
        %3359 = vmatpush.bf16.msra.mxu0 %v2545
        %3360 = vmatpush.bf16.msra.mxu0 %v2529
        %3361 = vmatpush.bf16.msra.mxu0 %v2513
        %3362 = vmatpush.bf16.msra.mxu0 %v2497
        %3363 = vmatpush.bf16.msra.mxu0 %v2481
        %3364 = vmatpush.bf16.msra.mxu0 %v2465
        %3365 = vmatpush.bf16.msra.mxu0 %v2449
        %3366 = vmatmul.bf16.gmra.mxu0 %v782
        %v3367 = vpop.f32.mrf.mxu0
        %v3368 = vadd.f32 %v3355, %v3367
        %v3369 = vpop.f32.mrf.mxu0
        %3370 = vdwg.mxu0
        %3371 = vmatpush.bf16.msra.mxu0 %v2689
        %3372 = vmatpush.bf16.msra.mxu0 %v2673
        %3373 = vmatpush.bf16.msra.mxu0 %v2657
        %3374 = vmatpush.bf16.msra.mxu0 %v2641
        %3375 = vmatpush.bf16.msra.mxu0 %v2625
        %3376 = vmatpush.bf16.msra.mxu0 %v2609
        %3377 = vmatpush.bf16.msra.mxu0 %v2593
        %3378 = vmatpush.bf16.msra.mxu0 %v2577
        %3379 = vmatmul.bf16.gmra.mxu0 %v783
        %v3380 = vpop.f32.mrf.mxu0
        %v3381 = vadd.f32 %v3368, %v3380
        %v3382 = vpop.f32.mrf.mxu0
        %3383 = vdwg.mxu0
        %3384 = vmatpush.bf16.msra.mxu0 %v2817
        %3385 = vmatpush.bf16.msra.mxu0 %v2801
        %3386 = vmatpush.bf16.msra.mxu0 %v2785
        %3387 = vmatpush.bf16.msra.mxu0 %v2769
        %3388 = vmatpush.bf16.msra.mxu0 %v2753
        %3389 = vmatpush.bf16.msra.mxu0 %v2737
        %3390 = vmatpush.bf16.msra.mxu0 %v2721
        %3391 = vmatpush.bf16.msra.mxu0 %v2705
        %3392 = vmatmul.bf16.gmra.mxu0 %v784
        %v3393 = vpop.f32.mrf.mxu0
        %v3394 = vadd.f32 %v3381, %v3393
        %v3395 = vpop.f32.mrf.mxu0
        %3396 = vdwg.mxu0
        %3397 = vmatpush.bf16.msra.mxu0 %v2434
        %3398 = vmatpush.bf16.msra.mxu0 %v2418
        %3399 = vmatpush.bf16.msra.mxu0 %v2402
        %3400 = vmatpush.bf16.msra.mxu0 %v2386
        %3401 = vmatpush.bf16.msra.mxu0 %v2370
        %3402 = vmatpush.bf16.msra.mxu0 %v2354
        %3403 = vmatpush.bf16.msra.mxu0 %v2338
        %3404 = vmatpush.bf16.msra.mxu0 %v2322
        %3405 = vmatmul.bf16.gmra.mxu0 %v781
        %v3406 = vpop.f32.mrf.mxu0
        %v3407 = vadd.f32 0.0, %v3406
        %v3408 = vpop.f32.mrf.mxu0
        %3409 = vdwg.mxu0
        %3410 = vmatpush.bf16.msra.mxu0 %v2562
        %3411 = vmatpush.bf16.msra.mxu0 %v2546
        %3412 = vmatpush.bf16.msra.mxu0 %v2530
        %3413 = vmatpush.bf16.msra.mxu0 %v2514
        %3414 = vmatpush.bf16.msra.mxu0 %v2498
        %3415 = vmatpush.bf16.msra.mxu0 %v2482
        %3416 = vmatpush.bf16.msra.mxu0 %v2466
        %3417 = vmatpush.bf16.msra.mxu0 %v2450
        %3418 = vmatmul.bf16.gmra.mxu0 %v782
        %v3419 = vpop.f32.mrf.mxu0
        %v3420 = vadd.f32 %v3407, %v3419
        %v3421 = vpop.f32.mrf.mxu0
        %3422 = vdwg.mxu0
        %3423 = vmatpush.bf16.msra.mxu0 %v2690
        %3424 = vmatpush.bf16.msra.mxu0 %v2674
        %3425 = vmatpush.bf16.msra.mxu0 %v2658
        %3426 = vmatpush.bf16.msra.mxu0 %v2642
        %3427 = vmatpush.bf16.msra.mxu0 %v2626
        %3428 = vmatpush.bf16.msra.mxu0 %v2610
        %3429 = vmatpush.bf16.msra.mxu0 %v2594
        %3430 = vmatpush.bf16.msra.mxu0 %v2578
        %3431 = vmatmul.bf16.gmra.mxu0 %v783
        %v3432 = vpop.f32.mrf.mxu0
        %v3433 = vadd.f32 %v3420, %v3432
        %v3434 = vpop.f32.mrf.mxu0
        %3435 = vdwg.mxu0
        %3436 = vmatpush.bf16.msra.mxu0 %v2818
        %3437 = vmatpush.bf16.msra.mxu0 %v2802
        %3438 = vmatpush.bf16.msra.mxu0 %v2786
        %3439 = vmatpush.bf16.msra.mxu0 %v2770
        %3440 = vmatpush.bf16.msra.mxu0 %v2754
        %3441 = vmatpush.bf16.msra.mxu0 %v2738
        %3442 = vmatpush.bf16.msra.mxu0 %v2722
        %3443 = vmatpush.bf16.msra.mxu0 %v2706
        %3444 = vmatmul.bf16.gmra.mxu0 %v784
        %v3445 = vpop.f32.mrf.mxu0
        %v3446 = vadd.f32 %v3433, %v3445
        %v3447 = vpop.f32.mrf.mxu0
        %3448 = vdwg.mxu0
        %3449 = vmatpush.bf16.msra.mxu0 %v2435
        %3450 = vmatpush.bf16.msra.mxu0 %v2419
        %3451 = vmatpush.bf16.msra.mxu0 %v2403
        %3452 = vmatpush.bf16.msra.mxu0 %v2387
        %3453 = vmatpush.bf16.msra.mxu0 %v2371
        %3454 = vmatpush.bf16.msra.mxu0 %v2355
        %3455 = vmatpush.bf16.msra.mxu0 %v2339
        %3456 = vmatpush.bf16.msra.mxu0 %v2323
        %3457 = vmatmul.bf16.gmra.mxu0 %v781
        %v3458 = vpop.f32.mrf.mxu0
        %v3459 = vadd.f32 0.0, %v3458
        %v3460 = vpop.f32.mrf.mxu0
        %3461 = vdwg.mxu0
        %3462 = vmatpush.bf16.msra.mxu0 %v2563
        %3463 = vmatpush.bf16.msra.mxu0 %v2547
        %3464 = vmatpush.bf16.msra.mxu0 %v2531
        %3465 = vmatpush.bf16.msra.mxu0 %v2515
        %3466 = vmatpush.bf16.msra.mxu0 %v2499
        %3467 = vmatpush.bf16.msra.mxu0 %v2483
        %3468 = vmatpush.bf16.msra.mxu0 %v2467
        %3469 = vmatpush.bf16.msra.mxu0 %v2451
        %3470 = vmatmul.bf16.gmra.mxu0 %v782
        %v3471 = vpop.f32.mrf.mxu0
        %v3472 = vadd.f32 %v3459, %v3471
        %v3473 = vpop.f32.mrf.mxu0
        %3474 = vdwg.mxu0
        %3475 = vmatpush.bf16.msra.mxu0 %v2691
        %3476 = vmatpush.bf16.msra.mxu0 %v2675
        %3477 = vmatpush.bf16.msra.mxu0 %v2659
        %3478 = vmatpush.bf16.msra.mxu0 %v2643
        %3479 = vmatpush.bf16.msra.mxu0 %v2627
        %3480 = vmatpush.bf16.msra.mxu0 %v2611
        %3481 = vmatpush.bf16.msra.mxu0 %v2595
        %3482 = vmatpush.bf16.msra.mxu0 %v2579
        %3483 = vmatmul.bf16.gmra.mxu0 %v783
        %v3484 = vpop.f32.mrf.mxu0
        %v3485 = vadd.f32 %v3472, %v3484
        %v3486 = vpop.f32.mrf.mxu0
        %3487 = vdwg.mxu0
        %3488 = vmatpush.bf16.msra.mxu0 %v2819
        %3489 = vmatpush.bf16.msra.mxu0 %v2803
        %3490 = vmatpush.bf16.msra.mxu0 %v2787
        %3491 = vmatpush.bf16.msra.mxu0 %v2771
        %3492 = vmatpush.bf16.msra.mxu0 %v2755
        %3493 = vmatpush.bf16.msra.mxu0 %v2739
        %3494 = vmatpush.bf16.msra.mxu0 %v2723
        %3495 = vmatpush.bf16.msra.mxu0 %v2707
        %3496 = vmatmul.bf16.gmra.mxu0 %v784
        %v3497 = vpop.f32.mrf.mxu0
        %v3498 = vadd.f32 %v3485, %v3497
        %v3499 = vpop.f32.mrf.mxu0
        %3500 = vdwg.mxu0
        %3501 = vmatpush.bf16.msra.mxu0 %v2436
        %3502 = vmatpush.bf16.msra.mxu0 %v2420
        %3503 = vmatpush.bf16.msra.mxu0 %v2404
        %3504 = vmatpush.bf16.msra.mxu0 %v2388
        %3505 = vmatpush.bf16.msra.mxu0 %v2372
        %3506 = vmatpush.bf16.msra.mxu0 %v2356
        %3507 = vmatpush.bf16.msra.mxu0 %v2340
        %3508 = vmatpush.bf16.msra.mxu0 %v2324
        %3509 = vmatmul.bf16.gmra.mxu0 %v781
        %v3510 = vpop.f32.mrf.mxu0
        %v3511 = vadd.f32 0.0, %v3510
        %v3512 = vpop.f32.mrf.mxu0
        %3513 = vdwg.mxu0
        %3514 = vmatpush.bf16.msra.mxu0 %v2564
        %3515 = vmatpush.bf16.msra.mxu0 %v2548
        %3516 = vmatpush.bf16.msra.mxu0 %v2532
        %3517 = vmatpush.bf16.msra.mxu0 %v2516
        %3518 = vmatpush.bf16.msra.mxu0 %v2500
        %3519 = vmatpush.bf16.msra.mxu0 %v2484
        %3520 = vmatpush.bf16.msra.mxu0 %v2468
        %3521 = vmatpush.bf16.msra.mxu0 %v2452
        %3522 = vmatmul.bf16.gmra.mxu0 %v782
        %v3523 = vpop.f32.mrf.mxu0
        %v3524 = vadd.f32 %v3511, %v3523
        %v3525 = vpop.f32.mrf.mxu0
        %3526 = vdwg.mxu0
        %3527 = vmatpush.bf16.msra.mxu0 %v2692
        %3528 = vmatpush.bf16.msra.mxu0 %v2676
        %3529 = vmatpush.bf16.msra.mxu0 %v2660
        %3530 = vmatpush.bf16.msra.mxu0 %v2644
        %3531 = vmatpush.bf16.msra.mxu0 %v2628
        %3532 = vmatpush.bf16.msra.mxu0 %v2612
        %3533 = vmatpush.bf16.msra.mxu0 %v2596
        %3534 = vmatpush.bf16.msra.mxu0 %v2580
        %3535 = vmatmul.bf16.gmra.mxu0 %v783
        %v3536 = vpop.f32.mrf.mxu0
        %v3537 = vadd.f32 %v3524, %v3536
        %v3538 = vpop.f32.mrf.mxu0
        %3539 = vdwg.mxu0
        %3540 = vmatpush.bf16.msra.mxu0 %v2820
        %3541 = vmatpush.bf16.msra.mxu0 %v2804
        %3542 = vmatpush.bf16.msra.mxu0 %v2788
        %3543 = vmatpush.bf16.msra.mxu0 %v2772
        %3544 = vmatpush.bf16.msra.mxu0 %v2756
        %3545 = vmatpush.bf16.msra.mxu0 %v2740
        %3546 = vmatpush.bf16.msra.mxu0 %v2724
        %3547 = vmatpush.bf16.msra.mxu0 %v2708
        %3548 = vmatmul.bf16.gmra.mxu0 %v784
        %v3549 = vpop.f32.mrf.mxu0
        %v3550 = vadd.f32 %v3537, %v3549
        %v3551 = vpop.f32.mrf.mxu0
        %3552 = vdwg.mxu0
        %3553 = vmatpush.bf16.msra.mxu0 %v2437
        %3554 = vmatpush.bf16.msra.mxu0 %v2421
        %3555 = vmatpush.bf16.msra.mxu0 %v2405
        %3556 = vmatpush.bf16.msra.mxu0 %v2389
        %3557 = vmatpush.bf16.msra.mxu0 %v2373
        %3558 = vmatpush.bf16.msra.mxu0 %v2357
        %3559 = vmatpush.bf16.msra.mxu0 %v2341
        %3560 = vmatpush.bf16.msra.mxu0 %v2325
        %3561 = vmatmul.bf16.gmra.mxu0 %v781
        %v3562 = vpop.f32.mrf.mxu0
        %v3563 = vadd.f32 0.0, %v3562
        %v3564 = vpop.f32.mrf.mxu0
        %3565 = vdwg.mxu0
        %3566 = vmatpush.bf16.msra.mxu0 %v2565
        %3567 = vmatpush.bf16.msra.mxu0 %v2549
        %3568 = vmatpush.bf16.msra.mxu0 %v2533
        %3569 = vmatpush.bf16.msra.mxu0 %v2517
        %3570 = vmatpush.bf16.msra.mxu0 %v2501
        %3571 = vmatpush.bf16.msra.mxu0 %v2485
        %3572 = vmatpush.bf16.msra.mxu0 %v2469
        %3573 = vmatpush.bf16.msra.mxu0 %v2453
        %3574 = vmatmul.bf16.gmra.mxu0 %v782
        %v3575 = vpop.f32.mrf.mxu0
        %v3576 = vadd.f32 %v3563, %v3575
        %v3577 = vpop.f32.mrf.mxu0
        %3578 = vdwg.mxu0
        %3579 = vmatpush.bf16.msra.mxu0 %v2693
        %3580 = vmatpush.bf16.msra.mxu0 %v2677
        %3581 = vmatpush.bf16.msra.mxu0 %v2661
        %3582 = vmatpush.bf16.msra.mxu0 %v2645
        %3583 = vmatpush.bf16.msra.mxu0 %v2629
        %3584 = vmatpush.bf16.msra.mxu0 %v2613
        %3585 = vmatpush.bf16.msra.mxu0 %v2597
        %3586 = vmatpush.bf16.msra.mxu0 %v2581
        %3587 = vmatmul.bf16.gmra.mxu0 %v783
        %v3588 = vpop.f32.mrf.mxu0
        %v3589 = vadd.f32 %v3576, %v3588
        %v3590 = vpop.f32.mrf.mxu0
        %3591 = vdwg.mxu0
        %3592 = vmatpush.bf16.msra.mxu0 %v2821
        %3593 = vmatpush.bf16.msra.mxu0 %v2805
        %3594 = vmatpush.bf16.msra.mxu0 %v2789
        %3595 = vmatpush.bf16.msra.mxu0 %v2773
        %3596 = vmatpush.bf16.msra.mxu0 %v2757
        %3597 = vmatpush.bf16.msra.mxu0 %v2741
        %3598 = vmatpush.bf16.msra.mxu0 %v2725
        %3599 = vmatpush.bf16.msra.mxu0 %v2709
        %3600 = vmatmul.bf16.gmra.mxu0 %v784
        %v3601 = vpop.f32.mrf.mxu0
        %v3602 = vadd.f32 %v3589, %v3601
        %v3603 = vpop.f32.mrf.mxu0
        %3604 = vdwg.mxu0
        %3605 = vmatpush.bf16.msra.mxu0 %v2438
        %3606 = vmatpush.bf16.msra.mxu0 %v2422
        %3607 = vmatpush.bf16.msra.mxu0 %v2406
        %3608 = vmatpush.bf16.msra.mxu0 %v2390
        %3609 = vmatpush.bf16.msra.mxu0 %v2374
        %3610 = vmatpush.bf16.msra.mxu0 %v2358
        %3611 = vmatpush.bf16.msra.mxu0 %v2342
        %3612 = vmatpush.bf16.msra.mxu0 %v2326
        %3613 = vmatmul.bf16.gmra.mxu0 %v781
        %v3614 = vpop.f32.mrf.mxu0
        %v3615 = vadd.f32 0.0, %v3614
        %v3616 = vpop.f32.mrf.mxu0
        %3617 = vdwg.mxu0
        %3618 = vmatpush.bf16.msra.mxu0 %v2566
        %3619 = vmatpush.bf16.msra.mxu0 %v2550
        %3620 = vmatpush.bf16.msra.mxu0 %v2534
        %3621 = vmatpush.bf16.msra.mxu0 %v2518
        %3622 = vmatpush.bf16.msra.mxu0 %v2502
        %3623 = vmatpush.bf16.msra.mxu0 %v2486
        %3624 = vmatpush.bf16.msra.mxu0 %v2470
        %3625 = vmatpush.bf16.msra.mxu0 %v2454
        %3626 = vmatmul.bf16.gmra.mxu0 %v782
        %v3627 = vpop.f32.mrf.mxu0
        %v3628 = vadd.f32 %v3615, %v3627
        %v3629 = vpop.f32.mrf.mxu0
        %3630 = vdwg.mxu0
        %3631 = vmatpush.bf16.msra.mxu0 %v2694
        %3632 = vmatpush.bf16.msra.mxu0 %v2678
        %3633 = vmatpush.bf16.msra.mxu0 %v2662
        %3634 = vmatpush.bf16.msra.mxu0 %v2646
        %3635 = vmatpush.bf16.msra.mxu0 %v2630
        %3636 = vmatpush.bf16.msra.mxu0 %v2614
        %3637 = vmatpush.bf16.msra.mxu0 %v2598
        %3638 = vmatpush.bf16.msra.mxu0 %v2582
        %3639 = vmatmul.bf16.gmra.mxu0 %v783
        %v3640 = vpop.f32.mrf.mxu0
        %v3641 = vadd.f32 %v3628, %v3640
        %v3642 = vpop.f32.mrf.mxu0
        %3643 = vdwg.mxu0
        %3644 = vmatpush.bf16.msra.mxu0 %v2822
        %3645 = vmatpush.bf16.msra.mxu0 %v2806
        %3646 = vmatpush.bf16.msra.mxu0 %v2790
        %3647 = vmatpush.bf16.msra.mxu0 %v2774
        %3648 = vmatpush.bf16.msra.mxu0 %v2758
        %3649 = vmatpush.bf16.msra.mxu0 %v2742
        %3650 = vmatpush.bf16.msra.mxu0 %v2726
        %3651 = vmatpush.bf16.msra.mxu0 %v2710
        %3652 = vmatmul.bf16.gmra.mxu0 %v784
        %v3653 = vpop.f32.mrf.mxu0
        %v3654 = vadd.f32 %v3641, %v3653
        %v3655 = vpop.f32.mrf.mxu0
        %3656 = vdwg.mxu0
        %3657 = vmatpush.bf16.msra.mxu0 %v2439
        %3658 = vmatpush.bf16.msra.mxu0 %v2423
        %3659 = vmatpush.bf16.msra.mxu0 %v2407
        %3660 = vmatpush.bf16.msra.mxu0 %v2391
        %3661 = vmatpush.bf16.msra.mxu0 %v2375
        %3662 = vmatpush.bf16.msra.mxu0 %v2359
        %3663 = vmatpush.bf16.msra.mxu0 %v2343
        %3664 = vmatpush.bf16.msra.mxu0 %v2327
        %3665 = vmatmul.bf16.gmra.mxu0 %v781
        %v3666 = vpop.f32.mrf.mxu0
        %v3667 = vadd.f32 0.0, %v3666
        %v3668 = vpop.f32.mrf.mxu0
        %3669 = vdwg.mxu0
        %3670 = vmatpush.bf16.msra.mxu0 %v2567
        %3671 = vmatpush.bf16.msra.mxu0 %v2551
        %3672 = vmatpush.bf16.msra.mxu0 %v2535
        %3673 = vmatpush.bf16.msra.mxu0 %v2519
        %3674 = vmatpush.bf16.msra.mxu0 %v2503
        %3675 = vmatpush.bf16.msra.mxu0 %v2487
        %3676 = vmatpush.bf16.msra.mxu0 %v2471
        %3677 = vmatpush.bf16.msra.mxu0 %v2455
        %3678 = vmatmul.bf16.gmra.mxu0 %v782
        %v3679 = vpop.f32.mrf.mxu0
        %v3680 = vadd.f32 %v3667, %v3679
        %v3681 = vpop.f32.mrf.mxu0
        %3682 = vdwg.mxu0
        %3683 = vmatpush.bf16.msra.mxu0 %v2695
        %3684 = vmatpush.bf16.msra.mxu0 %v2679
        %3685 = vmatpush.bf16.msra.mxu0 %v2663
        %3686 = vmatpush.bf16.msra.mxu0 %v2647
        %3687 = vmatpush.bf16.msra.mxu0 %v2631
        %3688 = vmatpush.bf16.msra.mxu0 %v2615
        %3689 = vmatpush.bf16.msra.mxu0 %v2599
        %3690 = vmatpush.bf16.msra.mxu0 %v2583
        %3691 = vmatmul.bf16.gmra.mxu0 %v783
        %v3692 = vpop.f32.mrf.mxu0
        %v3693 = vadd.f32 %v3680, %v3692
        %v3694 = vpop.f32.mrf.mxu0
        %3695 = vdwg.mxu0
        %3696 = vmatpush.bf16.msra.mxu0 %v2823
        %3697 = vmatpush.bf16.msra.mxu0 %v2807
        %3698 = vmatpush.bf16.msra.mxu0 %v2791
        %3699 = vmatpush.bf16.msra.mxu0 %v2775
        %3700 = vmatpush.bf16.msra.mxu0 %v2759
        %3701 = vmatpush.bf16.msra.mxu0 %v2743
        %3702 = vmatpush.bf16.msra.mxu0 %v2727
        %3703 = vmatpush.bf16.msra.mxu0 %v2711
        %3704 = vmatmul.bf16.gmra.mxu0 %v784
        %v3705 = vpop.f32.mrf.mxu0
        %v3706 = vadd.f32 %v3693, %v3705
        %v3707 = vpop.f32.mrf.mxu0
        %3708 = vdwg.mxu0
        %3709 = vmatpush.bf16.msra.mxu0 %v2440
        %3710 = vmatpush.bf16.msra.mxu0 %v2424
        %3711 = vmatpush.bf16.msra.mxu0 %v2408
        %3712 = vmatpush.bf16.msra.mxu0 %v2392
        %3713 = vmatpush.bf16.msra.mxu0 %v2376
        %3714 = vmatpush.bf16.msra.mxu0 %v2360
        %3715 = vmatpush.bf16.msra.mxu0 %v2344
        %3716 = vmatpush.bf16.msra.mxu0 %v2328
        %3717 = vmatmul.bf16.gmra.mxu0 %v781
        %v3718 = vpop.f32.mrf.mxu0
        %v3719 = vadd.f32 0.0, %v3718
        %v3720 = vpop.f32.mrf.mxu0
        %3721 = vdwg.mxu0
        %3722 = vmatpush.bf16.msra.mxu0 %v2568
        %3723 = vmatpush.bf16.msra.mxu0 %v2552
        %3724 = vmatpush.bf16.msra.mxu0 %v2536
        %3725 = vmatpush.bf16.msra.mxu0 %v2520
        %3726 = vmatpush.bf16.msra.mxu0 %v2504
        %3727 = vmatpush.bf16.msra.mxu0 %v2488
        %3728 = vmatpush.bf16.msra.mxu0 %v2472
        %3729 = vmatpush.bf16.msra.mxu0 %v2456
        %3730 = vmatmul.bf16.gmra.mxu0 %v782
        %v3731 = vpop.f32.mrf.mxu0
        %v3732 = vadd.f32 %v3719, %v3731
        %v3733 = vpop.f32.mrf.mxu0
        %3734 = vdwg.mxu0
        %3735 = vmatpush.bf16.msra.mxu0 %v2696
        %3736 = vmatpush.bf16.msra.mxu0 %v2680
        %3737 = vmatpush.bf16.msra.mxu0 %v2664
        %3738 = vmatpush.bf16.msra.mxu0 %v2648
        %3739 = vmatpush.bf16.msra.mxu0 %v2632
        %3740 = vmatpush.bf16.msra.mxu0 %v2616
        %3741 = vmatpush.bf16.msra.mxu0 %v2600
        %3742 = vmatpush.bf16.msra.mxu0 %v2584
        %3743 = vmatmul.bf16.gmra.mxu0 %v783
        %v3744 = vpop.f32.mrf.mxu0
        %v3745 = vadd.f32 %v3732, %v3744
        %v3746 = vpop.f32.mrf.mxu0
        %3747 = vdwg.mxu0
        %3748 = vmatpush.bf16.msra.mxu0 %v2824
        %3749 = vmatpush.bf16.msra.mxu0 %v2808
        %3750 = vmatpush.bf16.msra.mxu0 %v2792
        %3751 = vmatpush.bf16.msra.mxu0 %v2776
        %3752 = vmatpush.bf16.msra.mxu0 %v2760
        %3753 = vmatpush.bf16.msra.mxu0 %v2744
        %3754 = vmatpush.bf16.msra.mxu0 %v2728
        %3755 = vmatpush.bf16.msra.mxu0 %v2712
        %3756 = vmatmul.bf16.gmra.mxu0 %v784
        %v3757 = vpop.f32.mrf.mxu0
        %v3758 = vadd.f32 %v3745, %v3757
        %v3759 = vpop.f32.mrf.mxu0
        %3760 = vdwg.mxu0
        %3761 = vmatpush.bf16.msra.mxu0 %v2441
        %3762 = vmatpush.bf16.msra.mxu0 %v2425
        %3763 = vmatpush.bf16.msra.mxu0 %v2409
        %3764 = vmatpush.bf16.msra.mxu0 %v2393
        %3765 = vmatpush.bf16.msra.mxu0 %v2377
        %3766 = vmatpush.bf16.msra.mxu0 %v2361
        %3767 = vmatpush.bf16.msra.mxu0 %v2345
        %3768 = vmatpush.bf16.msra.mxu0 %v2329
        %3769 = vmatmul.bf16.gmra.mxu0 %v781
        %v3770 = vpop.f32.mrf.mxu0
        %v3771 = vadd.f32 0.0, %v3770
        %v3772 = vpop.f32.mrf.mxu0
        %3773 = vdwg.mxu0
        %3774 = vmatpush.bf16.msra.mxu0 %v2569
        %3775 = vmatpush.bf16.msra.mxu0 %v2553
        %3776 = vmatpush.bf16.msra.mxu0 %v2537
        %3777 = vmatpush.bf16.msra.mxu0 %v2521
        %3778 = vmatpush.bf16.msra.mxu0 %v2505
        %3779 = vmatpush.bf16.msra.mxu0 %v2489
        %3780 = vmatpush.bf16.msra.mxu0 %v2473
        %3781 = vmatpush.bf16.msra.mxu0 %v2457
        %3782 = vmatmul.bf16.gmra.mxu0 %v782
        %v3783 = vpop.f32.mrf.mxu0
        %v3784 = vadd.f32 %v3771, %v3783
        %v3785 = vpop.f32.mrf.mxu0
        %3786 = vdwg.mxu0
        %3787 = vmatpush.bf16.msra.mxu0 %v2697
        %3788 = vmatpush.bf16.msra.mxu0 %v2681
        %3789 = vmatpush.bf16.msra.mxu0 %v2665
        %3790 = vmatpush.bf16.msra.mxu0 %v2649
        %3791 = vmatpush.bf16.msra.mxu0 %v2633
        %3792 = vmatpush.bf16.msra.mxu0 %v2617
        %3793 = vmatpush.bf16.msra.mxu0 %v2601
        %3794 = vmatpush.bf16.msra.mxu0 %v2585
        %3795 = vmatmul.bf16.gmra.mxu0 %v783
        %v3796 = vpop.f32.mrf.mxu0
        %v3797 = vadd.f32 %v3784, %v3796
        %v3798 = vpop.f32.mrf.mxu0
        %3799 = vdwg.mxu0
        %3800 = vmatpush.bf16.msra.mxu0 %v2825
        %3801 = vmatpush.bf16.msra.mxu0 %v2809
        %3802 = vmatpush.bf16.msra.mxu0 %v2793
        %3803 = vmatpush.bf16.msra.mxu0 %v2777
        %3804 = vmatpush.bf16.msra.mxu0 %v2761
        %3805 = vmatpush.bf16.msra.mxu0 %v2745
        %3806 = vmatpush.bf16.msra.mxu0 %v2729
        %3807 = vmatpush.bf16.msra.mxu0 %v2713
        %3808 = vmatmul.bf16.gmra.mxu0 %v784
        %v3809 = vpop.f32.mrf.mxu0
        %v3810 = vadd.f32 %v3797, %v3809
        %v3811 = vpop.f32.mrf.mxu0
        %3812 = vdwg.mxu0
        %3813 = vmatpush.bf16.msra.mxu0 %v2442
        %3814 = vmatpush.bf16.msra.mxu0 %v2426
        %3815 = vmatpush.bf16.msra.mxu0 %v2410
        %3816 = vmatpush.bf16.msra.mxu0 %v2394
        %3817 = vmatpush.bf16.msra.mxu0 %v2378
        %3818 = vmatpush.bf16.msra.mxu0 %v2362
        %3819 = vmatpush.bf16.msra.mxu0 %v2346
        %3820 = vmatpush.bf16.msra.mxu0 %v2330
        %3821 = vmatmul.bf16.gmra.mxu0 %v781
        %v3822 = vpop.f32.mrf.mxu0
        %v3823 = vadd.f32 0.0, %v3822
        %v3824 = vpop.f32.mrf.mxu0
        %3825 = vdwg.mxu0
        %3826 = vmatpush.bf16.msra.mxu0 %v2570
        %3827 = vmatpush.bf16.msra.mxu0 %v2554
        %3828 = vmatpush.bf16.msra.mxu0 %v2538
        %3829 = vmatpush.bf16.msra.mxu0 %v2522
        %3830 = vmatpush.bf16.msra.mxu0 %v2506
        %3831 = vmatpush.bf16.msra.mxu0 %v2490
        %3832 = vmatpush.bf16.msra.mxu0 %v2474
        %3833 = vmatpush.bf16.msra.mxu0 %v2458
        %3834 = vmatmul.bf16.gmra.mxu0 %v782
        %v3835 = vpop.f32.mrf.mxu0
        %v3836 = vadd.f32 %v3823, %v3835
        %v3837 = vpop.f32.mrf.mxu0
        %3838 = vdwg.mxu0
        %3839 = vmatpush.bf16.msra.mxu0 %v2698
        %3840 = vmatpush.bf16.msra.mxu0 %v2682
        %3841 = vmatpush.bf16.msra.mxu0 %v2666
        %3842 = vmatpush.bf16.msra.mxu0 %v2650
        %3843 = vmatpush.bf16.msra.mxu0 %v2634
        %3844 = vmatpush.bf16.msra.mxu0 %v2618
        %3845 = vmatpush.bf16.msra.mxu0 %v2602
        %3846 = vmatpush.bf16.msra.mxu0 %v2586
        %3847 = vmatmul.bf16.gmra.mxu0 %v783
        %v3848 = vpop.f32.mrf.mxu0
        %v3849 = vadd.f32 %v3836, %v3848
        %v3850 = vpop.f32.mrf.mxu0
        %3851 = vdwg.mxu0
        %3852 = vmatpush.bf16.msra.mxu0 %v2826
        %3853 = vmatpush.bf16.msra.mxu0 %v2810
        %3854 = vmatpush.bf16.msra.mxu0 %v2794
        %3855 = vmatpush.bf16.msra.mxu0 %v2778
        %3856 = vmatpush.bf16.msra.mxu0 %v2762
        %3857 = vmatpush.bf16.msra.mxu0 %v2746
        %3858 = vmatpush.bf16.msra.mxu0 %v2730
        %3859 = vmatpush.bf16.msra.mxu0 %v2714
        %3860 = vmatmul.bf16.gmra.mxu0 %v784
        %v3861 = vpop.f32.mrf.mxu0
        %v3862 = vadd.f32 %v3849, %v3861
        %v3863 = vpop.f32.mrf.mxu0
        %3864 = vdwg.mxu0
        %3865 = vmatpush.bf16.msra.mxu0 %v2443
        %3866 = vmatpush.bf16.msra.mxu0 %v2427
        %3867 = vmatpush.bf16.msra.mxu0 %v2411
        %3868 = vmatpush.bf16.msra.mxu0 %v2395
        %3869 = vmatpush.bf16.msra.mxu0 %v2379
        %3870 = vmatpush.bf16.msra.mxu0 %v2363
        %3871 = vmatpush.bf16.msra.mxu0 %v2347
        %3872 = vmatpush.bf16.msra.mxu0 %v2331
        %3873 = vmatmul.bf16.gmra.mxu0 %v781
        %v3874 = vpop.f32.mrf.mxu0
        %v3875 = vadd.f32 0.0, %v3874
        %v3876 = vpop.f32.mrf.mxu0
        %3877 = vdwg.mxu0
        %3878 = vmatpush.bf16.msra.mxu0 %v2571
        %3879 = vmatpush.bf16.msra.mxu0 %v2555
        %3880 = vmatpush.bf16.msra.mxu0 %v2539
        %3881 = vmatpush.bf16.msra.mxu0 %v2523
        %3882 = vmatpush.bf16.msra.mxu0 %v2507
        %3883 = vmatpush.bf16.msra.mxu0 %v2491
        %3884 = vmatpush.bf16.msra.mxu0 %v2475
        %3885 = vmatpush.bf16.msra.mxu0 %v2459
        %3886 = vmatmul.bf16.gmra.mxu0 %v782
        %v3887 = vpop.f32.mrf.mxu0
        %v3888 = vadd.f32 %v3875, %v3887
        %v3889 = vpop.f32.mrf.mxu0
        %3890 = vdwg.mxu0
        %3891 = vmatpush.bf16.msra.mxu0 %v2699
        %3892 = vmatpush.bf16.msra.mxu0 %v2683
        %3893 = vmatpush.bf16.msra.mxu0 %v2667
        %3894 = vmatpush.bf16.msra.mxu0 %v2651
        %3895 = vmatpush.bf16.msra.mxu0 %v2635
        %3896 = vmatpush.bf16.msra.mxu0 %v2619
        %3897 = vmatpush.bf16.msra.mxu0 %v2603
        %3898 = vmatpush.bf16.msra.mxu0 %v2587
        %3899 = vmatmul.bf16.gmra.mxu0 %v783
        %v3900 = vpop.f32.mrf.mxu0
        %v3901 = vadd.f32 %v3888, %v3900
        %v3902 = vpop.f32.mrf.mxu0
        %3903 = vdwg.mxu0
        %3904 = vmatpush.bf16.msra.mxu0 %v2827
        %3905 = vmatpush.bf16.msra.mxu0 %v2811
        %3906 = vmatpush.bf16.msra.mxu0 %v2795
        %3907 = vmatpush.bf16.msra.mxu0 %v2779
        %3908 = vmatpush.bf16.msra.mxu0 %v2763
        %3909 = vmatpush.bf16.msra.mxu0 %v2747
        %3910 = vmatpush.bf16.msra.mxu0 %v2731
        %3911 = vmatpush.bf16.msra.mxu0 %v2715
        %3912 = vmatmul.bf16.gmra.mxu0 %v784
        %v3913 = vpop.f32.mrf.mxu0
        %v3914 = vadd.f32 %v3901, %v3913
        %v3915 = vpop.f32.mrf.mxu0
        %3916 = vdwg.mxu0
        %3917 = vmatpush.bf16.msra.mxu0 %v2444
        %3918 = vmatpush.bf16.msra.mxu0 %v2428
        %3919 = vmatpush.bf16.msra.mxu0 %v2412
        %3920 = vmatpush.bf16.msra.mxu0 %v2396
        %3921 = vmatpush.bf16.msra.mxu0 %v2380
        %3922 = vmatpush.bf16.msra.mxu0 %v2364
        %3923 = vmatpush.bf16.msra.mxu0 %v2348
        %3924 = vmatpush.bf16.msra.mxu0 %v2332
        %3925 = vmatmul.bf16.gmra.mxu0 %v781
        %v3926 = vpop.f32.mrf.mxu0
        %v3927 = vadd.f32 0.0, %v3926
        %v3928 = vpop.f32.mrf.mxu0
        %3929 = vdwg.mxu0
        %3930 = vmatpush.bf16.msra.mxu0 %v2572
        %3931 = vmatpush.bf16.msra.mxu0 %v2556
        %3932 = vmatpush.bf16.msra.mxu0 %v2540
        %3933 = vmatpush.bf16.msra.mxu0 %v2524
        %3934 = vmatpush.bf16.msra.mxu0 %v2508
        %3935 = vmatpush.bf16.msra.mxu0 %v2492
        %3936 = vmatpush.bf16.msra.mxu0 %v2476
        %3937 = vmatpush.bf16.msra.mxu0 %v2460
        %3938 = vmatmul.bf16.gmra.mxu0 %v782
        %v3939 = vpop.f32.mrf.mxu0
        %v3940 = vadd.f32 %v3927, %v3939
        %v3941 = vpop.f32.mrf.mxu0
        %3942 = vdwg.mxu0
        %3943 = vmatpush.bf16.msra.mxu0 %v2700
        %3944 = vmatpush.bf16.msra.mxu0 %v2684
        %3945 = vmatpush.bf16.msra.mxu0 %v2668
        %3946 = vmatpush.bf16.msra.mxu0 %v2652
        %3947 = vmatpush.bf16.msra.mxu0 %v2636
        %3948 = vmatpush.bf16.msra.mxu0 %v2620
        %3949 = vmatpush.bf16.msra.mxu0 %v2604
        %3950 = vmatpush.bf16.msra.mxu0 %v2588
        %3951 = vmatmul.bf16.gmra.mxu0 %v783
        %v3952 = vpop.f32.mrf.mxu0
        %v3953 = vadd.f32 %v3940, %v3952
        %v3954 = vpop.f32.mrf.mxu0
        %3955 = vdwg.mxu0
        %3956 = vmatpush.bf16.msra.mxu0 %v2828
        %3957 = vmatpush.bf16.msra.mxu0 %v2812
        %3958 = vmatpush.bf16.msra.mxu0 %v2796
        %3959 = vmatpush.bf16.msra.mxu0 %v2780
        %3960 = vmatpush.bf16.msra.mxu0 %v2764
        %3961 = vmatpush.bf16.msra.mxu0 %v2748
        %3962 = vmatpush.bf16.msra.mxu0 %v2732
        %3963 = vmatpush.bf16.msra.mxu0 %v2716
        %3964 = vmatmul.bf16.gmra.mxu0 %v784
        %v3965 = vpop.f32.mrf.mxu0
        %v3966 = vadd.f32 %v3953, %v3965
        %v3967 = vpop.f32.mrf.mxu0
        %3968 = vdwg.mxu0
        %3969 = vmatpush.bf16.msra.mxu0 %v2445
        %3970 = vmatpush.bf16.msra.mxu0 %v2429
        %3971 = vmatpush.bf16.msra.mxu0 %v2413
        %3972 = vmatpush.bf16.msra.mxu0 %v2397
        %3973 = vmatpush.bf16.msra.mxu0 %v2381
        %3974 = vmatpush.bf16.msra.mxu0 %v2365
        %3975 = vmatpush.bf16.msra.mxu0 %v2349
        %3976 = vmatpush.bf16.msra.mxu0 %v2333
        %3977 = vmatmul.bf16.gmra.mxu0 %v781
        %v3978 = vpop.f32.mrf.mxu0
        %v3979 = vadd.f32 0.0, %v3978
        %v3980 = vpop.f32.mrf.mxu0
        %3981 = vdwg.mxu0
        %3982 = vmatpush.bf16.msra.mxu0 %v2573
        %3983 = vmatpush.bf16.msra.mxu0 %v2557
        %3984 = vmatpush.bf16.msra.mxu0 %v2541
        %3985 = vmatpush.bf16.msra.mxu0 %v2525
        %3986 = vmatpush.bf16.msra.mxu0 %v2509
        %3987 = vmatpush.bf16.msra.mxu0 %v2493
        %3988 = vmatpush.bf16.msra.mxu0 %v2477
        %3989 = vmatpush.bf16.msra.mxu0 %v2461
        %3990 = vmatmul.bf16.gmra.mxu0 %v782
        %v3991 = vpop.f32.mrf.mxu0
        %v3992 = vadd.f32 %v3979, %v3991
        %v3993 = vpop.f32.mrf.mxu0
        %3994 = vdwg.mxu0
        %3995 = vmatpush.bf16.msra.mxu0 %v2701
        %3996 = vmatpush.bf16.msra.mxu0 %v2685
        %3997 = vmatpush.bf16.msra.mxu0 %v2669
        %3998 = vmatpush.bf16.msra.mxu0 %v2653
        %3999 = vmatpush.bf16.msra.mxu0 %v2637
        %4000 = vmatpush.bf16.msra.mxu0 %v2621
        %4001 = vmatpush.bf16.msra.mxu0 %v2605
        %4002 = vmatpush.bf16.msra.mxu0 %v2589
        %4003 = vmatmul.bf16.gmra.mxu0 %v783
        %v4004 = vpop.f32.mrf.mxu0
        %v4005 = vadd.f32 %v3992, %v4004
        %v4006 = vpop.f32.mrf.mxu0
        %4007 = vdwg.mxu0
        %4008 = vmatpush.bf16.msra.mxu0 %v2829
        %4009 = vmatpush.bf16.msra.mxu0 %v2813
        %4010 = vmatpush.bf16.msra.mxu0 %v2797
        %4011 = vmatpush.bf16.msra.mxu0 %v2781
        %4012 = vmatpush.bf16.msra.mxu0 %v2765
        %4013 = vmatpush.bf16.msra.mxu0 %v2749
        %4014 = vmatpush.bf16.msra.mxu0 %v2733
        %4015 = vmatpush.bf16.msra.mxu0 %v2717
        %4016 = vmatmul.bf16.gmra.mxu0 %v784
        %v4017 = vpop.f32.mrf.mxu0
        %v4018 = vadd.f32 %v4005, %v4017
        %v4019 = vpop.f32.mrf.mxu0
        %4020 = vdwg.mxu0
        %4021 = vmatpush.bf16.msra.mxu0 %v2446
        %4022 = vmatpush.bf16.msra.mxu0 %v2430
        %4023 = vmatpush.bf16.msra.mxu0 %v2414
        %4024 = vmatpush.bf16.msra.mxu0 %v2398
        %4025 = vmatpush.bf16.msra.mxu0 %v2382
        %4026 = vmatpush.bf16.msra.mxu0 %v2366
        %4027 = vmatpush.bf16.msra.mxu0 %v2350
        %4028 = vmatpush.bf16.msra.mxu0 %v2334
        %4029 = vmatmul.bf16.gmra.mxu0 %v781
        %v4030 = vpop.f32.mrf.mxu0
        %v4031 = vadd.f32 0.0, %v4030
        %v4032 = vpop.f32.mrf.mxu0
        %4033 = vdwg.mxu0
        %4034 = vmatpush.bf16.msra.mxu0 %v2574
        %4035 = vmatpush.bf16.msra.mxu0 %v2558
        %4036 = vmatpush.bf16.msra.mxu0 %v2542
        %4037 = vmatpush.bf16.msra.mxu0 %v2526
        %4038 = vmatpush.bf16.msra.mxu0 %v2510
        %4039 = vmatpush.bf16.msra.mxu0 %v2494
        %4040 = vmatpush.bf16.msra.mxu0 %v2478
        %4041 = vmatpush.bf16.msra.mxu0 %v2462
        %4042 = vmatmul.bf16.gmra.mxu0 %v782
        %v4043 = vpop.f32.mrf.mxu0
        %v4044 = vadd.f32 %v4031, %v4043
        %v4045 = vpop.f32.mrf.mxu0
        %4046 = vdwg.mxu0
        %4047 = vmatpush.bf16.msra.mxu0 %v2702
        %4048 = vmatpush.bf16.msra.mxu0 %v2686
        %4049 = vmatpush.bf16.msra.mxu0 %v2670
        %4050 = vmatpush.bf16.msra.mxu0 %v2654
        %4051 = vmatpush.bf16.msra.mxu0 %v2638
        %4052 = vmatpush.bf16.msra.mxu0 %v2622
        %4053 = vmatpush.bf16.msra.mxu0 %v2606
        %4054 = vmatpush.bf16.msra.mxu0 %v2590
        %4055 = vmatmul.bf16.gmra.mxu0 %v783
        %v4056 = vpop.f32.mrf.mxu0
        %v4057 = vadd.f32 %v4044, %v4056
        %v4058 = vpop.f32.mrf.mxu0
        %4059 = vdwg.mxu0
        %4060 = vmatpush.bf16.msra.mxu0 %v2830
        %4061 = vmatpush.bf16.msra.mxu0 %v2814
        %4062 = vmatpush.bf16.msra.mxu0 %v2798
        %4063 = vmatpush.bf16.msra.mxu0 %v2782
        %4064 = vmatpush.bf16.msra.mxu0 %v2766
        %4065 = vmatpush.bf16.msra.mxu0 %v2750
        %4066 = vmatpush.bf16.msra.mxu0 %v2734
        %4067 = vmatpush.bf16.msra.mxu0 %v2718
        %4068 = vmatmul.bf16.gmra.mxu0 %v784
        %v4069 = vpop.f32.mrf.mxu0
        %v4070 = vadd.f32 %v4057, %v4069
        %v4071 = vpop.f32.mrf.mxu0
        %4072 = vdwg.mxu0
        %4073 = vmatpush.bf16.msra.mxu0 %v2447
        %4074 = vmatpush.bf16.msra.mxu0 %v2431
        %4075 = vmatpush.bf16.msra.mxu0 %v2415
        %4076 = vmatpush.bf16.msra.mxu0 %v2399
        %4077 = vmatpush.bf16.msra.mxu0 %v2383
        %4078 = vmatpush.bf16.msra.mxu0 %v2367
        %4079 = vmatpush.bf16.msra.mxu0 %v2351
        %4080 = vmatpush.bf16.msra.mxu0 %v2335
        %4081 = vmatmul.bf16.gmra.mxu0 %v781
        %v4082 = vpop.f32.mrf.mxu0
        %v4083 = vadd.f32 0.0, %v4082
        %v4084 = vpop.f32.mrf.mxu0
        %4085 = vdwg.mxu0
        %4086 = vmatpush.bf16.msra.mxu0 %v2575
        %4087 = vmatpush.bf16.msra.mxu0 %v2559
        %4088 = vmatpush.bf16.msra.mxu0 %v2543
        %4089 = vmatpush.bf16.msra.mxu0 %v2527
        %4090 = vmatpush.bf16.msra.mxu0 %v2511
        %4091 = vmatpush.bf16.msra.mxu0 %v2495
        %4092 = vmatpush.bf16.msra.mxu0 %v2479
        %4093 = vmatpush.bf16.msra.mxu0 %v2463
        %4094 = vmatmul.bf16.gmra.mxu0 %v782
        %v4095 = vpop.f32.mrf.mxu0
        %v4096 = vadd.f32 %v4083, %v4095
        %v4097 = vpop.f32.mrf.mxu0
        %4098 = vdwg.mxu0
        %4099 = vmatpush.bf16.msra.mxu0 %v2703
        %4100 = vmatpush.bf16.msra.mxu0 %v2687
        %4101 = vmatpush.bf16.msra.mxu0 %v2671
        %4102 = vmatpush.bf16.msra.mxu0 %v2655
        %4103 = vmatpush.bf16.msra.mxu0 %v2639
        %4104 = vmatpush.bf16.msra.mxu0 %v2623
        %4105 = vmatpush.bf16.msra.mxu0 %v2607
        %4106 = vmatpush.bf16.msra.mxu0 %v2591
        %4107 = vmatmul.bf16.gmra.mxu0 %v783
        %v4108 = vpop.f32.mrf.mxu0
        %v4109 = vadd.f32 %v4096, %v4108
        %v4110 = vpop.f32.mrf.mxu0
        %4111 = vdwg.mxu0
        %4112 = vmatpush.bf16.msra.mxu0 %v2831
        %4113 = vmatpush.bf16.msra.mxu0 %v2815
        %4114 = vmatpush.bf16.msra.mxu0 %v2799
        %4115 = vmatpush.bf16.msra.mxu0 %v2783
        %4116 = vmatpush.bf16.msra.mxu0 %v2767
        %4117 = vmatpush.bf16.msra.mxu0 %v2751
        %4118 = vmatpush.bf16.msra.mxu0 %v2735
        %4119 = vmatpush.bf16.msra.mxu0 %v2719
        %4120 = vmatmul.bf16.gmra.mxu0 %v784
        %v4121 = vpop.f32.mrf.mxu0
        %v4122 = vadd.f32 %v4109, %v4121
        %v4123 = vpop.f32.mrf.mxu0
        %4124 = vdwg.mxu0
        %4125 = vmatpush.bf16.msra.mxu0 %v2448
        %4126 = vmatpush.bf16.msra.mxu0 %v2432
        %4127 = vmatpush.bf16.msra.mxu0 %v2416
        %4128 = vmatpush.bf16.msra.mxu0 %v2400
        %4129 = vmatpush.bf16.msra.mxu0 %v2384
        %4130 = vmatpush.bf16.msra.mxu0 %v2368
        %4131 = vmatpush.bf16.msra.mxu0 %v2352
        %4132 = vmatpush.bf16.msra.mxu0 %v2336
        %4133 = vmatmul.bf16.gmra.mxu0 %v781
        %v4134 = vpop.f32.mrf.mxu0
        %v4135 = vadd.f32 0.0, %v4134
        %v4136 = vpop.f32.mrf.mxu0
        %4137 = vdwg.mxu0
        %4138 = vmatpush.bf16.msra.mxu0 %v2576
        %4139 = vmatpush.bf16.msra.mxu0 %v2560
        %4140 = vmatpush.bf16.msra.mxu0 %v2544
        %4141 = vmatpush.bf16.msra.mxu0 %v2528
        %4142 = vmatpush.bf16.msra.mxu0 %v2512
        %4143 = vmatpush.bf16.msra.mxu0 %v2496
        %4144 = vmatpush.bf16.msra.mxu0 %v2480
        %4145 = vmatpush.bf16.msra.mxu0 %v2464
        %4146 = vmatmul.bf16.gmra.mxu0 %v782
        %v4147 = vpop.f32.mrf.mxu0
        %v4148 = vadd.f32 %v4135, %v4147
        %v4149 = vpop.f32.mrf.mxu0
        %4150 = vdwg.mxu0
        %4151 = vmatpush.bf16.msra.mxu0 %v2704
        %4152 = vmatpush.bf16.msra.mxu0 %v2688
        %4153 = vmatpush.bf16.msra.mxu0 %v2672
        %4154 = vmatpush.bf16.msra.mxu0 %v2656
        %4155 = vmatpush.bf16.msra.mxu0 %v2640
        %4156 = vmatpush.bf16.msra.mxu0 %v2624
        %4157 = vmatpush.bf16.msra.mxu0 %v2608
        %4158 = vmatpush.bf16.msra.mxu0 %v2592
        %4159 = vmatmul.bf16.gmra.mxu0 %v783
        %v4160 = vpop.f32.mrf.mxu0
        %v4161 = vadd.f32 %v4148, %v4160
        %v4162 = vpop.f32.mrf.mxu0
        %4163 = vdwg.mxu0
        %4164 = vmatpush.bf16.msra.mxu0 %v2832
        %4165 = vmatpush.bf16.msra.mxu0 %v2816
        %4166 = vmatpush.bf16.msra.mxu0 %v2800
        %4167 = vmatpush.bf16.msra.mxu0 %v2784
        %4168 = vmatpush.bf16.msra.mxu0 %v2768
        %4169 = vmatpush.bf16.msra.mxu0 %v2752
        %4170 = vmatpush.bf16.msra.mxu0 %v2736
        %4171 = vmatpush.bf16.msra.mxu0 %v2720
        %4172 = vmatmul.bf16.gmra.mxu0 %v784
        %v4173 = vpop.f32.mrf.mxu0
        %v4174 = vadd.f32 %v4161, %v4173
        %v4175 = vpop.f32.mrf.mxu0
        %4176 = vdwg.mxu0
        %v4177 = vxor.u32 %v3394, 2147483648
        %v4178 = vxor.u32 %v3446, 2147483648
        %v4179 = vxor.u32 %v3498, 2147483648
        %v4180 = vxor.u32 %v3550, 2147483648
        %v4181 = vxor.u32 %v3602, 2147483648
        %v4182 = vxor.u32 %v3654, 2147483648
        %v4183 = vxor.u32 %v3706, 2147483648
        %v4184 = vxor.u32 %v3758, 2147483648
        %v4185 = vxor.u32 %v3810, 2147483648
        %v4186 = vxor.u32 %v3862, 2147483648
        %v4187 = vxor.u32 %v3914, 2147483648
        %v4188 = vxor.u32 %v3966, 2147483648
        %v4189 = vmul.f32 %v4177, 1.442695
        %v4190 = vpow.pop %v4189
        %v4191 = vmul.f32 %v4178, 1.442695
        %v4192 = vpow.pop %v4191
        %v4193 = vmul.f32 %v4179, 1.442695
        %v4194 = vpow.pop %v4193
        %v4195 = vmul.f32 %v4180, 1.442695
        %v4196 = vpow.pop %v4195
        %v4197 = vmul.f32 %v4181, 1.442695
        %v4198 = vpow.pop %v4197
        %v4199 = vmul.f32 %v4182, 1.442695
        %v4200 = vpow.pop %v4199
        %v4201 = vmul.f32 %v4183, 1.442695
        %v4202 = vpow.pop %v4201
        %v4203 = vmul.f32 %v4184, 1.442695
        %v4204 = vpow.pop %v4203
        %v4205 = vmul.f32 %v4185, 1.442695
        %v4206 = vpow.pop %v4205
        %v4207 = vmul.f32 %v4186, 1.442695
        %v4208 = vpow.pop %v4207
        %v4209 = vmul.f32 %v4187, 1.442695
        %v4210 = vpow.pop %v4209
        %v4211 = vmul.f32 %v4188, 1.442695
        %v4212 = vpow.pop %v4211
        %v4213 = vadd.f32 %v4190, 1.0
        %v4214 = vadd.f32 %v4192, 1.0
        %v4215 = vadd.f32 %v4194, 1.0
        %v4216 = vadd.f32 %v4196, 1.0
        %v4217 = vadd.f32 %v4198, 1.0
        %v4218 = vadd.f32 %v4200, 1.0
        %v4219 = vadd.f32 %v4202, 1.0
        %v4220 = vadd.f32 %v4204, 1.0
        %v4221 = vadd.f32 %v4206, 1.0
        %v4222 = vadd.f32 %v4208, 1.0
        %v4223 = vadd.f32 %v4210, 1.0
        %v4224 = vadd.f32 %v4212, 1.0
        %v4225 = vrcp.pop %v4213
        %v4226 = vmul.f32 %v4213, %v4225
        %v4227 = vsub.f32 1.0, %v4226
        %v4228 = vmul.f32 %v4225, %v4227
        %v4229 = vadd.f32 %v4225, %v4228
        %vm4230 = vweird.f32 %v4213
        %vm4231 = vweird.f32 %v4225
        %vm4232 = vmor %vm4230, %vm4231
        %v4233 = vsel %vm4232, %v4225, %v4229
        %v4234 = vand.u32 2147483647, %v4213
        %vm4235 = vcmp.eq.f32.partialorder %v4234, 8.507059e+37
        %v4236 = vand.u32 %v4213, 2147483648
        %v4237 = vor.u32 1.1754944e-38, %v4236
        %v4238 = vsel %vm4235, %v4237, %v4233
        %v4239 = vmul.f32 1.0, %v4238
        %v4240 = vrcp.pop %v4214
        %v4241 = vmul.f32 %v4214, %v4240
        %v4242 = vsub.f32 1.0, %v4241
        %v4243 = vmul.f32 %v4240, %v4242
        %v4244 = vadd.f32 %v4240, %v4243
        %vm4245 = vweird.f32 %v4214
        %vm4246 = vweird.f32 %v4240
        %vm4247 = vmor %vm4245, %vm4246
        %v4248 = vsel %vm4247, %v4240, %v4244
        %v4249 = vand.u32 2147483647, %v4214
        %vm4250 = vcmp.eq.f32.partialorder %v4249, 8.507059e+37
        %v4251 = vand.u32 %v4214, 2147483648
        %v4252 = vor.u32 1.1754944e-38, %v4251
        %v4253 = vsel %vm4250, %v4252, %v4248
        %v4254 = vmul.f32 1.0, %v4253
        %v4255 = vrcp.pop %v4215
        %v4256 = vmul.f32 %v4215, %v4255
        %v4257 = vsub.f32 1.0, %v4256
        %v4258 = vmul.f32 %v4255, %v4257
        %v4259 = vadd.f32 %v4255, %v4258
        %vm4260 = vweird.f32 %v4215
        %vm4261 = vweird.f32 %v4255
        %vm4262 = vmor %vm4260, %vm4261
        %v4263 = vsel %vm4262, %v4255, %v4259
        %v4264 = vand.u32 2147483647, %v4215
        %vm4265 = vcmp.eq.f32.partialorder %v4264, 8.507059e+37
        %v4266 = vand.u32 %v4215, 2147483648
        %v4267 = vor.u32 1.1754944e-38, %v4266
        %v4268 = vsel %vm4265, %v4267, %v4263
        %v4269 = vmul.f32 1.0, %v4268
        %v4270 = vrcp.pop %v4216
        %v4271 = vmul.f32 %v4216, %v4270
        %v4272 = vsub.f32 1.0, %v4271
        %v4273 = vmul.f32 %v4270, %v4272
        %v4274 = vadd.f32 %v4270, %v4273
        %vm4275 = vweird.f32 %v4216
        %vm4276 = vweird.f32 %v4270
        %vm4277 = vmor %vm4275, %vm4276
        %v4278 = vsel %vm4277, %v4270, %v4274
        %v4279 = vand.u32 2147483647, %v4216
        %vm4280 = vcmp.eq.f32.partialorder %v4279, 8.507059e+37
        %v4281 = vand.u32 %v4216, 2147483648
        %v4282 = vor.u32 1.1754944e-38, %v4281
        %v4283 = vsel %vm4280, %v4282, %v4278
        %v4284 = vmul.f32 1.0, %v4283
        %v4285 = vrcp.pop %v4217
        %v4286 = vmul.f32 %v4217, %v4285
        %v4287 = vsub.f32 1.0, %v4286
        %v4288 = vmul.f32 %v4285, %v4287
        %v4289 = vadd.f32 %v4285, %v4288
        %vm4290 = vweird.f32 %v4217
        %vm4291 = vweird.f32 %v4285
        %vm4292 = vmor %vm4290, %vm4291
        %v4293 = vsel %vm4292, %v4285, %v4289
        %v4294 = vand.u32 2147483647, %v4217
        %vm4295 = vcmp.eq.f32.partialorder %v4294, 8.507059e+37
        %v4296 = vand.u32 %v4217, 2147483648
        %v4297 = vor.u32 1.1754944e-38, %v4296
        %v4298 = vsel %vm4295, %v4297, %v4293
        %v4299 = vmul.f32 1.0, %v4298
        %v4300 = vrcp.pop %v4218
        %v4301 = vmul.f32 %v4218, %v4300
        %v4302 = vsub.f32 1.0, %v4301
        %v4303 = vmul.f32 %v4300, %v4302
        %v4304 = vadd.f32 %v4300, %v4303
        %vm4305 = vweird.f32 %v4218
        %vm4306 = vweird.f32 %v4300
        %vm4307 = vmor %vm4305, %vm4306
        %v4308 = vsel %vm4307, %v4300, %v4304
        %v4309 = vand.u32 2147483647, %v4218
        %vm4310 = vcmp.eq.f32.partialorder %v4309, 8.507059e+37
        %v4311 = vand.u32 %v4218, 2147483648
        %v4312 = vor.u32 1.1754944e-38, %v4311
        %v4313 = vsel %vm4310, %v4312, %v4308
        %v4314 = vmul.f32 1.0, %v4313
        %v4315 = vrcp.pop %v4219
        %v4316 = vmul.f32 %v4219, %v4315
        %v4317 = vsub.f32 1.0, %v4316
        %v4318 = vmul.f32 %v4315, %v4317
        %v4319 = vadd.f32 %v4315, %v4318
        %vm4320 = vweird.f32 %v4219
        %vm4321 = vweird.f32 %v4315
        %vm4322 = vmor %vm4320, %vm4321
        %v4323 = vsel %vm4322, %v4315, %v4319
        %v4324 = vand.u32 2147483647, %v4219
        %vm4325 = vcmp.eq.f32.partialorder %v4324, 8.507059e+37
        %v4326 = vand.u32 %v4219, 2147483648
        %v4327 = vor.u32 1.1754944e-38, %v4326
        %v4328 = vsel %vm4325, %v4327, %v4323
        %v4329 = vmul.f32 1.0, %v4328
        %v4330 = vrcp.pop %v4220
        %v4331 = vmul.f32 %v4220, %v4330
        %v4332 = vsub.f32 1.0, %v4331
        %v4333 = vmul.f32 %v4330, %v4332
        %v4334 = vadd.f32 %v4330, %v4333
        %vm4335 = vweird.f32 %v4220
        %vm4336 = vweird.f32 %v4330
        %vm4337 = vmor %vm4335, %vm4336
        %v4338 = vsel %vm4337, %v4330, %v4334
        %v4339 = vand.u32 2147483647, %v4220
        %vm4340 = vcmp.eq.f32.partialorder %v4339, 8.507059e+37
        %v4341 = vand.u32 %v4220, 2147483648
        %v4342 = vor.u32 1.1754944e-38, %v4341
        %v4343 = vsel %vm4340, %v4342, %v4338
        %v4344 = vmul.f32 1.0, %v4343
        %v4345 = vrcp.pop %v4221
        %v4346 = vmul.f32 %v4221, %v4345
        %v4347 = vsub.f32 1.0, %v4346
        %v4348 = vmul.f32 %v4345, %v4347
        %v4349 = vadd.f32 %v4345, %v4348
        %vm4350 = vweird.f32 %v4221
        %vm4351 = vweird.f32 %v4345
        %vm4352 = vmor %vm4350, %vm4351
        %v4353 = vsel %vm4352, %v4345, %v4349
        %v4354 = vand.u32 2147483647, %v4221
        %vm4355 = vcmp.eq.f32.partialorder %v4354, 8.507059e+37
        %v4356 = vand.u32 %v4221, 2147483648
        %v4357 = vor.u32 1.1754944e-38, %v4356
        %v4358 = vsel %vm4355, %v4357, %v4353
        %v4359 = vmul.f32 1.0, %v4358
        %v4360 = vrcp.pop %v4222
        %v4361 = vmul.f32 %v4222, %v4360
        %v4362 = vsub.f32 1.0, %v4361
        %v4363 = vmul.f32 %v4360, %v4362
        %v4364 = vadd.f32 %v4360, %v4363
        %vm4365 = vweird.f32 %v4222
        %vm4366 = vweird.f32 %v4360
        %vm4367 = vmor %vm4365, %vm4366
        %v4368 = vsel %vm4367, %v4360, %v4364
        %v4369 = vand.u32 2147483647, %v4222
        %vm4370 = vcmp.eq.f32.partialorder %v4369, 8.507059e+37
        %v4371 = vand.u32 %v4222, 2147483648
        %v4372 = vor.u32 1.1754944e-38, %v4371
        %v4373 = vsel %vm4370, %v4372, %v4368
        %v4374 = vmul.f32 1.0, %v4373
        %v4375 = vrcp.pop %v4223
        %v4376 = vmul.f32 %v4223, %v4375
        %v4377 = vsub.f32 1.0, %v4376
        %v4378 = vmul.f32 %v4375, %v4377
        %v4379 = vadd.f32 %v4375, %v4378
        %vm4380 = vweird.f32 %v4223
        %vm4381 = vweird.f32 %v4375
        %vm4382 = vmor %vm4380, %vm4381
        %v4383 = vsel %vm4382, %v4375, %v4379
        %v4384 = vand.u32 2147483647, %v4223
        %vm4385 = vcmp.eq.f32.partialorder %v4384, 8.507059e+37
        %v4386 = vand.u32 %v4223, 2147483648
        %v4387 = vor.u32 1.1754944e-38, %v4386
        %v4388 = vsel %vm4385, %v4387, %v4383
        %v4389 = vmul.f32 1.0, %v4388
        %v4390 = vrcp.pop %v4224
        %v4391 = vmul.f32 %v4224, %v4390
        %v4392 = vsub.f32 1.0, %v4391
        %v4393 = vmul.f32 %v4390, %v4392
        %v4394 = vadd.f32 %v4390, %v4393
        %vm4395 = vweird.f32 %v4224
        %vm4396 = vweird.f32 %v4390
        %vm4397 = vmor %vm4395, %vm4396
        %v4398 = vsel %vm4397, %v4390, %v4394
        %v4399 = vand.u32 2147483647, %v4224
        %vm4400 = vcmp.eq.f32.partialorder %v4399, 8.507059e+37
        %v4401 = vand.u32 %v4224, 2147483648
        %v4402 = vor.u32 1.1754944e-38, %v4401
        %v4403 = vsel %vm4400, %v4402, %v4398
        %v4404 = vmul.f32 1.0, %v4403
        %v4405 = vmul.f32 %v3394, %v4239
        %v4406 = vmul.f32 %v3446, %v4254
        %v4407 = vmul.f32 %v3498, %v4269
        %v4408 = vmul.f32 %v3550, %v4284
        %v4409 = vmul.f32 %v3602, %v4299
        %v4410 = vmul.f32 %v3654, %v4314
        %v4411 = vmul.f32 %v3706, %v4329
        %v4412 = vmul.f32 %v3758, %v4344
        %v4413 = vmul.f32 %v3810, %v4359
        %v4414 = vmul.f32 %v3862, %v4374
        %v4415 = vmul.f32 %v3914, %v4389
        %v4416 = vmul.f32 %v3966, %v4404
        %v4417 = vmin.f32 %v4018, 0.0
        %v4418 = vmin.f32 %v4070, 0.0
        %v4419 = vmin.f32 %v4122, 0.0
        %v4420 = vmin.f32 %v4174, 0.0
        %v4421 = vand.u32 2147483647, %v4018
        %v4422 = vand.u32 2147483647, %v4070
        %v4423 = vand.u32 2147483647, %v4122
        %v4424 = vand.u32 2147483647, %v4174
        %v4425 = vsub.f32 0.0, %v4421
        %v4426 = vsub.f32 0.0, %v4422
        %v4427 = vsub.f32 0.0, %v4423
        %v4428 = vsub.f32 0.0, %v4424
        %v4429 = vmul.f32 %v4425, 1.442695
        %v4430 = vpow.pop %v4429
        %v4431 = vmul.f32 %v4426, 1.442695
        %v4432 = vpow.pop %v4431
        %v4433 = vmul.f32 %v4427, 1.442695
        %v4434 = vpow.pop %v4433
        %v4435 = vmul.f32 %v4428, 1.442695
        %v4436 = vpow.pop %v4435
        %v4437 = vadd.f32 %v4430, 1.0
        %v4438 = vadd.f32 %v4432, 1.0
        %v4439 = vadd.f32 %v4434, 1.0
        %v4440 = vadd.f32 %v4436, 1.0
        %v4441 = vlog2.pop %v4437
        %v4442 = vmul.f32 %v4441, 0.6931472
        %v4443 = vlog2.pop %v4438
        %v4444 = vmul.f32 %v4443, 0.6931472
        %v4445 = vlog2.pop %v4439
        %v4446 = vmul.f32 %v4445, 0.6931472
        %v4447 = vlog2.pop %v4440
        %v4448 = vmul.f32 %v4447, 0.6931472
        %v4449 = vsub.f32 %v4417, %v4442
        %v4450 = vsub.f32 %v4418, %v4444
        %v4451 = vsub.f32 %v4419, %v4446
        %v4452 = vsub.f32 %v4420, %v4448
        %v4453 = vmul.f32 %v4449, 0.0625
        %v4454 = vmul.f32 %v4450, 0.0625
        %v4455 = vmul.f32 %v4451, 0.0625
        %v4456 = vmul.f32 %v4452, 0.0625
        %v4457 = vlaneseq
        %v4458 = vshrl.u32 %v4457, 7
        %v4459 = vlaneseq
        %v4460 = vand.u32 %v4459, 127
        %vm4461 = vcmp.le.s32.totalorder %v4460, %v4458
        %v4462 = vsel %vm4461, 1, 0
        %v4463 = vcvt.s32.f32 %v4462
        %v4464 = vmul.f32 %v4463, 0.088388346
        %vm4465 = vcmask 64512
        %v4467 = vsel %vm4465, %v4463, 0
        %4469 = vmatpush.msra.mxu0 0.0
        %4470 = vmatpush.msra.mxu0 0.0
        %4471 = vmatpush.msra.mxu0 0.0
        %4472 = vmatpush.msra.mxu0 0.0
        %4473 = vmatpush.msra.mxu0 0.0
        %4474 = vmatpush.msra.mxu0 0.0
        %4475 = vmatpush.msra.mxu0 0.0
        %4476 = vmatpush.msra.mxu0 0.0
        %4477 = vmatpush.msra.mxu0 0.0
        %4478 = vmatpush.msra.mxu0 0.0
        %4479 = vmatpush.msra.mxu0 0.0
        %4480 = vmatpush.msra.mxu0 0.0
        %4481 = vmatpush.msra.mxu0 0.0
        %4482 = vmatpush.msra.mxu0 0.0
        %4483 = vmatpush.msra.mxu0 0.0
        %4484 = vmatpush.msra.mxu0 %v4453
        %4485 = vmatmul.f32.gmra.mxu0 %v4467
        %v4486 = vpop.f32.mrf.mxu0
        %v4487 = vadd.f32 0.0, %v4486
        %4488 = vdwg.mxu0
        %4489 = vmatpush.msra.mxu0 0.0
        %4490 = vmatpush.msra.mxu0 0.0
        %4491 = vmatpush.msra.mxu0 0.0
        %4492 = vmatpush.msra.mxu0 0.0
        %4493 = vmatpush.msra.mxu0 0.0
        %4494 = vmatpush.msra.mxu0 0.0
        %4495 = vmatpush.msra.mxu0 0.0
        %4496 = vmatpush.msra.mxu0 0.0
        %4497 = vmatpush.msra.mxu0 0.0
        %4498 = vmatpush.msra.mxu0 0.0
        %4499 = vmatpush.msra.mxu0 0.0
        %4500 = vmatpush.msra.mxu0 0.0
        %4501 = vmatpush.msra.mxu0 0.0
        %4502 = vmatpush.msra.mxu0 0.0
        %4503 = vmatpush.msra.mxu0 0.0
        %4504 = vmatpush.msra.mxu0 %v4454
        %4505 = vmatmul.f32.gmra.mxu0 %v4467
        %v4506 = vpop.f32.mrf.mxu0
        %v4507 = vadd.f32 0.0, %v4506
        %4508 = vdwg.mxu0
        %4509 = vmatpush.msra.mxu0 0.0
        %4510 = vmatpush.msra.mxu0 0.0
        %4511 = vmatpush.msra.mxu0 0.0
        %4512 = vmatpush.msra.mxu0 0.0
        %4513 = vmatpush.msra.mxu0 0.0
        %4514 = vmatpush.msra.mxu0 0.0
        %4515 = vmatpush.msra.mxu0 0.0
        %4516 = vmatpush.msra.mxu0 0.0
        %4517 = vmatpush.msra.mxu0 0.0
        %4518 = vmatpush.msra.mxu0 0.0
        %4519 = vmatpush.msra.mxu0 0.0
        %4520 = vmatpush.msra.mxu0 0.0
        %4521 = vmatpush.msra.mxu0 0.0
        %4522 = vmatpush.msra.mxu0 0.0
        %4523 = vmatpush.msra.mxu0 0.0
        %4524 = vmatpush.msra.mxu0 %v4455
        %4525 = vmatmul.f32.gmra.mxu0 %v4467
        %v4526 = vpop.f32.mrf.mxu0
        %v4527 = vadd.f32 0.0, %v4526
        %4528 = vdwg.mxu0
        %4529 = vmatpush.msra.mxu0 0.0
        %4530 = vmatpush.msra.mxu0 0.0
        %4531 = vmatpush.msra.mxu0 0.0
        %4532 = vmatpush.msra.mxu0 0.0
        %4533 = vmatpush.msra.mxu0 0.0
        %4534 = vmatpush.msra.mxu0 0.0
        %4535 = vmatpush.msra.mxu0 0.0
        %4536 = vmatpush.msra.mxu0 0.0
        %4537 = vmatpush.msra.mxu0 0.0
        %4538 = vmatpush.msra.mxu0 0.0
        %4539 = vmatpush.msra.mxu0 0.0
        %4540 = vmatpush.msra.mxu0 0.0
        %4541 = vmatpush.msra.mxu0 0.0
        %4542 = vmatpush.msra.mxu0 0.0
        %4543 = vmatpush.msra.mxu0 0.0
        %4544 = vmatpush.msra.mxu0 %v4456
        %4545 = vmatmul.f32.gmra.mxu0 %v4467
        %v4546 = vpop.f32.mrf.mxu0
        %v4547 = vadd.f32 0.0, %v4546
        %4548 = vdwg.mxu0
        %v4549 = vmul.f32 %v4487, 1.442695
        %v4550 = vpow.pop %v4549
        %v4551 = vmul.f32 %v4507, 1.442695
        %v4552 = vpow.pop %v4551
        %v4553 = vmul.f32 %v4527, 1.442695
        %v4554 = vpow.pop %v4553
        %v4555 = vmul.f32 %v4547, 1.442695
        %v4556 = vpow.pop %v4555
        %v4557 = vmul.f32 %v4453, 1.442695
        %v4558 = vpow.pop %v4557
        %v4559 = vmul.f32 %v4454, 1.442695
        %v4560 = vpow.pop %v4559
        %v4561 = vmul.f32 %v4455, 1.442695
        %v4562 = vpow.pop %v4561
        %v4563 = vmul.f32 %v4456, 1.442695
        %v4564 = vpow.pop %v4563
        %v4565 = vsub.f32 1.0, %v4558
        %v4566 = vsub.f32 1.0, %v4560
        %v4567 = vsub.f32 1.0, %v4562
        %v4568 = vsub.f32 1.0, %v4564
        %v4569 = vsub.f32 0.0, %v4487
        %v4570 = vsub.f32 0.0, %v4507
        %v4571 = vsub.f32 0.0, %v4527
        %v4572 = vsub.f32 0.0, %v4547
        %v4573 = vmul.f32 %v4569, 1.442695
        %v4574 = vpow.pop %v4573
        %v4575 = vmul.f32 %v4570, 1.442695
        %v4576 = vpow.pop %v4575
        %v4577 = vmul.f32 %v4571, 1.442695
        %v4578 = vpow.pop %v4577
        %v4579 = vmul.f32 %v4572, 1.442695
        %v4580 = vpow.pop %v4579
        %v4581 = vmul.f32 %v4565, %v4574
        %v4582 = vmul.f32 %v4566, %v4576
        %v4583 = vmul.f32 %v4567, %v4578
        %v4584 = vmul.f32 %v4568, %v4580
        %v4585 = vpack.c.bf16 %v4405, %v4405
        %v4586 = vpack.c.bf16 %v4409, %v4409
        %4587 = vmatpush.bf16.xpose.msra.mxu0 0
        %4588 = vmatpush.bf16.xpose.msra.mxu0 0
        %4589 = vmatpush.bf16.xpose.msra.mxu0 0
        %4590 = vmatpush.bf16.xpose.msra.mxu0 0
        %4591 = vmatpush.bf16.xpose.msra.mxu0 0
        %4592 = vmatpush.bf16.xpose.msra.mxu0 0
        %4593 = vmatpush.bf16.xpose.msra.mxu0 0
        %4594 = vmatpush.bf16.xpose.msra.mxu0 %v4586
        %4595 = vmatmul.bf16.gmra.mxu0 %v4585
        %v4596 = vpop.f32.mrf.mxu0
        %v4597 = vadd.f32 0.0, %v4596
        %v4598 = vpop.f32.mrf.mxu0
        %4599 = vdwg.mxu0
        %v4600 = vmul.f32 %v4597, %v4464
        %v4601 = vpack.c.bf16 %v4600, %v4600
        %v4602 = vpack.c.bf16 %v4581, %v4581
        %v4604 = vsel %vm4465, %v4601, 0
        %vm4606 = vcmask 1043456
        %v4608 = vsel %vm4606, %v4602, 0
        %4610 = vmatpush.bf16.msra.mxu0 0
        %4611 = vmatpush.bf16.msra.mxu0 0
        %4612 = vmatpush.bf16.msra.mxu0 0
        %4613 = vmatpush.bf16.msra.mxu0 0
        %4614 = vmatpush.bf16.msra.mxu0 0
        %4615 = vmatpush.bf16.msra.mxu0 0
        %4616 = vmatpush.bf16.msra.mxu0 0
        %4617 = vmatpush.bf16.msra.mxu0 %v4608
        %4618 = vmatmul.bf16.gmra.mxu0 %v4604
        %v4619 = vpop.f32.mrf.mxu0
        %v4620 = vadd.f32 0.0, %v4619
        %v4621 = vpop.f32.mrf.mxu0
        %4622 = vdwg.mxu0
        %v4623 = vmul.f32 %v4550, %v4620
        %4624 = vmax.xlane.f32.xlu0 %v4623
        %v4625 = vpop.xlane.xlu0 %4624
        %v4626 = vsub.f32 %v4623, %v4625
        %v4627 = vmul.f32 %v4626, 1.442695
        %v4628 = vpow.pop %v4627
        %4629 = vadd.xlane.f32.xlu0 %v4628
        %v4630 = vpop.xlane.xlu0 %4629
        %v4631 = vrcp.pop %v4630
        %v4632 = vmul.f32 %v4628, %v4631
        %v4633 = vmul.f32 %v4632, %v4550
        %v4634 = vpack.c.bf16 %v4633, %v4633
        %4635 = vmatpush.bf16.xpose.msra.mxu0 0
        %4636 = vmatpush.bf16.xpose.msra.mxu0 0
        %4637 = vmatpush.bf16.xpose.msra.mxu0 0
        %4638 = vmatpush.bf16.xpose.msra.mxu0 0
        %4639 = vmatpush.bf16.xpose.msra.mxu0 0
        %4640 = vmatpush.bf16.xpose.msra.mxu0 0
        %4641 = vmatpush.bf16.xpose.msra.mxu0 0
        %4642 = vmatpush.bf16.xpose.msra.mxu0 %v4602
        %4643 = vmatmul.bf16.gmra.mxu0 %v4634
        %v4644 = vpop.f32.mrf.mxu0
        %v4645 = vadd.f32 0.0, %v4644
        %v4646 = vpop.f32.mrf.mxu0
        %4647 = vdwg.mxu0
        %v4648 = vmul.f32 %v4645, %v4463
        %v4649 = vpack.c.bf16 %v4648, %v4648
        %v4650 = vpack.c.bf16 %v4413, %v4413
        %v4652 = vsel %vm4465, %v4649, 0
        %v4655 = vsel %vm4606, %v4650, 0
        %4657 = vmatpush.bf16.msra.mxu0 0
        %4658 = vmatpush.bf16.msra.mxu0 0
        %4659 = vmatpush.bf16.msra.mxu0 0
        %4660 = vmatpush.bf16.msra.mxu0 0
        %4661 = vmatpush.bf16.msra.mxu0 0
        %4662 = vmatpush.bf16.msra.mxu0 0
        %4663 = vmatpush.bf16.msra.mxu0 0
        %4664 = vmatpush.bf16.msra.mxu0 %v4655
        %4665 = vmatmul.bf16.gmra.mxu0 %v4652
        %v4666 = vpop.f32.mrf.mxu0
        %v4667 = vadd.f32 0.0, %v4666
        %v4668 = vpop.f32.mrf.mxu0
        %4669 = vdwg.mxu0
        %v4670 = vpack.c.bf16 %v4406, %v4406
        %v4671 = vpack.c.bf16 %v4410, %v4410
        %4672 = vmatpush.bf16.xpose.msra.mxu0 0
        %4673 = vmatpush.bf16.xpose.msra.mxu0 0
        %4674 = vmatpush.bf16.xpose.msra.mxu0 0
        %4675 = vmatpush.bf16.xpose.msra.mxu0 0
        %4676 = vmatpush.bf16.xpose.msra.mxu0 0
        %4677 = vmatpush.bf16.xpose.msra.mxu0 0
        %4678 = vmatpush.bf16.xpose.msra.mxu0 0
        %4679 = vmatpush.bf16.xpose.msra.mxu0 %v4671
        %4680 = vmatmul.bf16.gmra.mxu0 %v4670
        %v4681 = vpop.f32.mrf.mxu0
        %v4682 = vadd.f32 0.0, %v4681
        %v4683 = vpop.f32.mrf.mxu0
        %4684 = vdwg.mxu0
        %v4685 = vmul.f32 %v4682, %v4464
        %v4686 = vpack.c.bf16 %v4685, %v4685
        %v4687 = vpack.c.bf16 %v4582, %v4582
        %v4689 = vsel %vm4465, %v4686, 0
        %v4692 = vsel %vm4606, %v4687, 0
        %4694 = vmatpush.bf16.msra.mxu0 0
        %4695 = vmatpush.bf16.msra.mxu0 0
        %4696 = vmatpush.bf16.msra.mxu0 0
        %4697 = vmatpush.bf16.msra.mxu0 0
        %4698 = vmatpush.bf16.msra.mxu0 0
        %4699 = vmatpush.bf16.msra.mxu0 0
        %4700 = vmatpush.bf16.msra.mxu0 0
        %4701 = vmatpush.bf16.msra.mxu0 %v4692
        %4702 = vmatmul.bf16.gmra.mxu0 %v4689
        %v4703 = vpop.f32.mrf.mxu0
        %v4704 = vadd.f32 0.0, %v4703
        %v4705 = vpop.f32.mrf.mxu0
        %4706 = vdwg.mxu0
        %v4707 = vmul.f32 %v4552, %v4704
        %4708 = vmax.xlane.f32.xlu0 %v4707
        %v4709 = vpop.xlane.xlu0 %4708
        %v4710 = vsub.f32 %v4707, %v4709
        %v4711 = vmul.f32 %v4710, 1.442695
        %v4712 = vpow.pop %v4711
        %4713 = vadd.xlane.f32.xlu0 %v4712
        %v4714 = vpop.xlane.xlu0 %4713
        %v4715 = vrcp.pop %v4714
        %v4716 = vmul.f32 %v4712, %v4715
        %v4717 = vmul.f32 %v4716, %v4552
        %v4718 = vpack.c.bf16 %v4717, %v4717
        %4719 = vmatpush.bf16.xpose.msra.mxu0 0
        %4720 = vmatpush.bf16.xpose.msra.mxu0 0
        %4721 = vmatpush.bf16.xpose.msra.mxu0 0
        %4722 = vmatpush.bf16.xpose.msra.mxu0 0
        %4723 = vmatpush.bf16.xpose.msra.mxu0 0
        %4724 = vmatpush.bf16.xpose.msra.mxu0 0
        %4725 = vmatpush.bf16.xpose.msra.mxu0 0
        %4726 = vmatpush.bf16.xpose.msra.mxu0 %v4687
        %4727 = vmatmul.bf16.gmra.mxu0 %v4718
        %v4728 = vpop.f32.mrf.mxu0
        %v4729 = vadd.f32 0.0, %v4728
        %v4730 = vpop.f32.mrf.mxu0
        %4731 = vdwg.mxu0
        %v4732 = vmul.f32 %v4729, %v4463
        %v4733 = vpack.c.bf16 %v4732, %v4732
        %v4734 = vpack.c.bf16 %v4414, %v4414
        %v4736 = vsel %vm4465, %v4733, 0
        %v4739 = vsel %vm4606, %v4734, 0
        %4741 = vmatpush.bf16.msra.mxu0 0
        %4742 = vmatpush.bf16.msra.mxu0 0
        %4743 = vmatpush.bf16.msra.mxu0 0
        %4744 = vmatpush.bf16.msra.mxu0 0
        %4745 = vmatpush.bf16.msra.mxu0 0
        %4746 = vmatpush.bf16.msra.mxu0 0
        %4747 = vmatpush.bf16.msra.mxu0 0
        %4748 = vmatpush.bf16.msra.mxu0 %v4739
        %4749 = vmatmul.bf16.gmra.mxu0 %v4736
        %v4750 = vpop.f32.mrf.mxu0
        %v4751 = vadd.f32 0.0, %v4750
        %v4752 = vpop.f32.mrf.mxu0
        %4753 = vdwg.mxu0
        %v4754 = vpack.c.bf16 %v4407, %v4407
        %v4755 = vpack.c.bf16 %v4411, %v4411
        %4756 = vmatpush.bf16.xpose.msra.mxu0 0
        %4757 = vmatpush.bf16.xpose.msra.mxu0 0
        %4758 = vmatpush.bf16.xpose.msra.mxu0 0
        %4759 = vmatpush.bf16.xpose.msra.mxu0 0
        %4760 = vmatpush.bf16.xpose.msra.mxu0 0
        %4761 = vmatpush.bf16.xpose.msra.mxu0 0
        %4762 = vmatpush.bf16.xpose.msra.mxu0 0
        %4763 = vmatpush.bf16.xpose.msra.mxu0 %v4755
        %4764 = vmatmul.bf16.gmra.mxu0 %v4754
        %v4765 = vpop.f32.mrf.mxu0
        %v4766 = vadd.f32 0.0, %v4765
        %v4767 = vpop.f32.mrf.mxu0
        %4768 = vdwg.mxu0
        %v4769 = vmul.f32 %v4766, %v4464
        %v4770 = vpack.c.bf16 %v4769, %v4769
        %v4771 = vpack.c.bf16 %v4583, %v4583
        %v4773 = vsel %vm4465, %v4770, 0
        %v4776 = vsel %vm4606, %v4771, 0
        %4778 = vmatpush.bf16.msra.mxu0 0
        %4779 = vmatpush.bf16.msra.mxu0 0
        %4780 = vmatpush.bf16.msra.mxu0 0
        %4781 = vmatpush.bf16.msra.mxu0 0
        %4782 = vmatpush.bf16.msra.mxu0 0
        %4783 = vmatpush.bf16.msra.mxu0 0
        %4784 = vmatpush.bf16.msra.mxu0 0
        %4785 = vmatpush.bf16.msra.mxu0 %v4776
        %4786 = vmatmul.bf16.gmra.mxu0 %v4773
        %v4787 = vpop.f32.mrf.mxu0
        %v4788 = vadd.f32 0.0, %v4787
        %v4789 = vpop.f32.mrf.mxu0
        %4790 = vdwg.mxu0
        %v4791 = vmul.f32 %v4554, %v4788
        %4792 = vmax.xlane.f32.xlu0 %v4791
        %v4793 = vpop.xlane.xlu0 %4792
        %v4794 = vsub.f32 %v4791, %v4793
        %v4795 = vmul.f32 %v4794, 1.442695
        %v4796 = vpow.pop %v4795
        %4797 = vadd.xlane.f32.xlu0 %v4796
        %v4798 = vpop.xlane.xlu0 %4797
        %v4799 = vrcp.pop %v4798
        %v4800 = vmul.f32 %v4796, %v4799
        %v4801 = vmul.f32 %v4800, %v4554
        %v4802 = vpack.c.bf16 %v4801, %v4801
        %4803 = vmatpush.bf16.xpose.msra.mxu0 0
        %4804 = vmatpush.bf16.xpose.msra.mxu0 0
        %4805 = vmatpush.bf16.xpose.msra.mxu0 0
        %4806 = vmatpush.bf16.xpose.msra.mxu0 0
        %4807 = vmatpush.bf16.xpose.msra.mxu0 0
        %4808 = vmatpush.bf16.xpose.msra.mxu0 0
        %4809 = vmatpush.bf16.xpose.msra.mxu0 0
        %4810 = vmatpush.bf16.xpose.msra.mxu0 %v4771
        %4811 = vmatmul.bf16.gmra.mxu0 %v4802
        %v4812 = vpop.f32.mrf.mxu0
        %v4813 = vadd.f32 0.0, %v4812
        %v4814 = vpop.f32.mrf.mxu0
        %4815 = vdwg.mxu0
        %v4816 = vmul.f32 %v4813, %v4463
        %v4817 = vpack.c.bf16 %v4816, %v4816
        %v4818 = vpack.c.bf16 %v4415, %v4415
        %v4820 = vsel %vm4465, %v4817, 0
        %v4823 = vsel %vm4606, %v4818, 0
        %4825 = vmatpush.bf16.msra.mxu0 0
        %4826 = vmatpush.bf16.msra.mxu0 0
        %4827 = vmatpush.bf16.msra.mxu0 0
        %4828 = vmatpush.bf16.msra.mxu0 0
        %4829 = vmatpush.bf16.msra.mxu0 0
        %4830 = vmatpush.bf16.msra.mxu0 0
        %4831 = vmatpush.bf16.msra.mxu0 0
        %4832 = vmatpush.bf16.msra.mxu0 %v4823
        %4833 = vmatmul.bf16.gmra.mxu0 %v4820
        %v4834 = vpop.f32.mrf.mxu0
        %v4835 = vadd.f32 0.0, %v4834
        %v4836 = vpop.f32.mrf.mxu0
        %4837 = vdwg.mxu0
        %v4838 = vpack.c.bf16 %v4408, %v4408
        %v4839 = vpack.c.bf16 %v4412, %v4412
        %4840 = vmatpush.bf16.xpose.msra.mxu0 0
        %4841 = vmatpush.bf16.xpose.msra.mxu0 0
        %4842 = vmatpush.bf16.xpose.msra.mxu0 0
        %4843 = vmatpush.bf16.xpose.msra.mxu0 0
        %4844 = vmatpush.bf16.xpose.msra.mxu0 0
        %4845 = vmatpush.bf16.xpose.msra.mxu0 0
        %4846 = vmatpush.bf16.xpose.msra.mxu0 0
        %4847 = vmatpush.bf16.xpose.msra.mxu0 %v4839
        %4848 = vmatmul.bf16.gmra.mxu0 %v4838
        %v4849 = vpop.f32.mrf.mxu0
        %v4850 = vadd.f32 0.0, %v4849
        %v4851 = vpop.f32.mrf.mxu0
        %4852 = vdwg.mxu0
        %v4853 = vmul.f32 %v4850, %v4464
        %v4854 = vpack.c.bf16 %v4853, %v4853
        %v4855 = vpack.c.bf16 %v4584, %v4584
        %v4857 = vsel %vm4465, %v4854, 0
        %v4860 = vsel %vm4606, %v4855, 0
        %4862 = vmatpush.bf16.msra.mxu0 0
        %4863 = vmatpush.bf16.msra.mxu0 0
        %4864 = vmatpush.bf16.msra.mxu0 0
        %4865 = vmatpush.bf16.msra.mxu0 0
        %4866 = vmatpush.bf16.msra.mxu0 0
        %4867 = vmatpush.bf16.msra.mxu0 0
        %4868 = vmatpush.bf16.msra.mxu0 0
        %4869 = vmatpush.bf16.msra.mxu0 %v4860
        %4870 = vmatmul.bf16.gmra.mxu0 %v4857
        %v4871 = vpop.f32.mrf.mxu0
        %v4872 = vadd.f32 0.0, %v4871
        %v4873 = vpop.f32.mrf.mxu0
        %4874 = vdwg.mxu0
        %v4875 = vmul.f32 %v4556, %v4872
        %4876 = vmax.xlane.f32.xlu0 %v4875
        %v4877 = vpop.xlane.xlu0 %4876
        %v4878 = vsub.f32 %v4875, %v4877
        %v4879 = vmul.f32 %v4878, 1.442695
        %v4880 = vpow.pop %v4879
        %4881 = vadd.xlane.f32.xlu0 %v4880
        %v4882 = vpop.xlane.xlu0 %4881
        %v4883 = vrcp.pop %v4882
        %v4884 = vmul.f32 %v4880, %v4883
        %v4885 = vmul.f32 %v4884, %v4556
        %v4886 = vpack.c.bf16 %v4885, %v4885
        %4887 = vmatpush.bf16.xpose.msra.mxu0 0
        %4888 = vmatpush.bf16.xpose.msra.mxu0 0
        %4889 = vmatpush.bf16.xpose.msra.mxu0 0
        %4890 = vmatpush.bf16.xpose.msra.mxu0 0
        %4891 = vmatpush.bf16.xpose.msra.mxu0 0
        %4892 = vmatpush.bf16.xpose.msra.mxu0 0
        %4893 = vmatpush.bf16.xpose.msra.mxu0 0
        %4894 = vmatpush.bf16.xpose.msra.mxu0 %v4855
        %4895 = vmatmul.bf16.gmra.mxu0 %v4886
        %v4896 = vpop.f32.mrf.mxu0
        %v4897 = vadd.f32 0.0, %v4896
        %v4898 = vpop.f32.mrf.mxu0
        %4899 = vdwg.mxu0
        %v4900 = vmul.f32 %v4897, %v4463
        %v4901 = vpack.c.bf16 %v4900, %v4900
        %v4902 = vpack.c.bf16 %v4416, %v4416
        %v4904 = vsel %vm4465, %v4901, 0
        %v4907 = vsel %vm4606, %v4902, 0
        %4909 = vmatpush.bf16.msra.mxu0 0
        %4910 = vmatpush.bf16.msra.mxu0 0
        %4911 = vmatpush.bf16.msra.mxu0 0
        %4912 = vmatpush.bf16.msra.mxu0 0
        %4913 = vmatpush.bf16.msra.mxu0 0
        %4914 = vmatpush.bf16.msra.mxu0 0
        %4915 = vmatpush.bf16.msra.mxu0 0
        %4916 = vmatpush.bf16.msra.mxu0 %v4907
        %4917 = vmatmul.bf16.gmra.mxu0 %v4904
        %v4918 = vpop.f32.mrf.mxu0
        %v4919 = vadd.f32 0.0, %v4918
        %v4920 = vpop.f32.mrf.mxu0
        %4921 = vdwg.mxu0
        %v4922 = vxor.u32 %v4667, 2147483648
        %v4923 = vxor.u32 %v4751, 2147483648
        %v4924 = vxor.u32 %v4835, 2147483648
        %v4925 = vxor.u32 %v4919, 2147483648
        %v4926 = vmul.f32 %v4922, 1.442695
        %v4927 = vpow.pop %v4926
        %v4928 = vmul.f32 %v4923, 1.442695
        %v4929 = vpow.pop %v4928
        %v4930 = vmul.f32 %v4924, 1.442695
        %v4931 = vpow.pop %v4930
        %v4932 = vmul.f32 %v4925, 1.442695
        %v4933 = vpow.pop %v4932
        %v4934 = vadd.f32 %v4927, 1.0
        %v4935 = vadd.f32 %v4929, 1.0
        %v4936 = vadd.f32 %v4931, 1.0
        %v4937 = vadd.f32 %v4933, 1.0
        %v4938 = vrcp.pop %v4934
        %v4939 = vmul.f32 %v4934, %v4938
        %v4940 = vsub.f32 1.0, %v4939
        %v4941 = vmul.f32 %v4938, %v4940
        %v4942 = vadd.f32 %v4938, %v4941
        %vm4943 = vweird.f32 %v4934
        %vm4944 = vweird.f32 %v4938
        %vm4945 = vmor %vm4943, %vm4944
        %v4946 = vsel %vm4945, %v4938, %v4942
        %v4947 = vand.u32 2147483647, %v4934
        %vm4948 = vcmp.eq.f32.partialorder %v4947, 8.507059e+37
        %v4949 = vand.u32 %v4934, 2147483648
        %v4950 = vor.u32 1.1754944e-38, %v4949
        %v4951 = vsel %vm4948, %v4950, %v4946
        %v4952 = vmul.f32 1.0, %v4951
        %v4953 = vrcp.pop %v4935
        %v4954 = vmul.f32 %v4935, %v4953
        %v4955 = vsub.f32 1.0, %v4954
        %v4956 = vmul.f32 %v4953, %v4955
        %v4957 = vadd.f32 %v4953, %v4956
        %vm4958 = vweird.f32 %v4935
        %vm4959 = vweird.f32 %v4953
        %vm4960 = vmor %vm4958, %vm4959
        %v4961 = vsel %vm4960, %v4953, %v4957
        %v4962 = vand.u32 2147483647, %v4935
        %vm4963 = vcmp.eq.f32.partialorder %v4962, 8.507059e+37
        %v4964 = vand.u32 %v4935, 2147483648
        %v4965 = vor.u32 1.1754944e-38, %v4964
        %v4966 = vsel %vm4963, %v4965, %v4961
        %v4967 = vmul.f32 1.0, %v4966
        %v4968 = vrcp.pop %v4936
        %v4969 = vmul.f32 %v4936, %v4968
        %v4970 = vsub.f32 1.0, %v4969
        %v4971 = vmul.f32 %v4968, %v4970
        %v4972 = vadd.f32 %v4968, %v4971
        %vm4973 = vweird.f32 %v4936
        %vm4974 = vweird.f32 %v4968
        %vm4975 = vmor %vm4973, %vm4974
        %v4976 = vsel %vm4975, %v4968, %v4972
        %v4977 = vand.u32 2147483647, %v4936
        %vm4978 = vcmp.eq.f32.partialorder %v4977, 8.507059e+37
        %v4979 = vand.u32 %v4936, 2147483648
        %v4980 = vor.u32 1.1754944e-38, %v4979
        %v4981 = vsel %vm4978, %v4980, %v4976
        %v4982 = vmul.f32 1.0, %v4981
        %v4983 = vrcp.pop %v4937
        %v4984 = vmul.f32 %v4937, %v4983
        %v4985 = vsub.f32 1.0, %v4984
        %v4986 = vmul.f32 %v4983, %v4985
        %v4987 = vadd.f32 %v4983, %v4986
        %vm4988 = vweird.f32 %v4937
        %vm4989 = vweird.f32 %v4983
        %vm4990 = vmor %vm4988, %vm4989
        %v4991 = vsel %vm4990, %v4983, %v4987
        %v4992 = vand.u32 2147483647, %v4937
        %vm4993 = vcmp.eq.f32.partialorder %v4992, 8.507059e+37
        %v4994 = vand.u32 %v4937, 2147483648
        %v4995 = vor.u32 1.1754944e-38, %v4994
        %v4996 = vsel %vm4993, %v4995, %v4991
        %v4997 = vmul.f32 1.0, %v4996
        %v4998 = vmul.f32 %v4667, %v4952
        %v4999 = vmul.f32 %v4751, %v4967
        %v5000 = vmul.f32 %v4835, %v4982
        %v5001 = vmul.f32 %v4919, %v4997
        %v5002 = vmul.f32 %v4998, %v4998
        %v5003 = vmul.f32 %v4999, %v4999
        %v5004 = vmul.f32 %v5000, %v5000
        %v5005 = vmul.f32 %v5001, %v5001
        %v5006 = vadd.f32 %v5002, %v5003
        %v5007 = vadd.f32 %v5006, %v5004
        %v5008 = vadd.f32 %v5007, %v5005
        %5009 = vadd.xlane.f32.xlu0 %v5008
        %v5010 = vpop.xlane.xlu0 %5009
        %v5011 = vrcp.pop 512.0
        %v5012 = vmul.f32 512.0, %v5011
        %v5013 = vsub.f32 1.0, %v5012
        %v5014 = vmul.f32 %v5011, %v5013
        %v5015 = vadd.f32 %v5011, %v5014
        %vm5016 = vweird.f32 %v5011
        %v5017 = vsel %vm5016, %v5011, %v5015
        %v5018 = vmul.f32 %v5010, %v5017
        %v5019 = vadd.f32 %v5018, 1e-05
        %v5020 = vrsqrt.pop %v5019
        %v5021 = vmul.f32 %v5020, %v5019
        %v5022 = vmul.f32 %v5021, %v5020
        %v5023 = vmul.f32 0.5, %v5022
        %v5024 = vsub.f32 1.5, %v5023
        %v5025 = vmul.f32 %v5020, %v5024
        %vm5026 = vweird.f32 %v5019
        %vm5027 = vweird.f32 %v5020
        %vm5028 = vmor %vm5026, %vm5027
        %v5029 = vsel %vm5028, %v5020, %v5025
        %v5030 = vmul.f32 %v4998, %v5029
        %v5031 = vmul.f32 %v4999, %v5029
        %v5032 = vmul.f32 %v5000, %v5029
        %v5033 = vmul.f32 %v5001, %v5029
        %v5034 = vld [vmem:[#allocation8] sm:$0xf]
        %v5036 = vperm.slane %v5034, 0
        %v5037 = vperm.slane %v5034, 1
        %v5038 = vperm.slane %v5034, 2
        %v5039 = vperm.slane %v5034, 3
        %v5044 = vmul.f32 %v5030, %v5036
        %v5045 = vmul.f32 %v5031, %v5037
        %v5046 = vmul.f32 %v5032, %v5038
        %v5047 = vmul.f32 %v5033, %v5039
        %v5048 = vld [vmem:[#allocation7] sm:$0xff]
        %v5049 = vld [vmem:[#allocation7 + $0x8] sm:$0xff]
        %v5050 = vld [vmem:[#allocation7 + $0x10] sm:$0xff]
        %v5051 = vld [vmem:[#allocation7 + $0x18] sm:$0xff]
        %v5052 = vld [vmem:[#allocation7 + $0x20] sm:$0xff]
        %v5053 = vld [vmem:[#allocation7 + $0x28] sm:$0xff]
        %v5054 = vld [vmem:[#allocation7 + $0x30] sm:$0xff]
        %v5055 = vld [vmem:[#allocation7 + $0x38] sm:$0xff]
        %v5056 = vld [vmem:[#allocation7 + $0x40] sm:$0xff]
        %v5057 = vld [vmem:[#allocation7 + $0x48] sm:$0xff]
        %v5058 = vld [vmem:[#allocation7 + $0x50] sm:$0xff]
        %v5059 = vld [vmem:[#allocation7 + $0x58] sm:$0xff]
        %v5060 = vld [vmem:[#allocation7 + $0x60] sm:$0xff]
        %v5061 = vld [vmem:[#allocation7 + $0x68] sm:$0xff]
        %v5062 = vld [vmem:[#allocation7 + $0x70] sm:$0xff]
        %v5063 = vld [vmem:[#allocation7 + $0x78] sm:$0xff]
        %v5064 = vld [vmem:[#allocation7 + $0x80] sm:$0xff]
        %v5065 = vld [vmem:[#allocation7 + $0x88] sm:$0xff]
        %v5066 = vld [vmem:[#allocation7 + $0x90] sm:$0xff]
        %v5067 = vld [vmem:[#allocation7 + $0x98] sm:$0xff]
        %v5068 = vld [vmem:[#allocation7 + $0xa0] sm:$0xff]
        %v5069 = vld [vmem:[#allocation7 + $0xa8] sm:$0xff]
        %v5070 = vld [vmem:[#allocation7 + $0xb0] sm:$0xff]
        %v5071 = vld [vmem:[#allocation7 + $0xb8] sm:$0xff]
        %v5072 = vld [vmem:[#allocation7 + $0xc0] sm:$0xff]
        %v5073 = vld [vmem:[#allocation7 + $0xc8] sm:$0xff]
        %v5074 = vld [vmem:[#allocation7 + $0xd0] sm:$0xff]
        %v5075 = vld [vmem:[#allocation7 + $0xd8] sm:$0xff]
        %v5076 = vld [vmem:[#allocation7 + $0xe0] sm:$0xff]
        %v5077 = vld [vmem:[#allocation7 + $0xe8] sm:$0xff]
        %v5078 = vld [vmem:[#allocation7 + $0xf0] sm:$0xff]
        %v5079 = vld [vmem:[#allocation7 + $0xf8] sm:$0xff]
        %v5080 = vld [vmem:[#allocation7 + $0x100] sm:$0xff]
        %v5081 = vld [vmem:[#allocation7 + $0x108] sm:$0xff]
        %v5082 = vld [vmem:[#allocation7 + $0x110] sm:$0xff]
        %v5083 = vld [vmem:[#allocation7 + $0x118] sm:$0xff]
        %v5084 = vld [vmem:[#allocation7 + $0x120] sm:$0xff]
        %v5085 = vld [vmem:[#allocation7 + $0x128] sm:$0xff]
        %v5086 = vld [vmem:[#allocation7 + $0x130] sm:$0xff]
        %v5087 = vld [vmem:[#allocation7 + $0x138] sm:$0xff]
        %v5088 = vld [vmem:[#allocation7 + $0x140] sm:$0xff]
        %v5089 = vld [vmem:[#allocation7 + $0x148] sm:$0xff]
        %v5090 = vld [vmem:[#allocation7 + $0x150] sm:$0xff]
        %v5091 = vld [vmem:[#allocation7 + $0x158] sm:$0xff]
        %v5092 = vld [vmem:[#allocation7 + $0x160] sm:$0xff]
        %v5093 = vld [vmem:[#allocation7 + $0x168] sm:$0xff]
        %v5094 = vld [vmem:[#allocation7 + $0x170] sm:$0xff]
        %v5095 = vld [vmem:[#allocation7 + $0x178] sm:$0xff]
        %v5096 = vld [vmem:[#allocation7 + $0x180] sm:$0xff]
        %v5097 = vld [vmem:[#allocation7 + $0x188] sm:$0xff]
        %v5098 = vld [vmem:[#allocation7 + $0x190] sm:$0xff]
        %v5099 = vld [vmem:[#allocation7 + $0x198] sm:$0xff]
        %v5100 = vld [vmem:[#allocation7 + $0x1a0] sm:$0xff]
        %v5101 = vld [vmem:[#allocation7 + $0x1a8] sm:$0xff]
        %v5102 = vld [vmem:[#allocation7 + $0x1b0] sm:$0xff]
        %v5103 = vld [vmem:[#allocation7 + $0x1b8] sm:$0xff]
        %v5104 = vld [vmem:[#allocation7 + $0x1c0] sm:$0xff]
        %v5105 = vld [vmem:[#allocation7 + $0x1c8] sm:$0xff]
        %v5106 = vld [vmem:[#allocation7 + $0x1d0] sm:$0xff]
        %v5107 = vld [vmem:[#allocation7 + $0x1d8] sm:$0xff]
        %v5108 = vld [vmem:[#allocation7 + $0x1e0] sm:$0xff]
        %v5109 = vld [vmem:[#allocation7 + $0x1e8] sm:$0xff]
        %v5110 = vld [vmem:[#allocation7 + $0x1f0] sm:$0xff]
        %v5111 = vld [vmem:[#allocation7 + $0x1f8] sm:$0xff]
        %v5112 = vld [vmem:[#allocation7 + $0x200] sm:$0xff]
        %v5113 = vld [vmem:[#allocation7 + $0x208] sm:$0xff]
        %v5114 = vld [vmem:[#allocation7 + $0x210] sm:$0xff]
        %v5115 = vld [vmem:[#allocation7 + $0x218] sm:$0xff]
        %v5116 = vld [vmem:[#allocation7 + $0x220] sm:$0xff]
        %v5117 = vld [vmem:[#allocation7 + $0x228] sm:$0xff]
        %v5118 = vld [vmem:[#allocation7 + $0x230] sm:$0xff]
        %v5119 = vld [vmem:[#allocation7 + $0x238] sm:$0xff]
        %v5120 = vld [vmem:[#allocation7 + $0x240] sm:$0xff]
        %v5121 = vld [vmem:[#allocation7 + $0x248] sm:$0xff]
        %v5122 = vld [vmem:[#allocation7 + $0x250] sm:$0xff]
        %v5123 = vld [vmem:[#allocation7 + $0x258] sm:$0xff]
        %v5124 = vld [vmem:[#allocation7 + $0x260] sm:$0xff]
        %v5125 = vld [vmem:[#allocation7 + $0x268] sm:$0xff]
        %v5126 = vld [vmem:[#allocation7 + $0x270] sm:$0xff]
        %v5127 = vld [vmem:[#allocation7 + $0x278] sm:$0xff]
        %v5128 = vld [vmem:[#allocation7 + $0x280] sm:$0xff]
        %v5129 = vld [vmem:[#allocation7 + $0x288] sm:$0xff]
        %v5130 = vld [vmem:[#allocation7 + $0x290] sm:$0xff]
        %v5131 = vld [vmem:[#allocation7 + $0x298] sm:$0xff]
        %v5132 = vld [vmem:[#allocation7 + $0x2a0] sm:$0xff]
        %v5133 = vld [vmem:[#allocation7 + $0x2a8] sm:$0xff]
        %v5134 = vld [vmem:[#allocation7 + $0x2b0] sm:$0xff]
        %v5135 = vld [vmem:[#allocation7 + $0x2b8] sm:$0xff]
        %v5136 = vld [vmem:[#allocation7 + $0x2c0] sm:$0xff]
        %v5137 = vld [vmem:[#allocation7 + $0x2c8] sm:$0xff]
        %v5138 = vld [vmem:[#allocation7 + $0x2d0] sm:$0xff]
        %v5139 = vld [vmem:[#allocation7 + $0x2d8] sm:$0xff]
        %v5140 = vld [vmem:[#allocation7 + $0x2e0] sm:$0xff]
        %v5141 = vld [vmem:[#allocation7 + $0x2e8] sm:$0xff]
        %v5142 = vld [vmem:[#allocation7 + $0x2f0] sm:$0xff]
        %v5143 = vld [vmem:[#allocation7 + $0x2f8] sm:$0xff]
        %v5144 = vld [vmem:[#allocation7 + $0x300] sm:$0xff]
        %v5145 = vld [vmem:[#allocation7 + $0x308] sm:$0xff]
        %v5146 = vld [vmem:[#allocation7 + $0x310] sm:$0xff]
        %v5147 = vld [vmem:[#allocation7 + $0x318] sm:$0xff]
        %v5148 = vld [vmem:[#allocation7 + $0x320] sm:$0xff]
        %v5149 = vld [vmem:[#allocation7 + $0x328] sm:$0xff]
        %v5150 = vld [vmem:[#allocation7 + $0x330] sm:$0xff]
        %v5151 = vld [vmem:[#allocation7 + $0x338] sm:$0xff]
        %v5152 = vld [vmem:[#allocation7 + $0x340] sm:$0xff]
        %v5153 = vld [vmem:[#allocation7 + $0x348] sm:$0xff]
        %v5154 = vld [vmem:[#allocation7 + $0x350] sm:$0xff]
        %v5155 = vld [vmem:[#allocation7 + $0x358] sm:$0xff]
        %v5156 = vld [vmem:[#allocation7 + $0x360] sm:$0xff]
        %v5157 = vld [vmem:[#allocation7 + $0x368] sm:$0xff]
        %v5158 = vld [vmem:[#allocation7 + $0x370] sm:$0xff]
        %v5159 = vld [vmem:[#allocation7 + $0x378] sm:$0xff]
        %v5160 = vld [vmem:[#allocation7 + $0x380] sm:$0xff]
        %v5161 = vld [vmem:[#allocation7 + $0x388] sm:$0xff]
        %v5162 = vld [vmem:[#allocation7 + $0x390] sm:$0xff]
        %v5163 = vld [vmem:[#allocation7 + $0x398] sm:$0xff]
        %v5164 = vld [vmem:[#allocation7 + $0x3a0] sm:$0xff]
        %v5165 = vld [vmem:[#allocation7 + $0x3a8] sm:$0xff]
        %v5166 = vld [vmem:[#allocation7 + $0x3b0] sm:$0xff]
        %v5167 = vld [vmem:[#allocation7 + $0x3b8] sm:$0xff]
        %v5168 = vld [vmem:[#allocation7 + $0x3c0] sm:$0xff]
        %v5169 = vld [vmem:[#allocation7 + $0x3c8] sm:$0xff]
        %v5170 = vld [vmem:[#allocation7 + $0x3d0] sm:$0xff]
        %v5171 = vld [vmem:[#allocation7 + $0x3d8] sm:$0xff]
        %v5172 = vld [vmem:[#allocation7 + $0x3e0] sm:$0xff]
        %v5173 = vld [vmem:[#allocation7 + $0x3e8] sm:$0xff]
        %v5174 = vld [vmem:[#allocation7 + $0x3f0] sm:$0xff]
        %v5175 = vld [vmem:[#allocation7 + $0x3f8] sm:$0xff]
        %v5176 = vpack.c.bf16 %v5044, %v5044
        %v5177 = vpack.c.bf16 %v5045, %v5045
        %v5178 = vpack.c.bf16 %v5046, %v5046
        %v5179 = vpack.c.bf16 %v5047, %v5047
        %v5308 = vunpack.c.l.b16 %v5048
        %v5309 = vunpack.c.h.b16 %v5048
        %v5310 = vunpack.c.l.b16 %v5049
        %v5311 = vunpack.c.h.b16 %v5049
        %v5312 = vunpack.c.l.b16 %v5050
        %v5313 = vunpack.c.h.b16 %v5050
        %v5314 = vunpack.c.l.b16 %v5051
        %v5315 = vunpack.c.h.b16 %v5051
        %v5316 = vunpack.c.l.b16 %v5052
        %v5317 = vunpack.c.h.b16 %v5052
        %v5318 = vunpack.c.l.b16 %v5053
        %v5319 = vunpack.c.h.b16 %v5053
        %v5320 = vunpack.c.l.b16 %v5054
        %v5321 = vunpack.c.h.b16 %v5054
        %v5322 = vunpack.c.l.b16 %v5055
        %v5323 = vunpack.c.h.b16 %v5055
        %v5324 = vunpack.c.l.b16 %v5056
        %v5325 = vunpack.c.h.b16 %v5056
        %v5326 = vunpack.c.l.b16 %v5057
        %v5327 = vunpack.c.h.b16 %v5057
        %v5328 = vunpack.c.l.b16 %v5058
        %v5329 = vunpack.c.h.b16 %v5058
        %v5330 = vunpack.c.l.b16 %v5059
        %v5331 = vunpack.c.h.b16 %v5059
        %v5332 = vunpack.c.l.b16 %v5060
        %v5333 = vunpack.c.h.b16 %v5060
        %v5334 = vunpack.c.l.b16 %v5061
        %v5335 = vunpack.c.h.b16 %v5061
        %v5336 = vunpack.c.l.b16 %v5062
        %v5337 = vunpack.c.h.b16 %v5062
        %v5338 = vunpack.c.l.b16 %v5063
        %v5339 = vunpack.c.h.b16 %v5063
        %v5340 = vunpack.c.l.b16 %v5064
        %v5341 = vunpack.c.h.b16 %v5064
        %v5342 = vunpack.c.l.b16 %v5065
        %v5343 = vunpack.c.h.b16 %v5065
        %v5344 = vunpack.c.l.b16 %v5066
        %v5345 = vunpack.c.h.b16 %v5066
        %v5346 = vunpack.c.l.b16 %v5067
        %v5347 = vunpack.c.h.b16 %v5067
        %v5348 = vunpack.c.l.b16 %v5068
        %v5349 = vunpack.c.h.b16 %v5068
        %v5350 = vunpack.c.l.b16 %v5069
        %v5351 = vunpack.c.h.b16 %v5069
        %v5352 = vunpack.c.l.b16 %v5070
        %v5353 = vunpack.c.h.b16 %v5070
        %v5354 = vunpack.c.l.b16 %v5071
        %v5355 = vunpack.c.h.b16 %v5071
        %v5356 = vunpack.c.l.b16 %v5072
        %v5357 = vunpack.c.h.b16 %v5072
        %v5358 = vunpack.c.l.b16 %v5073
        %v5359 = vunpack.c.h.b16 %v5073
        %v5360 = vunpack.c.l.b16 %v5074
        %v5361 = vunpack.c.h.b16 %v5074
        %v5362 = vunpack.c.l.b16 %v5075
        %v5363 = vunpack.c.h.b16 %v5075
        %v5364 = vunpack.c.l.b16 %v5076
        %v5365 = vunpack.c.h.b16 %v5076
        %v5366 = vunpack.c.l.b16 %v5077
        %v5367 = vunpack.c.h.b16 %v5077
        %v5368 = vunpack.c.l.b16 %v5078
        %v5369 = vunpack.c.h.b16 %v5078
        %v5370 = vunpack.c.l.b16 %v5079
        %v5371 = vunpack.c.h.b16 %v5079
        %v5372 = vunpack.c.l.b16 %v5080
        %v5373 = vunpack.c.h.b16 %v5080
        %v5374 = vunpack.c.l.b16 %v5081
        %v5375 = vunpack.c.h.b16 %v5081
        %v5376 = vunpack.c.l.b16 %v5082
        %v5377 = vunpack.c.h.b16 %v5082
        %v5378 = vunpack.c.l.b16 %v5083
        %v5379 = vunpack.c.h.b16 %v5083
        %v5380 = vunpack.c.l.b16 %v5084
        %v5381 = vunpack.c.h.b16 %v5084
        %v5382 = vunpack.c.l.b16 %v5085
        %v5383 = vunpack.c.h.b16 %v5085
        %v5384 = vunpack.c.l.b16 %v5086
        %v5385 = vunpack.c.h.b16 %v5086
        %v5386 = vunpack.c.l.b16 %v5087
        %v5387 = vunpack.c.h.b16 %v5087
        %v5388 = vunpack.c.l.b16 %v5088
        %v5389 = vunpack.c.h.b16 %v5088
        %v5390 = vunpack.c.l.b16 %v5089
        %v5391 = vunpack.c.h.b16 %v5089
        %v5392 = vunpack.c.l.b16 %v5090
        %v5393 = vunpack.c.h.b16 %v5090
        %v5394 = vunpack.c.l.b16 %v5091
        %v5395 = vunpack.c.h.b16 %v5091
        %v5396 = vunpack.c.l.b16 %v5092
        %v5397 = vunpack.c.h.b16 %v5092
        %v5398 = vunpack.c.l.b16 %v5093
        %v5399 = vunpack.c.h.b16 %v5093
        %v5400 = vunpack.c.l.b16 %v5094
        %v5401 = vunpack.c.h.b16 %v5094
        %v5402 = vunpack.c.l.b16 %v5095
        %v5403 = vunpack.c.h.b16 %v5095
        %v5404 = vunpack.c.l.b16 %v5096
        %v5405 = vunpack.c.h.b16 %v5096
        %v5406 = vunpack.c.l.b16 %v5097
        %v5407 = vunpack.c.h.b16 %v5097
        %v5408 = vunpack.c.l.b16 %v5098
        %v5409 = vunpack.c.h.b16 %v5098
        %v5410 = vunpack.c.l.b16 %v5099
        %v5411 = vunpack.c.h.b16 %v5099
        %v5412 = vunpack.c.l.b16 %v5100
        %v5413 = vunpack.c.h.b16 %v5100
        %v5414 = vunpack.c.l.b16 %v5101
        %v5415 = vunpack.c.h.b16 %v5101
        %v5416 = vunpack.c.l.b16 %v5102
        %v5417 = vunpack.c.h.b16 %v5102
        %v5418 = vunpack.c.l.b16 %v5103
        %v5419 = vunpack.c.h.b16 %v5103
        %v5420 = vunpack.c.l.b16 %v5104
        %v5421 = vunpack.c.h.b16 %v5104
        %v5422 = vunpack.c.l.b16 %v5105
        %v5423 = vunpack.c.h.b16 %v5105
        %v5424 = vunpack.c.l.b16 %v5106
        %v5425 = vunpack.c.h.b16 %v5106
        %v5426 = vunpack.c.l.b16 %v5107
        %v5427 = vunpack.c.h.b16 %v5107
        %v5428 = vunpack.c.l.b16 %v5108
        %v5429 = vunpack.c.h.b16 %v5108
        %v5430 = vunpack.c.l.b16 %v5109
        %v5431 = vunpack.c.h.b16 %v5109
        %v5432 = vunpack.c.l.b16 %v5110
        %v5433 = vunpack.c.h.b16 %v5110
        %v5434 = vunpack.c.l.b16 %v5111
        %v5435 = vunpack.c.h.b16 %v5111
        %v5436 = vunpack.c.l.b16 %v5112
        %v5437 = vunpack.c.h.b16 %v5112
        %v5438 = vunpack.c.l.b16 %v5113
        %v5439 = vunpack.c.h.b16 %v5113
        %v5440 = vunpack.c.l.b16 %v5114
        %v5441 = vunpack.c.h.b16 %v5114
        %v5442 = vunpack.c.l.b16 %v5115
        %v5443 = vunpack.c.h.b16 %v5115
        %v5444 = vunpack.c.l.b16 %v5116
        %v5445 = vunpack.c.h.b16 %v5116
        %v5446 = vunpack.c.l.b16 %v5117
        %v5447 = vunpack.c.h.b16 %v5117
        %v5448 = vunpack.c.l.b16 %v5118
        %v5449 = vunpack.c.h.b16 %v5118
        %v5450 = vunpack.c.l.b16 %v5119
        %v5451 = vunpack.c.h.b16 %v5119
        %v5452 = vunpack.c.l.b16 %v5120
        %v5453 = vunpack.c.h.b16 %v5120
        %v5454 = vunpack.c.l.b16 %v5121
        %v5455 = vunpack.c.h.b16 %v5121
        %v5456 = vunpack.c.l.b16 %v5122
        %v5457 = vunpack.c.h.b16 %v5122
        %v5458 = vunpack.c.l.b16 %v5123
        %v5459 = vunpack.c.h.b16 %v5123
        %v5460 = vunpack.c.l.b16 %v5124
        %v5461 = vunpack.c.h.b16 %v5124
        %v5462 = vunpack.c.l.b16 %v5125
        %v5463 = vunpack.c.h.b16 %v5125
        %v5464 = vunpack.c.l.b16 %v5126
        %v5465 = vunpack.c.h.b16 %v5126
        %v5466 = vunpack.c.l.b16 %v5127
        %v5467 = vunpack.c.h.b16 %v5127
        %v5468 = vunpack.c.l.b16 %v5128
        %v5469 = vunpack.c.h.b16 %v5128
        %v5470 = vunpack.c.l.b16 %v5129
        %v5471 = vunpack.c.h.b16 %v5129
        %v5472 = vunpack.c.l.b16 %v5130
        %v5473 = vunpack.c.h.b16 %v5130
        %v5474 = vunpack.c.l.b16 %v5131
        %v5475 = vunpack.c.h.b16 %v5131
        %v5476 = vunpack.c.l.b16 %v5132
        %v5477 = vunpack.c.h.b16 %v5132
        %v5478 = vunpack.c.l.b16 %v5133
        %v5479 = vunpack.c.h.b16 %v5133
        %v5480 = vunpack.c.l.b16 %v5134
        %v5481 = vunpack.c.h.b16 %v5134
        %v5482 = vunpack.c.l.b16 %v5135
        %v5483 = vunpack.c.h.b16 %v5135
        %v5484 = vunpack.c.l.b16 %v5136
        %v5485 = vunpack.c.h.b16 %v5136
        %v5486 = vunpack.c.l.b16 %v5137
        %v5487 = vunpack.c.h.b16 %v5137
        %v5488 = vunpack.c.l.b16 %v5138
        %v5489 = vunpack.c.h.b16 %v5138
        %v5490 = vunpack.c.l.b16 %v5139
        %v5491 = vunpack.c.h.b16 %v5139
        %v5492 = vunpack.c.l.b16 %v5140
        %v5493 = vunpack.c.h.b16 %v5140
        %v5494 = vunpack.c.l.b16 %v5141
        %v5495 = vunpack.c.h.b16 %v5141
        %v5496 = vunpack.c.l.b16 %v5142
        %v5497 = vunpack.c.h.b16 %v5142
        %v5498 = vunpack.c.l.b16 %v5143
        %v5499 = vunpack.c.h.b16 %v5143
        %v5500 = vunpack.c.l.b16 %v5144
        %v5501 = vunpack.c.h.b16 %v5144
        %v5502 = vunpack.c.l.b16 %v5145
        %v5503 = vunpack.c.h.b16 %v5145
        %v5504 = vunpack.c.l.b16 %v5146
        %v5505 = vunpack.c.h.b16 %v5146
        %v5506 = vunpack.c.l.b16 %v5147
        %v5507 = vunpack.c.h.b16 %v5147
        %v5508 = vunpack.c.l.b16 %v5148
        %v5509 = vunpack.c.h.b16 %v5148
        %v5510 = vunpack.c.l.b16 %v5149
        %v5511 = vunpack.c.h.b16 %v5149
        %v5512 = vunpack.c.l.b16 %v5150
        %v5513 = vunpack.c.h.b16 %v5150
        %v5514 = vunpack.c.l.b16 %v5151
        %v5515 = vunpack.c.h.b16 %v5151
        %v5516 = vunpack.c.l.b16 %v5152
        %v5517 = vunpack.c.h.b16 %v5152
        %v5518 = vunpack.c.l.b16 %v5153
        %v5519 = vunpack.c.h.b16 %v5153
        %v5520 = vunpack.c.l.b16 %v5154
        %v5521 = vunpack.c.h.b16 %v5154
        %v5522 = vunpack.c.l.b16 %v5155
        %v5523 = vunpack.c.h.b16 %v5155
        %v5524 = vunpack.c.l.b16 %v5156
        %v5525 = vunpack.c.h.b16 %v5156
        %v5526 = vunpack.c.l.b16 %v5157
        %v5527 = vunpack.c.h.b16 %v5157
        %v5528 = vunpack.c.l.b16 %v5158
        %v5529 = vunpack.c.h.b16 %v5158
        %v5530 = vunpack.c.l.b16 %v5159
        %v5531 = vunpack.c.h.b16 %v5159
        %v5532 = vunpack.c.l.b16 %v5160
        %v5533 = vunpack.c.h.b16 %v5160
        %v5534 = vunpack.c.l.b16 %v5161
        %v5535 = vunpack.c.h.b16 %v5161
        %v5536 = vunpack.c.l.b16 %v5162
        %v5537 = vunpack.c.h.b16 %v5162
        %v5538 = vunpack.c.l.b16 %v5163
        %v5539 = vunpack.c.h.b16 %v5163
        %v5540 = vunpack.c.l.b16 %v5164
        %v5541 = vunpack.c.h.b16 %v5164
        %v5542 = vunpack.c.l.b16 %v5165
        %v5543 = vunpack.c.h.b16 %v5165
        %v5544 = vunpack.c.l.b16 %v5166
        %v5545 = vunpack.c.h.b16 %v5166
        %v5546 = vunpack.c.l.b16 %v5167
        %v5547 = vunpack.c.h.b16 %v5167
        %v5548 = vunpack.c.l.b16 %v5168
        %v5549 = vunpack.c.h.b16 %v5168
        %v5550 = vunpack.c.l.b16 %v5169
        %v5551 = vunpack.c.h.b16 %v5169
        %v5552 = vunpack.c.l.b16 %v5170
        %v5553 = vunpack.c.h.b16 %v5170
        %v5554 = vunpack.c.l.b16 %v5171
        %v5555 = vunpack.c.h.b16 %v5171
        %v5556 = vunpack.c.l.b16 %v5172
        %v5557 = vunpack.c.h.b16 %v5172
        %v5558 = vunpack.c.l.b16 %v5173
        %v5559 = vunpack.c.h.b16 %v5173
        %v5560 = vunpack.c.l.b16 %v5174
        %v5561 = vunpack.c.h.b16 %v5174
        %v5562 = vunpack.c.l.b16 %v5175
        %v5563 = vunpack.c.h.b16 %v5175
        %v5564 = vpack.c.b16 %v5312, %v5308
        %v5565 = vpack.c.b16 %v5313, %v5309
        %v5566 = vpack.c.b16 %v5314, %v5310
        %v5567 = vpack.c.b16 %v5315, %v5311
        %v5568 = vpack.c.b16 %v5320, %v5316
        %v5569 = vpack.c.b16 %v5321, %v5317
        %v5570 = vpack.c.b16 %v5322, %v5318
        %v5571 = vpack.c.b16 %v5323, %v5319
        %v5572 = vpack.c.b16 %v5328, %v5324
        %v5573 = vpack.c.b16 %v5329, %v5325
        %v5574 = vpack.c.b16 %v5330, %v5326
        %v5575 = vpack.c.b16 %v5331, %v5327
        %v5576 = vpack.c.b16 %v5336, %v5332
        %v5577 = vpack.c.b16 %v5337, %v5333
        %v5578 = vpack.c.b16 %v5338, %v5334
        %v5579 = vpack.c.b16 %v5339, %v5335
        %v5580 = vpack.c.b16 %v5344, %v5340
        %v5581 = vpack.c.b16 %v5345, %v5341
        %v5582 = vpack.c.b16 %v5346, %v5342
        %v5583 = vpack.c.b16 %v5347, %v5343
        %v5584 = vpack.c.b16 %v5352, %v5348
        %v5585 = vpack.c.b16 %v5353, %v5349
        %v5586 = vpack.c.b16 %v5354, %v5350
        %v5587 = vpack.c.b16 %v5355, %v5351
        %v5588 = vpack.c.b16 %v5360, %v5356
        %v5589 = vpack.c.b16 %v5361, %v5357
        %v5590 = vpack.c.b16 %v5362, %v5358
        %v5591 = vpack.c.b16 %v5363, %v5359
        %v5592 = vpack.c.b16 %v5368, %v5364
        %v5593 = vpack.c.b16 %v5369, %v5365
        %v5594 = vpack.c.b16 %v5370, %v5366
        %v5595 = vpack.c.b16 %v5371, %v5367
        %v5596 = vpack.c.b16 %v5376, %v5372
        %v5597 = vpack.c.b16 %v5377, %v5373
        %v5598 = vpack.c.b16 %v5378, %v5374
        %v5599 = vpack.c.b16 %v5379, %v5375
        %v5600 = vpack.c.b16 %v5384, %v5380
        %v5601 = vpack.c.b16 %v5385, %v5381
        %v5602 = vpack.c.b16 %v5386, %v5382
        %v5603 = vpack.c.b16 %v5387, %v5383
        %v5604 = vpack.c.b16 %v5392, %v5388
        %v5605 = vpack.c.b16 %v5393, %v5389
        %v5606 = vpack.c.b16 %v5394, %v5390
        %v5607 = vpack.c.b16 %v5395, %v5391
        %v5608 = vpack.c.b16 %v5400, %v5396
        %v5609 = vpack.c.b16 %v5401, %v5397
        %v5610 = vpack.c.b16 %v5402, %v5398
        %v5611 = vpack.c.b16 %v5403, %v5399
        %v5612 = vpack.c.b16 %v5408, %v5404
        %v5613 = vpack.c.b16 %v5409, %v5405
        %v5614 = vpack.c.b16 %v5410, %v5406
        %v5615 = vpack.c.b16 %v5411, %v5407
        %v5616 = vpack.c.b16 %v5416, %v5412
        %v5617 = vpack.c.b16 %v5417, %v5413
        %v5618 = vpack.c.b16 %v5418, %v5414
        %v5619 = vpack.c.b16 %v5419, %v5415
        %v5620 = vpack.c.b16 %v5424, %v5420
        %v5621 = vpack.c.b16 %v5425, %v5421
        %v5622 = vpack.c.b16 %v5426, %v5422
        %v5623 = vpack.c.b16 %v5427, %v5423
        %v5624 = vpack.c.b16 %v5432, %v5428
        %v5625 = vpack.c.b16 %v5433, %v5429
        %v5626 = vpack.c.b16 %v5434, %v5430
        %v5627 = vpack.c.b16 %v5435, %v5431
        %v5628 = vpack.c.b16 %v5440, %v5436
        %v5629 = vpack.c.b16 %v5441, %v5437
        %v5630 = vpack.c.b16 %v5442, %v5438
        %v5631 = vpack.c.b16 %v5443, %v5439
        %v5632 = vpack.c.b16 %v5448, %v5444
        %v5633 = vpack.c.b16 %v5449, %v5445
        %v5634 = vpack.c.b16 %v5450, %v5446
        %v5635 = vpack.c.b16 %v5451, %v5447
        %v5636 = vpack.c.b16 %v5456, %v5452
        %v5637 = vpack.c.b16 %v5457, %v5453
        %v5638 = vpack.c.b16 %v5458, %v5454
        %v5639 = vpack.c.b16 %v5459, %v5455
        %v5640 = vpack.c.b16 %v5464, %v5460
        %v5641 = vpack.c.b16 %v5465, %v5461
        %v5642 = vpack.c.b16 %v5466, %v5462
        %v5643 = vpack.c.b16 %v5467, %v5463
        %v5644 = vpack.c.b16 %v5472, %v5468
        %v5645 = vpack.c.b16 %v5473, %v5469
        %v5646 = vpack.c.b16 %v5474, %v5470
        %v5647 = vpack.c.b16 %v5475, %v5471
        %v5648 = vpack.c.b16 %v5480, %v5476
        %v5649 = vpack.c.b16 %v5481, %v5477
        %v5650 = vpack.c.b16 %v5482, %v5478
        %v5651 = vpack.c.b16 %v5483, %v5479
        %v5652 = vpack.c.b16 %v5488, %v5484
        %v5653 = vpack.c.b16 %v5489, %v5485
        %v5654 = vpack.c.b16 %v5490, %v5486
        %v5655 = vpack.c.b16 %v5491, %v5487
        %v5656 = vpack.c.b16 %v5496, %v5492
        %v5657 = vpack.c.b16 %v5497, %v5493
        %v5658 = vpack.c.b16 %v5498, %v5494
        %v5659 = vpack.c.b16 %v5499, %v5495
        %v5660 = vpack.c.b16 %v5504, %v5500
        %v5661 = vpack.c.b16 %v5505, %v5501
        %v5662 = vpack.c.b16 %v5506, %v5502
        %v5663 = vpack.c.b16 %v5507, %v5503
        %v5664 = vpack.c.b16 %v5512, %v5508
        %v5665 = vpack.c.b16 %v5513, %v5509
        %v5666 = vpack.c.b16 %v5514, %v5510
        %v5667 = vpack.c.b16 %v5515, %v5511
        %v5668 = vpack.c.b16 %v5520, %v5516
        %v5669 = vpack.c.b16 %v5521, %v5517
        %v5670 = vpack.c.b16 %v5522, %v5518
        %v5671 = vpack.c.b16 %v5523, %v5519
        %v5672 = vpack.c.b16 %v5528, %v5524
        %v5673 = vpack.c.b16 %v5529, %v5525
        %v5674 = vpack.c.b16 %v5530, %v5526
        %v5675 = vpack.c.b16 %v5531, %v5527
        %v5676 = vpack.c.b16 %v5536, %v5532
        %v5677 = vpack.c.b16 %v5537, %v5533
        %v5678 = vpack.c.b16 %v5538, %v5534
        %v5679 = vpack.c.b16 %v5539, %v5535
        %v5680 = vpack.c.b16 %v5544, %v5540
        %v5681 = vpack.c.b16 %v5545, %v5541
        %v5682 = vpack.c.b16 %v5546, %v5542
        %v5683 = vpack.c.b16 %v5547, %v5543
        %v5684 = vpack.c.b16 %v5552, %v5548
        %v5685 = vpack.c.b16 %v5553, %v5549
        %v5686 = vpack.c.b16 %v5554, %v5550
        %v5687 = vpack.c.b16 %v5555, %v5551
        %v5688 = vpack.c.b16 %v5560, %v5556
        %v5689 = vpack.c.b16 %v5561, %v5557
        %v5690 = vpack.c.b16 %v5562, %v5558
        %v5691 = vpack.c.b16 %v5563, %v5559
        %5820 = vmatpush.bf16.msra.mxu0 %v5592
        %5821 = vmatpush.bf16.msra.mxu0 %v5588
        %5822 = vmatpush.bf16.msra.mxu0 %v5584
        %5823 = vmatpush.bf16.msra.mxu0 %v5580
        %5824 = vmatpush.bf16.msra.mxu0 %v5576
        %5825 = vmatpush.bf16.msra.mxu0 %v5572
        %5826 = vmatpush.bf16.msra.mxu0 %v5568
        %5827 = vmatpush.bf16.msra.mxu0 %v5564
        %5828 = vmatmul.bf16.gmra.mxu0 %v5176
        %v5829 = vpop.f32.mrf.mxu0
        %v5830 = vadd.f32 0.0, %v5829
        %v5831 = vpop.f32.mrf.mxu0
        %5832 = vdwg.mxu0
        %5833 = vmatpush.bf16.msra.mxu0 %v5624
        %5834 = vmatpush.bf16.msra.mxu0 %v5620
        %5835 = vmatpush.bf16.msra.mxu0 %v5616
        %5836 = vmatpush.bf16.msra.mxu0 %v5612
        %5837 = vmatpush.bf16.msra.mxu0 %v5608
        %5838 = vmatpush.bf16.msra.mxu0 %v5604
        %5839 = vmatpush.bf16.msra.mxu0 %v5600
        %5840 = vmatpush.bf16.msra.mxu0 %v5596
        %5841 = vmatmul.bf16.gmra.mxu0 %v5177
        %v5842 = vpop.f32.mrf.mxu0
        %v5843 = vadd.f32 %v5830, %v5842
        %v5844 = vpop.f32.mrf.mxu0
        %5845 = vdwg.mxu0
        %5846 = vmatpush.bf16.msra.mxu0 %v5656
        %5847 = vmatpush.bf16.msra.mxu0 %v5652
        %5848 = vmatpush.bf16.msra.mxu0 %v5648
        %5849 = vmatpush.bf16.msra.mxu0 %v5644
        %5850 = vmatpush.bf16.msra.mxu0 %v5640
        %5851 = vmatpush.bf16.msra.mxu0 %v5636
        %5852 = vmatpush.bf16.msra.mxu0 %v5632
        %5853 = vmatpush.bf16.msra.mxu0 %v5628
        %5854 = vmatmul.bf16.gmra.mxu0 %v5178
        %v5855 = vpop.f32.mrf.mxu0
        %v5856 = vadd.f32 %v5843, %v5855
        %v5857 = vpop.f32.mrf.mxu0
        %5858 = vdwg.mxu0
        %5859 = vmatpush.bf16.msra.mxu0 %v5688
        %5860 = vmatpush.bf16.msra.mxu0 %v5684
        %5861 = vmatpush.bf16.msra.mxu0 %v5680
        %5862 = vmatpush.bf16.msra.mxu0 %v5676
        %5863 = vmatpush.bf16.msra.mxu0 %v5672
        %5864 = vmatpush.bf16.msra.mxu0 %v5668
        %5865 = vmatpush.bf16.msra.mxu0 %v5664
        %5866 = vmatpush.bf16.msra.mxu0 %v5660
        %5867 = vmatmul.bf16.gmra.mxu0 %v5179
        %v5868 = vpop.f32.mrf.mxu0
        %v5869 = vadd.f32 %v5856, %v5868
        %v5870 = vpop.f32.mrf.mxu0
        %5871 = vdwg.mxu0
        %5872 = vmatpush.bf16.msra.mxu0 %v5593
        %5873 = vmatpush.bf16.msra.mxu0 %v5589
        %5874 = vmatpush.bf16.msra.mxu0 %v5585
        %5875 = vmatpush.bf16.msra.mxu0 %v5581
        %5876 = vmatpush.bf16.msra.mxu0 %v5577
        %5877 = vmatpush.bf16.msra.mxu0 %v5573
        %5878 = vmatpush.bf16.msra.mxu0 %v5569
        %5879 = vmatpush.bf16.msra.mxu0 %v5565
        %5880 = vmatmul.bf16.gmra.mxu0 %v5176
        %v5881 = vpop.f32.mrf.mxu0
        %v5882 = vadd.f32 0.0, %v5881
        %v5883 = vpop.f32.mrf.mxu0
        %5884 = vdwg.mxu0
        %5885 = vmatpush.bf16.msra.mxu0 %v5625
        %5886 = vmatpush.bf16.msra.mxu0 %v5621
        %5887 = vmatpush.bf16.msra.mxu0 %v5617
        %5888 = vmatpush.bf16.msra.mxu0 %v5613
        %5889 = vmatpush.bf16.msra.mxu0 %v5609
        %5890 = vmatpush.bf16.msra.mxu0 %v5605
        %5891 = vmatpush.bf16.msra.mxu0 %v5601
        %5892 = vmatpush.bf16.msra.mxu0 %v5597
        %5893 = vmatmul.bf16.gmra.mxu0 %v5177
        %v5894 = vpop.f32.mrf.mxu0
        %v5895 = vadd.f32 %v5882, %v5894
        %v5896 = vpop.f32.mrf.mxu0
        %5897 = vdwg.mxu0
        %5898 = vmatpush.bf16.msra.mxu0 %v5657
        %5899 = vmatpush.bf16.msra.mxu0 %v5653
        %5900 = vmatpush.bf16.msra.mxu0 %v5649
        %5901 = vmatpush.bf16.msra.mxu0 %v5645
        %5902 = vmatpush.bf16.msra.mxu0 %v5641
        %5903 = vmatpush.bf16.msra.mxu0 %v5637
        %5904 = vmatpush.bf16.msra.mxu0 %v5633
        %5905 = vmatpush.bf16.msra.mxu0 %v5629
        %5906 = vmatmul.bf16.gmra.mxu0 %v5178
        %v5907 = vpop.f32.mrf.mxu0
        %v5908 = vadd.f32 %v5895, %v5907
        %v5909 = vpop.f32.mrf.mxu0
        %5910 = vdwg.mxu0
        %5911 = vmatpush.bf16.msra.mxu0 %v5689
        %5912 = vmatpush.bf16.msra.mxu0 %v5685
        %5913 = vmatpush.bf16.msra.mxu0 %v5681
        %5914 = vmatpush.bf16.msra.mxu0 %v5677
        %5915 = vmatpush.bf16.msra.mxu0 %v5673
        %5916 = vmatpush.bf16.msra.mxu0 %v5669
        %5917 = vmatpush.bf16.msra.mxu0 %v5665
        %5918 = vmatpush.bf16.msra.mxu0 %v5661
        %5919 = vmatmul.bf16.gmra.mxu0 %v5179
        %v5920 = vpop.f32.mrf.mxu0
        %v5921 = vadd.f32 %v5908, %v5920
        %v5922 = vpop.f32.mrf.mxu0
        %5923 = vdwg.mxu0
        %5924 = vmatpush.bf16.msra.mxu0 %v5594
        %5925 = vmatpush.bf16.msra.mxu0 %v5590
        %5926 = vmatpush.bf16.msra.mxu0 %v5586
        %5927 = vmatpush.bf16.msra.mxu0 %v5582
        %5928 = vmatpush.bf16.msra.mxu0 %v5578
        %5929 = vmatpush.bf16.msra.mxu0 %v5574
        %5930 = vmatpush.bf16.msra.mxu0 %v5570
        %5931 = vmatpush.bf16.msra.mxu0 %v5566
        %5932 = vmatmul.bf16.gmra.mxu0 %v5176
        %v5933 = vpop.f32.mrf.mxu0
        %v5934 = vadd.f32 0.0, %v5933
        %v5935 = vpop.f32.mrf.mxu0
        %5936 = vdwg.mxu0
        %5937 = vmatpush.bf16.msra.mxu0 %v5626
        %5938 = vmatpush.bf16.msra.mxu0 %v5622
        %5939 = vmatpush.bf16.msra.mxu0 %v5618
        %5940 = vmatpush.bf16.msra.mxu0 %v5614
        %5941 = vmatpush.bf16.msra.mxu0 %v5610
        %5942 = vmatpush.bf16.msra.mxu0 %v5606
        %5943 = vmatpush.bf16.msra.mxu0 %v5602
        %5944 = vmatpush.bf16.msra.mxu0 %v5598
        %5945 = vmatmul.bf16.gmra.mxu0 %v5177
        %v5946 = vpop.f32.mrf.mxu0
        %v5947 = vadd.f32 %v5934, %v5946
        %v5948 = vpop.f32.mrf.mxu0
        %5949 = vdwg.mxu0
        %5950 = vmatpush.bf16.msra.mxu0 %v5658
        %5951 = vmatpush.bf16.msra.mxu0 %v5654
        %5952 = vmatpush.bf16.msra.mxu0 %v5650
        %5953 = vmatpush.bf16.msra.mxu0 %v5646
        %5954 = vmatpush.bf16.msra.mxu0 %v5642
        %5955 = vmatpush.bf16.msra.mxu0 %v5638
        %5956 = vmatpush.bf16.msra.mxu0 %v5634
        %5957 = vmatpush.bf16.msra.mxu0 %v5630
        %5958 = vmatmul.bf16.gmra.mxu0 %v5178
        %v5959 = vpop.f32.mrf.mxu0
        %v5960 = vadd.f32 %v5947, %v5959
        %v5961 = vpop.f32.mrf.mxu0
        %5962 = vdwg.mxu0
        %5963 = vmatpush.bf16.msra.mxu0 %v5690
        %5964 = vmatpush.bf16.msra.mxu0 %v5686
        %5965 = vmatpush.bf16.msra.mxu0 %v5682
        %5966 = vmatpush.bf16.msra.mxu0 %v5678
        %5967 = vmatpush.bf16.msra.mxu0 %v5674
        %5968 = vmatpush.bf16.msra.mxu0 %v5670
        %5969 = vmatpush.bf16.msra.mxu0 %v5666
        %5970 = vmatpush.bf16.msra.mxu0 %v5662
        %5971 = vmatmul.bf16.gmra.mxu0 %v5179
        %v5972 = vpop.f32.mrf.mxu0
        %v5973 = vadd.f32 %v5960, %v5972
        %v5974 = vpop.f32.mrf.mxu0
        %5975 = vdwg.mxu0
        %5976 = vmatpush.bf16.msra.mxu0 %v5595
        %5977 = vmatpush.bf16.msra.mxu0 %v5591
        %5978 = vmatpush.bf16.msra.mxu0 %v5587
        %5979 = vmatpush.bf16.msra.mxu0 %v5583
        %5980 = vmatpush.bf16.msra.mxu0 %v5579
        %5981 = vmatpush.bf16.msra.mxu0 %v5575
        %5982 = vmatpush.bf16.msra.mxu0 %v5571
        %5983 = vmatpush.bf16.msra.mxu0 %v5567
        %5984 = vmatmul.bf16.gmra.mxu0 %v5176
        %v5985 = vpop.f32.mrf.mxu0
        %v5986 = vadd.f32 0.0, %v5985
        %v5987 = vpop.f32.mrf.mxu0
        %5988 = vdwg.mxu0
        %5989 = vmatpush.bf16.msra.mxu0 %v5627
        %5990 = vmatpush.bf16.msra.mxu0 %v5623
        %5991 = vmatpush.bf16.msra.mxu0 %v5619
        %5992 = vmatpush.bf16.msra.mxu0 %v5615
        %5993 = vmatpush.bf16.msra.mxu0 %v5611
        %5994 = vmatpush.bf16.msra.mxu0 %v5607
        %5995 = vmatpush.bf16.msra.mxu0 %v5603
        %5996 = vmatpush.bf16.msra.mxu0 %v5599
        %5997 = vmatmul.bf16.gmra.mxu0 %v5177
        %v5998 = vpop.f32.mrf.mxu0
        %v5999 = vadd.f32 %v5986, %v5998
        %v6000 = vpop.f32.mrf.mxu0
        %6001 = vdwg.mxu0
        %6002 = vmatpush.bf16.msra.mxu0 %v5659
        %6003 = vmatpush.bf16.msra.mxu0 %v5655
        %6004 = vmatpush.bf16.msra.mxu0 %v5651
        %6005 = vmatpush.bf16.msra.mxu0 %v5647
        %6006 = vmatpush.bf16.msra.mxu0 %v5643
        %6007 = vmatpush.bf16.msra.mxu0 %v5639
        %6008 = vmatpush.bf16.msra.mxu0 %v5635
        %6009 = vmatpush.bf16.msra.mxu0 %v5631
        %6010 = vmatmul.bf16.gmra.mxu0 %v5178
        %v6011 = vpop.f32.mrf.mxu0
        %v6012 = vadd.f32 %v5999, %v6011
        %v6013 = vpop.f32.mrf.mxu0
        %6014 = vdwg.mxu0
        %6015 = vmatpush.bf16.msra.mxu0 %v5691
        %6016 = vmatpush.bf16.msra.mxu0 %v5687
        %6017 = vmatpush.bf16.msra.mxu0 %v5683
        %6018 = vmatpush.bf16.msra.mxu0 %v5679
        %6019 = vmatpush.bf16.msra.mxu0 %v5675
        %6020 = vmatpush.bf16.msra.mxu0 %v5671
        %6021 = vmatpush.bf16.msra.mxu0 %v5667
        %6022 = vmatpush.bf16.msra.mxu0 %v5663
        %6023 = vmatmul.bf16.gmra.mxu0 %v5179
        %v6024 = vpop.f32.mrf.mxu0
        %v6025 = vadd.f32 %v6012, %v6024
        %v6026 = vpop.f32.mrf.mxu0
        %6027 = vdwg.mxu0
        %6028 = vst [vmem:[%s263] sm:$0xff] %v5869
        %6029 = vst [vmem:[%s263 + $0x8] sm:$0xff] %v5921
        %6030 = vst [vmem:[%s263 + $0x10] sm:$0xff] %v5973
        %6031 = vst [vmem:[%s263 + $0x18] sm:$0xff] %v6025
        %s6032 = sand.u32 %s120, 1
        %s6033 = scalar_lea.sflag [#allocation4], %s6032
        %s6034 = sand.u32 %s120, 1
        %s6035 = smul.addr %s6034, 32
        %s6036 = scalar_lea.vmem [#allocation10], %s6035
        // Predicated region
        $region53: #{tpu_custom_call.1} parent=35 // pred_check
          %p6037 = pneg %p130
        $region54: #{tpu_custom_call.1} parent=35 // pred_check_branch
          %6039 = sbr.rel (%p6037) target = $region56
        $region55: #{tpu_custom_call.1} parent=35 // pred_region
          %6041 = vsyncadd %s6033, 0
          %s6042 = smul.addr %s23, 4
          %s6043 = smul.addr %s6042, 8
          %s6044 = scalar_lea.hbm %s4, %s6043
          %s6046 = sshll.u32 %s6036, 4
          %s6047 = int_to_ptr.vmem [resolvable:$true] %s6046
          %s6048 = sshll.u32 %s6044, 4
          %s6049 = int_to_ptr.hbm [resolvable:$true] %s6048
          %6051 = dma.vmem_to_hbm [thread:$0]  %s6047, 512, %s6049, %s6033
        $region56: #{tpu_custom_call.1} parent=35 // pred_fallthru
          _
      $region36: #{tpu_custom_call.1} parent=5 // pred_fallthru
        _
      %p6052 = scmp.le.s32.totalorder 2, %s18
      // Predicated region
      $region57: #{tpu_custom_call.1} parent=5 // pred_check
        %p6053 = pneg %p6052
      $region58: #{tpu_custom_call.1} parent=5 // pred_check_branch
        %6055 = sbr.rel (%p6053) target = $region60
      $region59: #{tpu_custom_call.1} parent=5 // pred_region
        %s6056 = ssub.s32 %s18, 2
        // Predicated region
        $region61: #{tpu_custom_call.1} parent=59 // pred_check
          %p6057 = pneg %p136
        $region62: #{tpu_custom_call.1} parent=59 // pred_check_branch
          %6059 = sbr.rel (%p6057) target = $region64
        $region63: #{tpu_custom_call.1} parent=59 // pred_region
          %s6060 = sand.u32 %s121, 1
          %s6061 = scalar_lea.sflag [#allocation4], %s6060
          %s6062 = sand.u32 %s121, 1
          %s6063 = smul.addr %s6062, 32
          %s6064 = scalar_lea.vmem [#allocation10], %s6063
          %6066 = dma.done %s6061, 512
        $region64: #{tpu_custom_call.1} parent=59 // pred_fallthru
          _
      $region60: #{tpu_custom_call.1} parent=5 // pred_fallthru
        _
    $region6: #{tpu_custom_call.1} parent=1 // loop_footer
      %s22 = sadd.s32 1, %s18
    $region7: #{tpu_custom_call.1} parent=1 // loop_footer_branch
      %17 = sbr.rel target = $region3
    $region8: #{tpu_custom_call.1} parent=1 // loop_exit
      _
    %6067 = vsyncpa [#allocation3], 1
    %s6068 = scalar_lea.sflag [#allocation3], 1
    %6069 = vsyncpa %s6068, 1
    %6070 = vsyncpa [#allocation6], 1
    %6071 = vsyncpa [#allocation9], 1
    %6072 = vsyncpa [#allocation4], 1
    %s6073 = scalar_lea.sflag [#allocation4], 1
    %6074 = vsyncpa %s6073, 1

</llo_original>
